<compile_context>
chip_gen: v6e
topology: v6e:2x2x1
jax: 0.10.0
libtpu: 0.0.40
codegen_flags: <defaults>
</compile_context>

<pallas_src>
import functools

import jax
import jax.numpy as jnp
from jax.experimental import pallas as pl
from jax.experimental.pallas import tpu as pltpu

LANES = 128   # lane width of the packed weight slab and of the output block


# ----------------------- weight packing (done once, outside jit) -------------
def pack_astgcn_params(params, *, num_heads):
    """Pack all weights/biases (+ head-grouping matrices) into one [R,128] slab."""
    f32 = jnp.float32
    F, H = params["W_in"].shape
    PF = params["Wout"].shape[1]
    d = H // num_heads
    scale = 1.0 / float(d) ** 0.5
    assert 3 * H <= LANES and PF <= LANES and num_heads <= LANES

    hi = "highest"
    # precompute W_in@W1 / b_in@W1+b1 so sh = tanh(x @ W_inW1 + b_sh)
    W_inW1 = jnp.dot(params["W_in"], params["W1"], precision=hi)
    b_sh = jnp.dot(params["b_in"], params["W1"], precision=hi) + params["b1"]
    # fused QKV projection; 1/sqrt(d) folded into Wq / bq
    Wqkv = jnp.concatenate([params["Wq"] * scale, params["Wk"], params["Wv"]], axis=1)
    bqkv = jnp.concatenate([params["bq"] * scale, params["bk"], params["bv"]], axis=1)
    # head-grouping matrices (sum / broadcast the d lanes of each head)
    G = jnp.repeat(jnp.eye(num_heads, dtype=f32), d, axis=0)      # [H, nh]
    GT = jnp.transpose(G)                                         # [nh, H]

    def pad(a, rows):
        out = jnp.zeros((rows, LANES), f32)
        return out.at[: a.shape[0], : a.shape[1]].set(a.astype(f32))

    r8 = max(8, ((F + 7) // 8) * 8)
    blocks = [
        ("W_in", params["W_in"], r8),
        ("W_inW1", W_inW1, r8),
        ("W2", params["W2"], H),
        ("Wqkv", Wqkv, H),
        ("Wo", params["Wo"], H),
        ("Wg1", params["Wg1"], H),
        ("Wg2", params["Wg2"], H),
        ("Wout", params["Wout"], H),      # zero-padded to 128 cols -> lane-dense out
        ("G", G, H),
        ("GT", GT, max(8, num_heads)),
    ]
    offs, rows, r = {}, [], 0
    for name, arr, nr in blocks:
        offs[name] = r
        rows.append(pad(arr, nr))
        r += nr

    bias_rows = {"b_in": 0, "b_sh": 1, "b2": 2, "bqkv": 3,
                 "bo": 4, "bg1": 5, "bg2": 6, "bout": 7}
    offs["bias"] = r
    biases = [params["b_in"], b_sh, params["b2"], bqkv,
              params["bo"], params["bg1"], params["bg2"], params["bout"]]
    bb = jnp.zeros((8, LANES), f32)
    for i, b in enumerate(biases):
        bb = bb.at[i, : b.shape[-1]].set(b.reshape(-1).astype(f32))
    rows.append(bb)
    r += 8

    slab = jnp.concatenate(rows, axis=0)                          # [r, 128]
    meta = dict(offsets=offs, bias_rows=bias_rows, hidden=H, num_heads=num_heads)
    return slab, meta


# ----------------------- Fused ASTGCN kernel ---------------------------------
def _astgcn_kernel(x_ref, adj_ref, ws_ref, o_ref, hg_ref, *,
                   nb, seq_len, num_nodes, num_heads, num_feat, hidden,
                   offs, bias_rows):
    T, N, nh, F, H = seq_len, num_nodes, num_heads, num_feat, hidden

    def W(name, nrows, ncols):            # static slices of the packed slab
        r0 = offs[name]
        return ws_ref[r0:r0 + nrows, 0:ncols]

    def Bvec(name, ncols):
        r0 = offs["bias"] + bias_rows[name]
        return ws_ref[r0:r0 + 1, 0:ncols]

    w_in = W("W_in", F, H)
    w_sh = W("W_inW1", F, H)
    w2 = W("W2", H, H)
    wqkv = W("Wqkv", H, 3 * H)
    wo = W("Wo", H, H)
    wg1 = W("Wg1", H, H)
    wg2 = W("Wg2", H, H)
    wout = W("Wout", H, LANES)
    g = W("G", H, nh)
    gt = W("GT", nh, H)

    b_in = Bvec("b_in", H)
    b_sh = Bvec("b_sh", H)
    b2 = Bvec("b2", H)
    bqkv = Bvec("bqkv", 3 * H)
    bo = Bvec("bo", H)
    bg1 = Bvec("bg1", H)
    bg2 = Bvec("bg2", H)
    bout = Bvec("bout", LANES)

    adj = adj_ref[...]                                     # [N, N]
    x_all = x_ref[...]                                     # [nb*T*N, F]

    # ---- stage 1: input projection + spatial attention (softmax over nodes).
    #      sh no longer depends on h (W_in@W1 precomputed in the wrapper).
    h_all = jnp.dot(x_all, w_in, preferred_element_type=jnp.float32) + b_in
    sh_all = jnp.tanh(
        jnp.dot(x_all, w_sh, preferred_element_type=jnp.float32) + b_sh)
    sc_all = jnp.dot(sh_all, w2, preferred_element_type=jnp.float32) + b2

    for bt in range(nb * T):                               # static unroll
        r0 = bt * N
        sct = sc_all[r0:r0 + N, :]
        mt = jnp.max(sct, axis=0, keepdims=True)
        et = jnp.exp(sct - mt)
        at = et * pl.reciprocal(jnp.sum(et, axis=0, keepdims=True), approx=True)
        hg_ref[r0:r0 + N, :] = h_all[r0:r0 + N, :] * at    # aligned 16-row store

    hg_all = hg_ref[...]                                   # [nb*T*N, H]

    # ---- stage 2: temporal multi-head self-attention; only the t = T-1 query
    #      is consumed downstream.  Single fused QKV projection.
    qkv = jnp.dot(hg_all, wqkv, preferred_element_type=jnp.float32) + bqkv
    q_all, k_all, v_all = qkv[:, 0:H], qkv[:, H:2 * H], qkv[:, 2 * H:3 * H]

    for b in range(nb):                                    # static unroll
        base = b * T * N
        q = q_all[base + (T - 1) * N: base + T * N, :]     # [N, H] (pre-scaled)
        k = k_all[base: base + T * N, :]                   # [T*N, H]
        v = v_all[base: base + T * N, :]
        qb = jnp.broadcast_to(q[None], (T, N, H)).reshape(T * N, H)

        # head-batched scores: G sums the d lanes of each head
        s = jnp.dot(k * qb, g, preferred_element_type=jnp.float32)  # [T*N, nh]

        # softmax over the T key positions per (node, head)
        m = s[0:N, :]
        for t in range(1, T):
            m = jnp.maximum(m, s[t * N:(t + 1) * N, :])
        den = jnp.zeros_like(m)
        ctx = jnp.zeros((N, H), dtype=jnp.float32)
        for t in range(T):
            et = jnp.exp(s[t * N:(t + 1) * N, :] - m)                 # [N, nh]
            den = den + et
            pe = jnp.dot(et, gt, preferred_element_type=jnp.float32)  # [N, H]
            ctx = ctx + pe * v[t * N:(t + 1) * N, :]
        # normalizer factored out of the V-sum: one multiply instead of T
        inv = jnp.dot(pl.reciprocal(den, approx=True), gt,
                      preferred_element_type=jnp.float32)             # [N, H]
        ctx = ctx * inv
        # TODO(synk): attention dropout (p=0.1) is identity in eval mode; not modeled.
        y_last = jnp.dot(ctx, wo, preferred_element_type=jnp.float32) + bo

        # ---- stage 3: 2-layer GCN + output head (PyTorch keeps only t = T-1)
        h1 = jnp.dot(adj, y_last, preferred_element_type=jnp.float32)
        h1 = jnp.maximum(
            jnp.dot(h1, wg1, preferred_element_type=jnp.float32) + bg1, 0.0)
        h2 = jnp.dot(adj, h1, preferred_element_type=jnp.float32)
        h2 = jnp.maximum(
            jnp.dot(h2, wg2, preferred_element_type=jnp.float32) + bg2, 0.0)
        # lane-dense (128-col) store; cols >= PF are zero, sliced off outside
        o_ref[b * N:(b + 1) * N, :] = jnp.dot(
            h2, wout, preferred_element_type=jnp.float32) + bout


# ----------------------- Wrapper ---------------------------------------------
def _batch_over_cores():
    """True on multi-TensorCore chips (v7x): give each core one batch element."""
    try:
        dev = jax.devices()[0]
        if dev.platform != "tpu":
            return False
        kind = dev.device_kind.lower()
        return ("v7" in kind) or ("7x" in kind)
    except Exception:
        return False


def astgcn_forward(x, adj, weight_slab, *, meta, num_heads, pred_len, num_feat):
    B, T, N, F = x.shape
    H = meta["hidden"]
    PF = pred_len * num_feat

    # v7x: grid=(B,) "parallel" -> one batch element per TensorCore.
    # v5e / v6e (single TC): fold B into the row axis, single grid step.
    nb = 1 if (B > 1 and _batch_over_cores()) else B
    steps = B // nb
    rows = nb * T * N

    x2 = x.reshape(B * T * N, F)

    kern = functools.partial(
        _astgcn_kernel, nb=nb, seq_len=T, num_nodes=N, num_heads=num_heads,
        num_feat=F, hidden=H, offs=meta["offsets"], bias_rows=meta["bias_rows"])

    out = pl.pallas_call(
        kern,
        out_shape=jax.ShapeDtypeStruct((B * N, LANES), jnp.float32),
        grid=(steps,),
        in_specs=[pl.BlockSpec((rows, F), lambda i: (i, 0)),
                  pl.BlockSpec((N, N), lambda i: (0, 0)),
                  pl.BlockSpec(weight_slab.shape, lambda i: (0, 0))],
        out_specs=pl.BlockSpec((nb * N, LANES), lambda i: (i, 0)),
        scratch_shapes=[pltpu.VMEM((rows, H), jnp.float32)],
        compiler_params=pltpu.CompilerParams(
            dimension_semantics=("parallel",)),
    )(x2, adj, weight_slab)
    return out[:, :PF].reshape(B, N, pred_len, num_feat)


# ----------------------- Pure-JAX reference (for verification) ---------------
def reference_forward(x, adj, p, *, num_heads, pred_len, num_feat):
    with jax.default_matmul_precision("highest"):
        B, T, N, F = x.shape
        H = p["W_in"].shape[1]
        h = x @ p["W_in"] + p["b_in"]
        sh = jnp.tanh(h @ p["W1"] + p["b1"])
        sc = sh @ p["W2"] + p["b2"]
        attn = jax.nn.softmax(sc, axis=2)
        h = h * attn
        xt = jnp.transpose(h, (0, 2, 1, 3)).reshape(B * N, T, H)
        q = xt @ p["Wq"] + p["bq"]
        k = xt @ p["Wk"] + p["bk"]
        v = xt @ p["Wv"] + p["bv"]
        d = H // num_heads
        S = B * N
        qh = q.reshape(S, T, num_heads, d).transpose(0, 2, 1, 3)
        kh = k.reshape(S, T, num_heads, d).transpose(0, 2, 1, 3)
        vh = v.reshape(S, T, num_heads, d).transpose(0, 2, 1, 3)
        s = (qh @ kh.transpose(0, 1, 3, 2)) / jnp.sqrt(jnp.float32(d))
        pw = jax.nn.softmax(s, axis=-1)
        o = (pw @ vh).transpose(0, 2, 1, 3).reshape(S, T, H)
        o = o @ p["Wo"] + p["bo"]
        y = jnp.transpose(o.reshape(B, N, T, H), (0, 2, 1, 3))
        hl = y[:, -1]
        h1 = jnp.einsum("nm,bmh->bnh", adj, hl)
        h1 = jax.nn.relu(h1 @ p["Wg1"] + p["bg1"])
        h2 = jnp.einsum("nm,bmh->bnh", adj, h1)
        h2 = jax.nn.relu(h2 @ p["Wg2"] + p["bg2"])
        out = h2 @ p["Wout"] + p["bout"]
        return out.reshape(B, N, pred_len, num_feat)


# ----------------------- Main -------------------------------------------------
if __name__ == "__main__":
    # Small shapes consistent with the module's forward
    B, T, N, F = 2, 8, 16, 4
    H = 32
    NUM_HEADS = 8
    P = 3                       # prediction_length

    key = jax.random.PRNGKey(0)
    ks = jax.random.split(key, 24)

    def w(k, shape, scale=0.1):
        return (scale * jax.random.normal(k, shape)).astype(jnp.float32)

    # All linear weights stored pre-transposed as [in, out]; biases as [1, out].
    params = {
        "W_in": w(ks[0], (F, H)),  "b_in": w(ks[1], (1, H)),
        "W1":   w(ks[2], (H, H)),  "b1":   w(ks[3], (1, H)),
        "W2":   w(ks[4], (H, H)),  "b2":   w(ks[5], (1, H)),
        "Wq":   w(ks[6], (H, H)),  "bq":   w(ks[7], (1, H)),
        "Wk":   w(ks[8], (H, H)),  "bk":   w(ks[9], (1, H)),
        "Wv":   w(ks[10], (H, H)), "bv":   w(ks[11], (1, H)),
        "Wo":   w(ks[12], (H, H)), "bo":   w(ks[13], (1, H)),
        "Wg1":  w(ks[14], (H, H)), "bg1":  w(ks[15], (1, H)),
        "Wg2":  w(ks[16], (H, H)), "bg2":  w(ks[17], (1, H)),
        "Wout": w(ks[18], (H, P * F)), "bout": w(ks[19], (1, P * F)),
    }

    x = jax.random.normal(ks[20], (B, T, N, F), dtype=jnp.float32)
    adj = jax.random.uniform(ks[21], (N, N), dtype=jnp.float32)
    adj = adj / jnp.sum(adj, axis=-1, keepdims=True)   # row-normalized adjacency

    # pack all weights/biases into a single slab once, outside jit
    slab, meta = pack_astgcn_params(params, num_heads=NUM_HEADS)

    fwd = jax.jit(functools.partial(astgcn_forward, meta=meta,
                                    num_heads=NUM_HEADS, pred_len=P, num_feat=F))
    out = fwd(x, adj, slab)
    jax.block_until_ready(out)

    ref = reference_forward(x, adj, params, num_heads=NUM_HEADS,
                            pred_len=P, num_feat=F)
    assert out.shape == (B, N, P, F), out.shape
    assert bool(jnp.all(jnp.isfinite(out)))
    assert bool(jnp.allclose(out, ref, atol=1e-2, rtol=1e-2)), \
        float(jnp.max(jnp.abs(out - ref)))

    print("KERNEL_OK")
</pallas_src>

<mosaic_0001>
module attributes {stable_mosaic.version = 11 : i64} {
  func.func @_astgcn_kernel(%arg0: i32, %arg1: memref<256x4xf32, #tpu.memory_space<vmem>>, %arg2: memref<16x16xf32, #tpu.memory_space<vmem>>, %arg3: memref<256x128xf32, #tpu.memory_space<vmem>>, %arg4: memref<32x128xf32, #tpu.memory_space<vmem>>, %arg5: memref<256x32xf32, #tpu.memory_space<vmem>>) attributes {dimension_semantics = [#tpu.dimension_semantics<parallel>], iteration_bounds = array<i64: 1>, scalar_prefetch = 0 : i64, scratch_operands = 1 : i64, tpu.core_type = #tpu.core_type<tc>, window_params = [{transform_indices = @transform_0, window_bounds = array<i64: 256, 4>}, {pipeline_mode = #tpu.pipeline_mode<synchronous>, transform_indices = @transform_1, window_bounds = array<i64: 16, 16>}, {pipeline_mode = #tpu.pipeline_mode<synchronous>, transform_indices = @transform_2, window_bounds = array<i64: 256, 128>}, {transform_indices = @transform_3, window_bounds = array<i64: 32, 128>}]} {
    %c0 = arith.constant 0 : index
    %c0_0 = arith.constant 0 : index
    %0 = vector.load %arg3[%c0, %c0_0] : memref<256x128xf32, #tpu.memory_space<vmem>>, vector<4x32xf32>
    %c8 = arith.constant 8 : index
    %c0_1 = arith.constant 0 : index
    %1 = vector.load %arg3[%c8, %c0_1] : memref<256x128xf32, #tpu.memory_space<vmem>>, vector<4x32xf32>
    %c16 = arith.constant 16 : index
    %c0_2 = arith.constant 0 : index
    %2 = vector.load %arg3[%c16, %c0_2] : memref<256x128xf32, #tpu.memory_space<vmem>>, vector<32x32xf32>
    %c48 = arith.constant 48 : index
    %c0_3 = arith.constant 0 : index
    %3 = vector.load %arg3[%c48, %c0_3] : memref<256x128xf32, #tpu.memory_space<vmem>>, vector<32x96xf32>
    %c80 = arith.constant 80 : index
    %c0_4 = arith.constant 0 : index
    %4 = vector.load %arg3[%c80, %c0_4] : memref<256x128xf32, #tpu.memory_space<vmem>>, vector<32x32xf32>
    %c112 = arith.constant 112 : index
    %c0_5 = arith.constant 0 : index
    %5 = vector.load %arg3[%c112, %c0_5] : memref<256x128xf32, #tpu.memory_space<vmem>>, vector<32x32xf32>
    %c144 = arith.constant 144 : index
    %c0_6 = arith.constant 0 : index
    %6 = vector.load %arg3[%c144, %c0_6] : memref<256x128xf32, #tpu.memory_space<vmem>>, vector<32x32xf32>
    %c176 = arith.constant 176 : index
    %c0_7 = arith.constant 0 : index
    %7 = vector.load %arg3[%c176, %c0_7] : memref<256x128xf32, #tpu.memory_space<vmem>>, vector<32x128xf32>
    %c208 = arith.constant 208 : index
    %c0_8 = arith.constant 0 : index
    %8 = vector.load %arg3[%c208, %c0_8] : memref<256x128xf32, #tpu.memory_space<vmem>>, vector<32x8xf32>
    %c240 = arith.constant 240 : index
    %c0_9 = arith.constant 0 : index
    %9 = vector.load %arg3[%c240, %c0_9] : memref<256x128xf32, #tpu.memory_space<vmem>>, vector<8x32xf32>
    %c248 = arith.constant 248 : index
    %c0_10 = arith.constant 0 : index
    %10 = vector.load %arg3[%c248, %c0_10] : memref<256x128xf32, #tpu.memory_space<vmem>>, vector<1x32xf32>
    %c249 = arith.constant 249 : index
    %c0_11 = arith.constant 0 : index
    %11 = vector.load %arg3[%c249, %c0_11] : memref<256x128xf32, #tpu.memory_space<vmem>>, vector<1x32xf32>
    %c250 = arith.constant 250 : index
    %c0_12 = arith.constant 0 : index
    %12 = vector.load %arg3[%c250, %c0_12] : memref<256x128xf32, #tpu.memory_space<vmem>>, vector<1x32xf32>
    %c251 = arith.constant 251 : index
    %c0_13 = arith.constant 0 : index
    %13 = vector.load %arg3[%c251, %c0_13] : memref<256x128xf32, #tpu.memory_space<vmem>>, vector<1x96xf32>
    %c252 = arith.constant 252 : index
    %c0_14 = arith.constant 0 : index
    %14 = vector.load %arg3[%c252, %c0_14] : memref<256x128xf32, #tpu.memory_space<vmem>>, vector<1x32xf32>
    %c253 = arith.constant 253 : index
    %c0_15 = arith.constant 0 : index
    %15 = vector.load %arg3[%c253, %c0_15] : memref<256x128xf32, #tpu.memory_space<vmem>>, vector<1x32xf32>
    %c254 = arith.constant 254 : index
    %c0_16 = arith.constant 0 : index
    %16 = vector.load %arg3[%c254, %c0_16] : memref<256x128xf32, #tpu.memory_space<vmem>>, vector<1x32xf32>
    %c255 = arith.constant 255 : index
    %c0_17 = arith.constant 0 : index
    %17 = vector.load %arg3[%c255, %c0_17] : memref<256x128xf32, #tpu.memory_space<vmem>>, vector<1x128xf32>
    %c0_18 = arith.constant 0 : index
    %c0_19 = arith.constant 0 : index
    %18 = vector.load %arg2[%c0_18, %c0_19] : memref<16x16xf32, #tpu.memory_space<vmem>>, vector<16x16xf32>
    %c0_20 = arith.constant 0 : index
    %c0_21 = arith.constant 0 : index
    %19 = vector.load %arg1[%c0_20, %c0_21] : memref<256x4xf32, #tpu.memory_space<vmem>>, vector<256x4xf32>
    %cst = arith.constant dense<0.000000e+00> : vector<256x32xf32>
    %20 = tpu.matmul %19, %0, %cst {dimension_numbers = #tpu.dot_dimension_numbers<[1], [0], [0], [1], [0, 0, 1, 1], [], []>} : vector<256x4xf32>, vector<4x32xf32>, vector<256x32xf32> -> vector<256x32xf32>
    %21 = vector.broadcast %10 : vector<1x32xf32> to vector<256x32xf32>
    %22 = arith.addf %20, %21 : vector<256x32xf32>
    %cst_22 = arith.constant dense<0.000000e+00> : vector<256x32xf32>
    %23 = tpu.matmul %19, %1, %cst_22 {dimension_numbers = #tpu.dot_dimension_numbers<[1], [0], [0], [1], [0, 0, 1, 1], [], []>} : vector<256x4xf32>, vector<4x32xf32>, vector<256x32xf32> -> vector<256x32xf32>
    %24 = vector.broadcast %11 : vector<1x32xf32> to vector<256x32xf32>
    %25 = arith.addf %23, %24 : vector<256x32xf32>
    %26 = math.tanh %25 : vector<256x32xf32>
    %cst_23 = arith.constant dense<0.000000e+00> : vector<256x32xf32>
    %27 = tpu.matmul %26, %2, %cst_23 {dimension_numbers = #tpu.dot_dimension_numbers<[1], [0], [0], [1], [0, 0, 1, 1], [], []>} : vector<256x32xf32>, vector<32x32xf32>, vector<256x32xf32> -> vector<256x32xf32>
    %28 = vector.broadcast %12 : vector<1x32xf32> to vector<256x32xf32>
    %29 = arith.addf %27, %28 : vector<256x32xf32>
    %30 = vector.extract_strided_slice %29 {offsets = [0, 0], sizes = [16, 32], strides = [1, 1]} : vector<256x32xf32> to vector<16x32xf32>
    %cst_24 = arith.constant dense<0xFF800000> : vector<32xf32>
    %31 = vector.multi_reduction <maximumf>, %30, %cst_24 [0] : vector<16x32xf32> to vector<32xf32>
    %32 = vector.shape_cast %31 : vector<32xf32> to vector<1x32xf32>
    %33 = vector.broadcast %32 : vector<1x32xf32> to vector<16x32xf32>
    %34 = arith.subf %30, %33 : vector<16x32xf32>
    %35 = math.exp %34 : vector<16x32xf32>
    %cst_25 = arith.constant dense<0.000000e+00> : vector<32xf32>
    %36 = vector.multi_reduction <add>, %35, %cst_25 [0] : vector<16x32xf32> to vector<32xf32>
    %37 = vector.shape_cast %36 : vector<32xf32> to vector<1x32xf32>
    %38 = tpu.reciprocal %37 {approx = true} : vector<1x32xf32> -> vector<1x32xf32>
    %39 = vector.broadcast %38 : vector<1x32xf32> to vector<16x32xf32>
    %40 = arith.mulf %35, %39 : vector<16x32xf32>
    %41 = vector.extract_strided_slice %22 {offsets = [0, 0], sizes = [16, 32], strides = [1, 1]} : vector<256x32xf32> to vector<16x32xf32>
    %42 = arith.mulf %41, %40 : vector<16x32xf32>
    %c0_26 = arith.constant 0 : index
    %c0_27 = arith.constant 0 : index
    %43 = vector.load %arg5[%c0_26, %c0_27] : memref<256x32xf32, #tpu.memory_space<vmem>>, vector<16x32xf32>
    tpu.vector_store %arg5[%c0_26, %c0_27], %42 {strides = array<i32>} : memref<256x32xf32, #tpu.memory_space<vmem>>, vector<16x32xf32>,
    %44 = vector.extract_strided_slice %29 {offsets = [16, 0], sizes = [16, 32], strides = [1, 1]} : vector<256x32xf32> to vector<16x32xf32>
    %cst_28 = arith.constant dense<0xFF800000> : vector<32xf32>
    %45 = vector.multi_reduction <maximumf>, %44, %cst_28 [0] : vector<16x32xf32> to vector<32xf32>
    %46 = vector.shape_cast %45 : vector<32xf32> to vector<1x32xf32>
    %47 = vector.broadcast %46 : vector<1x32xf32> to vector<16x32xf32>
    %48 = arith.subf %44, %47 : vector<16x32xf32>
    %49 = math.exp %48 : vector<16x32xf32>
    %cst_29 = arith.constant dense<0.000000e+00> : vector<32xf32>
    %50 = vector.multi_reduction <add>, %49, %cst_29 [0] : vector<16x32xf32> to vector<32xf32>
    %51 = vector.shape_cast %50 : vector<32xf32> to vector<1x32xf32>
    %52 = tpu.reciprocal %51 {approx = true} : vector<1x32xf32> -> vector<1x32xf32>
    %53 = vector.broadcast %52 : vector<1x32xf32> to vector<16x32xf32>
    %54 = arith.mulf %49, %53 : vector<16x32xf32>
    %55 = vector.extract_strided_slice %22 {offsets = [16, 0], sizes = [16, 32], strides = [1, 1]} : vector<256x32xf32> to vector<16x32xf32>
    %56 = arith.mulf %55, %54 : vector<16x32xf32>
    %c16_30 = arith.constant 16 : index
    %c0_31 = arith.constant 0 : index
    %57 = vector.load %arg5[%c16_30, %c0_31] : memref<256x32xf32, #tpu.memory_space<vmem>>, vector<16x32xf32>
    tpu.vector_store %arg5[%c16_30, %c0_31], %56 {strides = array<i32>} : memref<256x32xf32, #tpu.memory_space<vmem>>, vector<16x32xf32>,
    %58 = vector.extract_strided_slice %29 {offsets = [32, 0], sizes = [16, 32], strides = [1, 1]} : vector<256x32xf32> to vector<16x32xf32>
    %cst_32 = arith.constant dense<0xFF800000> : vector<32xf32>
    %59 = vector.multi_reduction <maximumf>, %58, %cst_32 [0] : vector<16x32xf32> to vector<32xf32>
    %60 = vector.shape_cast %59 : vector<32xf32> to vector<1x32xf32>
    %61 = vector.broadcast %60 : vector<1x32xf32> to vector<16x32xf32>
    %62 = arith.subf %58, %61 : vector<16x32xf32>
    %63 = math.exp %62 : vector<16x32xf32>
    %cst_33 = arith.constant dense<0.000000e+00> : vector<32xf32>
    %64 = vector.multi_reduction <add>, %63, %cst_33 [0] : vector<16x32xf32> to vector<32xf32>
    %65 = vector.shape_cast %64 : vector<32xf32> to vector<1x32xf32>
    %66 = tpu.reciprocal %65 {approx = true} : vector<1x32xf32> -> vector<1x32xf32>
    %67 = vector.broadcast %66 : vector<1x32xf32> to vector<16x32xf32>
    %68 = arith.mulf %63, %67 : vector<16x32xf32>
    %69 = vector.extract_strided_slice %22 {offsets = [32, 0], sizes = [16, 32], strides = [1, 1]} : vector<256x32xf32> to vector<16x32xf32>
    %70 = arith.mulf %69, %68 : vector<16x32xf32>
    %c32 = arith.constant 32 : index
    %c0_34 = arith.constant 0 : index
    %71 = vector.load %arg5[%c32, %c0_34] : memref<256x32xf32, #tpu.memory_space<vmem>>, vector<16x32xf32>
    tpu.vector_store %arg5[%c32, %c0_34], %70 {strides = array<i32>} : memref<256x32xf32, #tpu.memory_space<vmem>>, vector<16x32xf32>,
    %72 = vector.extract_strided_slice %29 {offsets = [48, 0], sizes = [16, 32], strides = [1, 1]} : vector<256x32xf32> to vector<16x32xf32>
    %cst_35 = arith.constant dense<0xFF800000> : vector<32xf32>
    %73 = vector.multi_reduction <maximumf>, %72, %cst_35 [0] : vector<16x32xf32> to vector<32xf32>
    %74 = vector.shape_cast %73 : vector<32xf32> to vector<1x32xf32>
    %75 = vector.broadcast %74 : vector<1x32xf32> to vector<16x32xf32>
    %76 = arith.subf %72, %75 : vector<16x32xf32>
    %77 = math.exp %76 : vector<16x32xf32>
    %cst_36 = arith.constant dense<0.000000e+00> : vector<32xf32>
    %78 = vector.multi_reduction <add>, %77, %cst_36 [0] : vector<16x32xf32> to vector<32xf32>
    %79 = vector.shape_cast %78 : vector<32xf32> to vector<1x32xf32>
    %80 = tpu.reciprocal %79 {approx = true} : vector<1x32xf32> -> vector<1x32xf32>
    %81 = vector.broadcast %80 : vector<1x32xf32> to vector<16x32xf32>
    %82 = arith.mulf %77, %81 : vector<16x32xf32>
    %83 = vector.extract_strided_slice %22 {offsets = [48, 0], sizes = [16, 32], strides = [1, 1]} : vector<256x32xf32> to vector<16x32xf32>
    %84 = arith.mulf %83, %82 : vector<16x32xf32>
    %c48_37 = arith.constant 48 : index
    %c0_38 = arith.constant 0 : index
    %85 = vector.load %arg5[%c48_37, %c0_38] : memref<256x32xf32, #tpu.memory_space<vmem>>, vector<16x32xf32>
    tpu.vector_store %arg5[%c48_37, %c0_38], %84 {strides = array<i32>} : memref<256x32xf32, #tpu.memory_space<vmem>>, vector<16x32xf32>,
    %86 = vector.extract_strided_slice %29 {offsets = [64, 0], sizes = [16, 32], strides = [1, 1]} : vector<256x32xf32> to vector<16x32xf32>
    %cst_39 = arith.constant dense<0xFF800000> : vector<32xf32>
    %87 = vector.multi_reduction <maximumf>, %86, %cst_39 [0] : vector<16x32xf32> to vector<32xf32>
    %88 = vector.shape_cast %87 : vector<32xf32> to vector<1x32xf32>
    %89 = vector.broadcast %88 : vector<1x32xf32> to vector<16x32xf32>
    %90 = arith.subf %86, %89 : vector<16x32xf32>
    %91 = math.exp %90 : vector<16x32xf32>
    %cst_40 = arith.constant dense<0.000000e+00> : vector<32xf32>
    %92 = vector.multi_reduction <add>, %91, %cst_40 [0] : vector<16x32xf32> to vector<32xf32>
    %93 = vector.shape_cast %92 : vector<32xf32> to vector<1x32xf32>
    %94 = tpu.reciprocal %93 {approx = true} : vector<1x32xf32> -> vector<1x32xf32>
    %95 = vector.broadcast %94 : vector<1x32xf32> to vector<16x32xf32>
    %96 = arith.mulf %91, %95 : vector<16x32xf32>
    %97 = vector.extract_strided_slice %22 {offsets = [64, 0], sizes = [16, 32], strides = [1, 1]} : vector<256x32xf32> to vector<16x32xf32>
    %98 = arith.mulf %97, %96 : vector<16x32xf32>
    %c64 = arith.constant 64 : index
    %c0_41 = arith.constant 0 : index
    %99 = vector.load %arg5[%c64, %c0_41] : memref<256x32xf32, #tpu.memory_space<vmem>>, vector<16x32xf32>
    tpu.vector_store %arg5[%c64, %c0_41], %98 {strides = array<i32>} : memref<256x32xf32, #tpu.memory_space<vmem>>, vector<16x32xf32>,
    %100 = vector.extract_strided_slice %29 {offsets = [80, 0], sizes = [16, 32], strides = [1, 1]} : vector<256x32xf32> to vector<16x32xf32>
    %cst_42 = arith.constant dense<0xFF800000> : vector<32xf32>
    %101 = vector.multi_reduction <maximumf>, %100, %cst_42 [0] : vector<16x32xf32> to vector<32xf32>
    %102 = vector.shape_cast %101 : vector<32xf32> to vector<1x32xf32>
    %103 = vector.broadcast %102 : vector<1x32xf32> to vector<16x32xf32>
    %104 = arith.subf %100, %103 : vector<16x32xf32>
    %105 = math.exp %104 : vector<16x32xf32>
    %cst_43 = arith.constant dense<0.000000e+00> : vector<32xf32>
    %106 = vector.multi_reduction <add>, %105, %cst_43 [0] : vector<16x32xf32> to vector<32xf32>
    %107 = vector.shape_cast %106 : vector<32xf32> to vector<1x32xf32>
    %108 = tpu.reciprocal %107 {approx = true} : vector<1x32xf32> -> vector<1x32xf32>
    %109 = vector.broadcast %108 : vector<1x32xf32> to vector<16x32xf32>
    %110 = arith.mulf %105, %109 : vector<16x32xf32>
    %111 = vector.extract_strided_slice %22 {offsets = [80, 0], sizes = [16, 32], strides = [1, 1]} : vector<256x32xf32> to vector<16x32xf32>
    %112 = arith.mulf %111, %110 : vector<16x32xf32>
    %c80_44 = arith.constant 80 : index
    %c0_45 = arith.constant 0 : index
    %113 = vector.load %arg5[%c80_44, %c0_45] : memref<256x32xf32, #tpu.memory_space<vmem>>, vector<16x32xf32>
    tpu.vector_store %arg5[%c80_44, %c0_45], %112 {strides = array<i32>} : memref<256x32xf32, #tpu.memory_space<vmem>>, vector<16x32xf32>,
    %114 = vector.extract_strided_slice %29 {offsets = [96, 0], sizes = [16, 32], strides = [1, 1]} : vector<256x32xf32> to vector<16x32xf32>
    %cst_46 = arith.constant dense<0xFF800000> : vector<32xf32>
    %115 = vector.multi_reduction <maximumf>, %114, %cst_46 [0] : vector<16x32xf32> to vector<32xf32>
    %116 = vector.shape_cast %115 : vector<32xf32> to vector<1x32xf32>
    %117 = vector.broadcast %116 : vector<1x32xf32> to vector<16x32xf32>
    %118 = arith.subf %114, %117 : vector<16x32xf32>
    %119 = math.exp %118 : vector<16x32xf32>
    %cst_47 = arith.constant dense<0.000000e+00> : vector<32xf32>
    %120 = vector.multi_reduction <add>, %119, %cst_47 [0] : vector<16x32xf32> to vector<32xf32>
    %121 = vector.shape_cast %120 : vector<32xf32> to vector<1x32xf32>
    %122 = tpu.reciprocal %121 {approx = true} : vector<1x32xf32> -> vector<1x32xf32>
    %123 = vector.broadcast %122 : vector<1x32xf32> to vector<16x32xf32>
    %124 = arith.mulf %119, %123 : vector<16x32xf32>
    %125 = vector.extract_strided_slice %22 {offsets = [96, 0], sizes = [16, 32], strides = [1, 1]} : vector<256x32xf32> to vector<16x32xf32>
    %126 = arith.mulf %125, %124 : vector<16x32xf32>
    %c96 = arith.constant 96 : index
    %c0_48 = arith.constant 0 : index
    %127 = vector.load %arg5[%c96, %c0_48] : memref<256x32xf32, #tpu.memory_space<vmem>>, vector<16x32xf32>
    tpu.vector_store %arg5[%c96, %c0_48], %126 {strides = array<i32>} : memref<256x32xf32, #tpu.memory_space<vmem>>, vector<16x32xf32>,
    %128 = vector.extract_strided_slice %29 {offsets = [112, 0], sizes = [16, 32], strides = [1, 1]} : vector<256x32xf32> to vector<16x32xf32>
    %cst_49 = arith.constant dense<0xFF800000> : vector<32xf32>
    %129 = vector.multi_reduction <maximumf>, %128, %cst_49 [0] : vector<16x32xf32> to vector<32xf32>
    %130 = vector.shape_cast %129 : vector<32xf32> to vector<1x32xf32>
    %131 = vector.broadcast %130 : vector<1x32xf32> to vector<16x32xf32>
    %132 = arith.subf %128, %131 : vector<16x32xf32>
    %133 = math.exp %132 : vector<16x32xf32>
    %cst_50 = arith.constant dense<0.000000e+00> : vector<32xf32>
    %134 = vector.multi_reduction <add>, %133, %cst_50 [0] : vector<16x32xf32> to vector<32xf32>
    %135 = vector.shape_cast %134 : vector<32xf32> to vector<1x32xf32>
    %136 = tpu.reciprocal %135 {approx = true} : vector<1x32xf32> -> vector<1x32xf32>
    %137 = vector.broadcast %136 : vector<1x32xf32> to vector<16x32xf32>
    %138 = arith.mulf %133, %137 : vector<16x32xf32>
    %139 = vector.extract_strided_slice %22 {offsets = [112, 0], sizes = [16, 32], strides = [1, 1]} : vector<256x32xf32> to vector<16x32xf32>
    %140 = arith.mulf %139, %138 : vector<16x32xf32>
    %c112_51 = arith.constant 112 : index
    %c0_52 = arith.constant 0 : index
    %141 = vector.load %arg5[%c112_51, %c0_52] : memref<256x32xf32, #tpu.memory_space<vmem>>, vector<16x32xf32>
    tpu.vector_store %arg5[%c112_51, %c0_52], %140 {strides = array<i32>} : memref<256x32xf32, #tpu.memory_space<vmem>>, vector<16x32xf32>,
    %142 = vector.extract_strided_slice %29 {offsets = [128, 0], sizes = [16, 32], strides = [1, 1]} : vector<256x32xf32> to vector<16x32xf32>
    %cst_53 = arith.constant dense<0xFF800000> : vector<32xf32>
    %143 = vector.multi_reduction <maximumf>, %142, %cst_53 [0] : vector<16x32xf32> to vector<32xf32>
    %144 = vector.shape_cast %143 : vector<32xf32> to vector<1x32xf32>
    %145 = vector.broadcast %144 : vector<1x32xf32> to vector<16x32xf32>
    %146 = arith.subf %142, %145 : vector<16x32xf32>
    %147 = math.exp %146 : vector<16x32xf32>
    %cst_54 = arith.constant dense<0.000000e+00> : vector<32xf32>
    %148 = vector.multi_reduction <add>, %147, %cst_54 [0] : vector<16x32xf32> to vector<32xf32>
    %149 = vector.shape_cast %148 : vector<32xf32> to vector<1x32xf32>
    %150 = tpu.reciprocal %149 {approx = true} : vector<1x32xf32> -> vector<1x32xf32>
    %151 = vector.broadcast %150 : vector<1x32xf32> to vector<16x32xf32>
    %152 = arith.mulf %147, %151 : vector<16x32xf32>
    %153 = vector.extract_strided_slice %22 {offsets = [128, 0], sizes = [16, 32], strides = [1, 1]} : vector<256x32xf32> to vector<16x32xf32>
    %154 = arith.mulf %153, %152 : vector<16x32xf32>
    %c128 = arith.constant 128 : index
    %c0_55 = arith.constant 0 : index
    %155 = vector.load %arg5[%c128, %c0_55] : memref<256x32xf32, #tpu.memory_space<vmem>>, vector<16x32xf32>
    tpu.vector_store %arg5[%c128, %c0_55], %154 {strides = array<i32>} : memref<256x32xf32, #tpu.memory_space<vmem>>, vector<16x32xf32>,
    %156 = vector.extract_strided_slice %29 {offsets = [144, 0], sizes = [16, 32], strides = [1, 1]} : vector<256x32xf32> to vector<16x32xf32>
    %cst_56 = arith.constant dense<0xFF800000> : vector<32xf32>
    %157 = vector.multi_reduction <maximumf>, %156, %cst_56 [0] : vector<16x32xf32> to vector<32xf32>
    %158 = vector.shape_cast %157 : vector<32xf32> to vector<1x32xf32>
    %159 = vector.broadcast %158 : vector<1x32xf32> to vector<16x32xf32>
    %160 = arith.subf %156, %159 : vector<16x32xf32>
    %161 = math.exp %160 : vector<16x32xf32>
    %cst_57 = arith.constant dense<0.000000e+00> : vector<32xf32>
    %162 = vector.multi_reduction <add>, %161, %cst_57 [0] : vector<16x32xf32> to vector<32xf32>
    %163 = vector.shape_cast %162 : vector<32xf32> to vector<1x32xf32>
    %164 = tpu.reciprocal %163 {approx = true} : vector<1x32xf32> -> vector<1x32xf32>
    %165 = vector.broadcast %164 : vector<1x32xf32> to vector<16x32xf32>
    %166 = arith.mulf %161, %165 : vector<16x32xf32>
    %167 = vector.extract_strided_slice %22 {offsets = [144, 0], sizes = [16, 32], strides = [1, 1]} : vector<256x32xf32> to vector<16x32xf32>
    %168 = arith.mulf %167, %166 : vector<16x32xf32>
    %c144_58 = arith.constant 144 : index
    %c0_59 = arith.constant 0 : index
    %169 = vector.load %arg5[%c144_58, %c0_59] : memref<256x32xf32, #tpu.memory_space<vmem>>, vector<16x32xf32>
    tpu.vector_store %arg5[%c144_58, %c0_59], %168 {strides = array<i32>} : memref<256x32xf32, #tpu.memory_space<vmem>>, vector<16x32xf32>,
    %170 = vector.extract_strided_slice %29 {offsets = [160, 0], sizes = [16, 32], strides = [1, 1]} : vector<256x32xf32> to vector<16x32xf32>
    %cst_60 = arith.constant dense<0xFF800000> : vector<32xf32>
    %171 = vector.multi_reduction <maximumf>, %170, %cst_60 [0] : vector<16x32xf32> to vector<32xf32>
    %172 = vector.shape_cast %171 : vector<32xf32> to vector<1x32xf32>
    %173 = vector.broadcast %172 : vector<1x32xf32> to vector<16x32xf32>
    %174 = arith.subf %170, %173 : vector<16x32xf32>
    %175 = math.exp %174 : vector<16x32xf32>
    %cst_61 = arith.constant dense<0.000000e+00> : vector<32xf32>
    %176 = vector.multi_reduction <add>, %175, %cst_61 [0] : vector<16x32xf32> to vector<32xf32>
    %177 = vector.shape_cast %176 : vector<32xf32> to vector<1x32xf32>
    %178 = tpu.reciprocal %177 {approx = true} : vector<1x32xf32> -> vector<1x32xf32>
    %179 = vector.broadcast %178 : vector<1x32xf32> to vector<16x32xf32>
    %180 = arith.mulf %175, %179 : vector<16x32xf32>
    %181 = vector.extract_strided_slice %22 {offsets = [160, 0], sizes = [16, 32], strides = [1, 1]} : vector<256x32xf32> to vector<16x32xf32>
    %182 = arith.mulf %181, %180 : vector<16x32xf32>
    %c160 = arith.constant 160 : index
    %c0_62 = arith.constant 0 : index
    %183 = vector.load %arg5[%c160, %c0_62] : memref<256x32xf32, #tpu.memory_space<vmem>>, vector<16x32xf32>
    tpu.vector_store %arg5[%c160, %c0_62], %182 {strides = array<i32>} : memref<256x32xf32, #tpu.memory_space<vmem>>, vector<16x32xf32>,
    %184 = vector.extract_strided_slice %29 {offsets = [176, 0], sizes = [16, 32], strides = [1, 1]} : vector<256x32xf32> to vector<16x32xf32>
    %cst_63 = arith.constant dense<0xFF800000> : vector<32xf32>
    %185 = vector.multi_reduction <maximumf>, %184, %cst_63 [0] : vector<16x32xf32> to vector<32xf32>
    %186 = vector.shape_cast %185 : vector<32xf32> to vector<1x32xf32>
    %187 = vector.broadcast %186 : vector<1x32xf32> to vector<16x32xf32>
    %188 = arith.subf %184, %187 : vector<16x32xf32>
    %189 = math.exp %188 : vector<16x32xf32>
    %cst_64 = arith.constant dense<0.000000e+00> : vector<32xf32>
    %190 = vector.multi_reduction <add>, %189, %cst_64 [0] : vector<16x32xf32> to vector<32xf32>
    %191 = vector.shape_cast %190 : vector<32xf32> to vector<1x32xf32>
    %192 = tpu.reciprocal %191 {approx = true} : vector<1x32xf32> -> vector<1x32xf32>
    %193 = vector.broadcast %192 : vector<1x32xf32> to vector<16x32xf32>
    %194 = arith.mulf %189, %193 : vector<16x32xf32>
    %195 = vector.extract_strided_slice %22 {offsets = [176, 0], sizes = [16, 32], strides = [1, 1]} : vector<256x32xf32> to vector<16x32xf32>
    %196 = arith.mulf %195, %194 : vector<16x32xf32>
    %c176_65 = arith.constant 176 : index
    %c0_66 = arith.constant 0 : index
    %197 = vector.load %arg5[%c176_65, %c0_66] : memref<256x32xf32, #tpu.memory_space<vmem>>, vector<16x32xf32>
    tpu.vector_store %arg5[%c176_65, %c0_66], %196 {strides = array<i32>} : memref<256x32xf32, #tpu.memory_space<vmem>>, vector<16x32xf32>,
    %198 = vector.extract_strided_slice %29 {offsets = [192, 0], sizes = [16, 32], strides = [1, 1]} : vector<256x32xf32> to vector<16x32xf32>
    %cst_67 = arith.constant dense<0xFF800000> : vector<32xf32>
    %199 = vector.multi_reduction <maximumf>, %198, %cst_67 [0] : vector<16x32xf32> to vector<32xf32>
    %200 = vector.shape_cast %199 : vector<32xf32> to vector<1x32xf32>
    %201 = vector.broadcast %200 : vector<1x32xf32> to vector<16x32xf32>
    %202 = arith.subf %198, %201 : vector<16x32xf32>
    %203 = math.exp %202 : vector<16x32xf32>
    %cst_68 = arith.constant dense<0.000000e+00> : vector<32xf32>
    %204 = vector.multi_reduction <add>, %203, %cst_68 [0] : vector<16x32xf32> to vector<32xf32>
    %205 = vector.shape_cast %204 : vector<32xf32> to vector<1x32xf32>
    %206 = tpu.reciprocal %205 {approx = true} : vector<1x32xf32> -> vector<1x32xf32>
    %207 = vector.broadcast %206 : vector<1x32xf32> to vector<16x32xf32>
    %208 = arith.mulf %203, %207 : vector<16x32xf32>
    %209 = vector.extract_strided_slice %22 {offsets = [192, 0], sizes = [16, 32], strides = [1, 1]} : vector<256x32xf32> to vector<16x32xf32>
    %210 = arith.mulf %209, %208 : vector<16x32xf32>
    %c192 = arith.constant 192 : index
    %c0_69 = arith.constant 0 : index
    %211 = vector.load %arg5[%c192, %c0_69] : memref<256x32xf32, #tpu.memory_space<vmem>>, vector<16x32xf32>
    tpu.vector_store %arg5[%c192, %c0_69], %210 {strides = array<i32>} : memref<256x32xf32, #tpu.memory_space<vmem>>, vector<16x32xf32>,
    %212 = vector.extract_strided_slice %29 {offsets = [208, 0], sizes = [16, 32], strides = [1, 1]} : vector<256x32xf32> to vector<16x32xf32>
    %cst_70 = arith.constant dense<0xFF800000> : vector<32xf32>
    %213 = vector.multi_reduction <maximumf>, %212, %cst_70 [0] : vector<16x32xf32> to vector<32xf32>
    %214 = vector.shape_cast %213 : vector<32xf32> to vector<1x32xf32>
    %215 = vector.broadcast %214 : vector<1x32xf32> to vector<16x32xf32>
    %216 = arith.subf %212, %215 : vector<16x32xf32>
    %217 = math.exp %216 : vector<16x32xf32>
    %cst_71 = arith.constant dense<0.000000e+00> : vector<32xf32>
    %218 = vector.multi_reduction <add>, %217, %cst_71 [0] : vector<16x32xf32> to vector<32xf32>
    %219 = vector.shape_cast %218 : vector<32xf32> to vector<1x32xf32>
    %220 = tpu.reciprocal %219 {approx = true} : vector<1x32xf32> -> vector<1x32xf32>
    %221 = vector.broadcast %220 : vector<1x32xf32> to vector<16x32xf32>
    %222 = arith.mulf %217, %221 : vector<16x32xf32>
    %223 = vector.extract_strided_slice %22 {offsets = [208, 0], sizes = [16, 32], strides = [1, 1]} : vector<256x32xf32> to vector<16x32xf32>
    %224 = arith.mulf %223, %222 : vector<16x32xf32>
    %c208_72 = arith.constant 208 : index
    %c0_73 = arith.constant 0 : index
    %225 = vector.load %arg5[%c208_72, %c0_73] : memref<256x32xf32, #tpu.memory_space<vmem>>, vector<16x32xf32>
    tpu.vector_store %arg5[%c208_72, %c0_73], %224 {strides = array<i32>} : memref<256x32xf32, #tpu.memory_space<vmem>>, vector<16x32xf32>,
    %226 = vector.extract_strided_slice %29 {offsets = [224, 0], sizes = [16, 32], strides = [1, 1]} : vector<256x32xf32> to vector<16x32xf32>
    %cst_74 = arith.constant dense<0xFF800000> : vector<32xf32>
    %227 = vector.multi_reduction <maximumf>, %226, %cst_74 [0] : vector<16x32xf32> to vector<32xf32>
    %228 = vector.shape_cast %227 : vector<32xf32> to vector<1x32xf32>
    %229 = vector.broadcast %228 : vector<1x32xf32> to vector<16x32xf32>
    %230 = arith.subf %226, %229 : vector<16x32xf32>
    %231 = math.exp %230 : vector<16x32xf32>
    %cst_75 = arith.constant dense<0.000000e+00> : vector<32xf32>
    %232 = vector.multi_reduction <add>, %231, %cst_75 [0] : vector<16x32xf32> to vector<32xf32>
    %233 = vector.shape_cast %232 : vector<32xf32> to vector<1x32xf32>
    %234 = tpu.reciprocal %233 {approx = true} : vector<1x32xf32> -> vector<1x32xf32>
    %235 = vector.broadcast %234 : vector<1x32xf32> to vector<16x32xf32>
    %236 = arith.mulf %231, %235 : vector<16x32xf32>
    %237 = vector.extract_strided_slice %22 {offsets = [224, 0], sizes = [16, 32], strides = [1, 1]} : vector<256x32xf32> to vector<16x32xf32>
    %238 = arith.mulf %237, %236 : vector<16x32xf32>
    %c224 = arith.constant 224 : index
    %c0_76 = arith.constant 0 : index
    %239 = vector.load %arg5[%c224, %c0_76] : memref<256x32xf32, #tpu.memory_space<vmem>>, vector<16x32xf32>
    tpu.vector_store %arg5[%c224, %c0_76], %238 {strides = array<i32>} : memref<256x32xf32, #tpu.memory_space<vmem>>, vector<16x32xf32>,
    %240 = vector.extract_strided_slice %29 {offsets = [240, 0], sizes = [16, 32], strides = [1, 1]} : vector<256x32xf32> to vector<16x32xf32>
    %cst_77 = arith.constant dense<0xFF800000> : vector<32xf32>
    %241 = vector.multi_reduction <maximumf>, %240, %cst_77 [0] : vector<16x32xf32> to vector<32xf32>
    %242 = vector.shape_cast %241 : vector<32xf32> to vector<1x32xf32>
    %243 = vector.broadcast %242 : vector<1x32xf32> to vector<16x32xf32>
    %244 = arith.subf %240, %243 : vector<16x32xf32>
    %245 = math.exp %244 : vector<16x32xf32>
    %cst_78 = arith.constant dense<0.000000e+00> : vector<32xf32>
    %246 = vector.multi_reduction <add>, %245, %cst_78 [0] : vector<16x32xf32> to vector<32xf32>
    %247 = vector.shape_cast %246 : vector<32xf32> to vector<1x32xf32>
    %248 = tpu.reciprocal %247 {approx = true} : vector<1x32xf32> -> vector<1x32xf32>
    %249 = vector.broadcast %248 : vector<1x32xf32> to vector<16x32xf32>
    %250 = arith.mulf %245, %249 : vector<16x32xf32>
    %251 = vector.extract_strided_slice %22 {offsets = [240, 0], sizes = [16, 32], strides = [1, 1]} : vector<256x32xf32> to vector<16x32xf32>
    %252 = arith.mulf %251, %250 : vector<16x32xf32>
    %c240_79 = arith.constant 240 : index
    %c0_80 = arith.constant 0 : index
    %253 = vector.load %arg5[%c240_79, %c0_80] : memref<256x32xf32, #tpu.memory_space<vmem>>, vector<16x32xf32>
    tpu.vector_store %arg5[%c240_79, %c0_80], %252 {strides = array<i32>} : memref<256x32xf32, #tpu.memory_space<vmem>>, vector<16x32xf32>,
    %c0_81 = arith.constant 0 : index
    %c0_82 = arith.constant 0 : index
    %254 = vector.load %arg5[%c0_81, %c0_82] : memref<256x32xf32, #tpu.memory_space<vmem>>, vector<256x32xf32>
    %cst_83 = arith.constant dense<0.000000e+00> : vector<256x96xf32>
    %255 = tpu.matmul %254, %3, %cst_83 {dimension_numbers = #tpu.dot_dimension_numbers<[1], [0], [0], [1], [0, 0, 1, 1], [], []>} : vector<256x32xf32>, vector<32x96xf32>, vector<256x96xf32> -> vector<256x96xf32>
    %256 = vector.broadcast %13 : vector<1x96xf32> to vector<256x96xf32>
    %257 = arith.addf %255, %256 : vector<256x96xf32>
    %258 = vector.extract_strided_slice %257 {offsets = [0, 0], sizes = [256, 32], strides = [1, 1]} : vector<256x96xf32> to vector<256x32xf32>
    %259 = vector.extract_strided_slice %257 {offsets = [0, 32], sizes = [256, 32], strides = [1, 1]} : vector<256x96xf32> to vector<256x32xf32>
    %260 = vector.extract_strided_slice %257 {offsets = [0, 64], sizes = [256, 32], strides = [1, 1]} : vector<256x96xf32> to vector<256x32xf32>
    %261 = vector.extract_strided_slice %258 {offsets = [112, 0], sizes = [16, 32], strides = [1, 1]} : vector<256x32xf32> to vector<16x32xf32>
    %262 = vector.extract_strided_slice %259 {offsets = [0, 0], sizes = [128, 32], strides = [1, 1]} : vector<256x32xf32> to vector<128x32xf32>
    %263 = vector.extract_strided_slice %260 {offsets = [0, 0], sizes = [128, 32], strides = [1, 1]} : vector<256x32xf32> to vector<128x32xf32>
    %264 = vector.shape_cast %261 : vector<16x32xf32> to vector<1x16x32xf32>
    %265 = vector.shape_cast %264 : vector<1x16x32xf32> to vector<1x16x32xf32>
    %266 = vector.broadcast %265 : vector<1x16x32xf32> to vector<8x16x32xf32>
    %267 = vector.shape_cast %266 : vector<8x16x32xf32> to vector<128x32xf32>
    %268 = arith.mulf %262, %267 : vector<128x32xf32>
    %cst_84 = arith.constant dense<0.000000e+00> : vector<128x8xf32>
    %269 = tpu.matmul %268, %8, %cst_84 {dimension_numbers = #tpu.dot_dimension_numbers<[1], [0], [0], [1], [0, 0, 1, 1], [], []>} : vector<128x32xf32>, vector<32x8xf32>, vector<128x8xf32> -> vector<128x8xf32>
    %270 = vector.extract_strided_slice %269 {offsets = [0, 0], sizes = [16, 8], strides = [1, 1]} : vector<128x8xf32> to vector<16x8xf32>
    %271 = vector.extract_strided_slice %269 {offsets = [16, 0], sizes = [16, 8], strides = [1, 1]} : vector<128x8xf32> to vector<16x8xf32>
    %272 = arith.maximumf %270, %271 : vector<16x8xf32>
    %273 = vector.extract_strided_slice %269 {offsets = [32, 0], sizes = [16, 8], strides = [1, 1]} : vector<128x8xf32> to vector<16x8xf32>
    %274 = arith.maximumf %272, %273 : vector<16x8xf32>
    %275 = vector.extract_strided_slice %269 {offsets = [48, 0], sizes = [16, 8], strides = [1, 1]} : vector<128x8xf32> to vector<16x8xf32>
    %276 = arith.maximumf %274, %275 : vector<16x8xf32>
    %277 = vector.extract_strided_slice %269 {offsets = [64, 0], sizes = [16, 8], strides = [1, 1]} : vector<128x8xf32> to vector<16x8xf32>
    %278 = arith.maximumf %276, %277 : vector<16x8xf32>
    %279 = vector.extract_strided_slice %269 {offsets = [80, 0], sizes = [16, 8], strides = [1, 1]} : vector<128x8xf32> to vector<16x8xf32>
    %280 = arith.maximumf %278, %279 : vector<16x8xf32>
    %281 = vector.extract_strided_slice %269 {offsets = [96, 0], sizes = [16, 8], strides = [1, 1]} : vector<128x8xf32> to vector<16x8xf32>
    %282 = arith.maximumf %280, %281 : vector<16x8xf32>
    %283 = vector.extract_strided_slice %269 {offsets = [112, 0], sizes = [16, 8], strides = [1, 1]} : vector<128x8xf32> to vector<16x8xf32>
    %284 = arith.maximumf %282, %283 : vector<16x8xf32>
    %cst_85 = arith.constant 0.000000e+00 : f32
    %285 = vector.broadcast %cst_85 : f32 to vector<16x8xf32>
    %cst_86 = arith.constant 0.000000e+00 : f32
    %286 = vector.broadcast %cst_86 : f32 to vector<16x32xf32>
    %287 = vector.extract_strided_slice %269 {offsets = [0, 0], sizes = [16, 8], strides = [1, 1]} : vector<128x8xf32> to vector<16x8xf32>
    %288 = arith.subf %287, %284 : vector<16x8xf32>
    %289 = math.exp %288 : vector<16x8xf32>
    %290 = arith.addf %285, %289 : vector<16x8xf32>
    %cst_87 = arith.constant dense<0.000000e+00> : vector<16x32xf32>
    %291 = tpu.matmul %289, %9, %cst_87 {dimension_numbers = #tpu.dot_dimension_numbers<[1], [0], [0], [1], [0, 0, 1, 1], [], []>} : vector<16x8xf32>, vector<8x32xf32>, vector<16x32xf32> -> vector<16x32xf32>
    %292 = vector.extract_strided_slice %263 {offsets = [0, 0], sizes = [16, 32], strides = [1, 1]} : vector<128x32xf32> to vector<16x32xf32>
    %293 = arith.mulf %291, %292 : vector<16x32xf32>
    %294 = arith.addf %286, %293 : vector<16x32xf32>
    %295 = vector.extract_strided_slice %269 {offsets = [16, 0], sizes = [16, 8], strides = [1, 1]} : vector<128x8xf32> to vector<16x8xf32>
    %296 = arith.subf %295, %284 : vector<16x8xf32>
    %297 = math.exp %296 : vector<16x8xf32>
    %298 = arith.addf %290, %297 : vector<16x8xf32>
    %cst_88 = arith.constant dense<0.000000e+00> : vector<16x32xf32>
    %299 = tpu.matmul %297, %9, %cst_88 {dimension_numbers = #tpu.dot_dimension_numbers<[1], [0], [0], [1], [0, 0, 1, 1], [], []>} : vector<16x8xf32>, vector<8x32xf32>, vector<16x32xf32> -> vector<16x32xf32>
    %300 = vector.extract_strided_slice %263 {offsets = [16, 0], sizes = [16, 32], strides = [1, 1]} : vector<128x32xf32> to vector<16x32xf32>
    %301 = arith.mulf %299, %300 : vector<16x32xf32>
    %302 = arith.addf %294, %301 : vector<16x32xf32>
    %303 = vector.extract_strided_slice %269 {offsets = [32, 0], sizes = [16, 8], strides = [1, 1]} : vector<128x8xf32> to vector<16x8xf32>
    %304 = arith.subf %303, %284 : vector<16x8xf32>
    %305 = math.exp %304 : vector<16x8xf32>
    %306 = arith.addf %298, %305 : vector<16x8xf32>
    %cst_89 = arith.constant dense<0.000000e+00> : vector<16x32xf32>
    %307 = tpu.matmul %305, %9, %cst_89 {dimension_numbers = #tpu.dot_dimension_numbers<[1], [0], [0], [1], [0, 0, 1, 1], [], []>} : vector<16x8xf32>, vector<8x32xf32>, vector<16x32xf32> -> vector<16x32xf32>
    %308 = vector.extract_strided_slice %263 {offsets = [32, 0], sizes = [16, 32], strides = [1, 1]} : vector<128x32xf32> to vector<16x32xf32>
    %309 = arith.mulf %307, %308 : vector<16x32xf32>
    %310 = arith.addf %302, %309 : vector<16x32xf32>
    %311 = vector.extract_strided_slice %269 {offsets = [48, 0], sizes = [16, 8], strides = [1, 1]} : vector<128x8xf32> to vector<16x8xf32>
    %312 = arith.subf %311, %284 : vector<16x8xf32>
    %313 = math.exp %312 : vector<16x8xf32>
    %314 = arith.addf %306, %313 : vector<16x8xf32>
    %cst_90 = arith.constant dense<0.000000e+00> : vector<16x32xf32>
    %315 = tpu.matmul %313, %9, %cst_90 {dimension_numbers = #tpu.dot_dimension_numbers<[1], [0], [0], [1], [0, 0, 1, 1], [], []>} : vector<16x8xf32>, vector<8x32xf32>, vector<16x32xf32> -> vector<16x32xf32>
    %316 = vector.extract_strided_slice %263 {offsets = [48, 0], sizes = [16, 32], strides = [1, 1]} : vector<128x32xf32> to vector<16x32xf32>
    %317 = arith.mulf %315, %316 : vector<16x32xf32>
    %318 = arith.addf %310, %317 : vector<16x32xf32>
    %319 = vector.extract_strided_slice %269 {offsets = [64, 0], sizes = [16, 8], strides = [1, 1]} : vector<128x8xf32> to vector<16x8xf32>
    %320 = arith.subf %319, %284 : vector<16x8xf32>
    %321 = math.exp %320 : vector<16x8xf32>
    %322 = arith.addf %314, %321 : vector<16x8xf32>
    %cst_91 = arith.constant dense<0.000000e+00> : vector<16x32xf32>
    %323 = tpu.matmul %321, %9, %cst_91 {dimension_numbers = #tpu.dot_dimension_numbers<[1], [0], [0], [1], [0, 0, 1, 1], [], []>} : vector<16x8xf32>, vector<8x32xf32>, vector<16x32xf32> -> vector<16x32xf32>
    %324 = vector.extract_strided_slice %263 {offsets = [64, 0], sizes = [16, 32], strides = [1, 1]} : vector<128x32xf32> to vector<16x32xf32>
    %325 = arith.mulf %323, %324 : vector<16x32xf32>
    %326 = arith.addf %318, %325 : vector<16x32xf32>
    %327 = vector.extract_strided_slice %269 {offsets = [80, 0], sizes = [16, 8], strides = [1, 1]} : vector<128x8xf32> to vector<16x8xf32>
    %328 = arith.subf %327, %284 : vector<16x8xf32>
    %329 = math.exp %328 : vector<16x8xf32>
    %330 = arith.addf %322, %329 : vector<16x8xf32>
    %cst_92 = arith.constant dense<0.000000e+00> : vector<16x32xf32>
    %331 = tpu.matmul %329, %9, %cst_92 {dimension_numbers = #tpu.dot_dimension_numbers<[1], [0], [0], [1], [0, 0, 1, 1], [], []>} : vector<16x8xf32>, vector<8x32xf32>, vector<16x32xf32> -> vector<16x32xf32>
    %332 = vector.extract_strided_slice %263 {offsets = [80, 0], sizes = [16, 32], strides = [1, 1]} : vector<128x32xf32> to vector<16x32xf32>
    %333 = arith.mulf %331, %332 : vector<16x32xf32>
    %334 = arith.addf %326, %333 : vector<16x32xf32>
    %335 = vector.extract_strided_slice %269 {offsets = [96, 0], sizes = [16, 8], strides = [1, 1]} : vector<128x8xf32> to vector<16x8xf32>
    %336 = arith.subf %335, %284 : vector<16x8xf32>
    %337 = math.exp %336 : vector<16x8xf32>
    %338 = arith.addf %330, %337 : vector<16x8xf32>
    %cst_93 = arith.constant dense<0.000000e+00> : vector<16x32xf32>
    %339 = tpu.matmul %337, %9, %cst_93 {dimension_numbers = #tpu.dot_dimension_numbers<[1], [0], [0], [1], [0, 0, 1, 1], [], []>} : vector<16x8xf32>, vector<8x32xf32>, vector<16x32xf32> -> vector<16x32xf32>
    %340 = vector.extract_strided_slice %263 {offsets = [96, 0], sizes = [16, 32], strides = [1, 1]} : vector<128x32xf32> to vector<16x32xf32>
    %341 = arith.mulf %339, %340 : vector<16x32xf32>
    %342 = arith.addf %334, %341 : vector<16x32xf32>
    %343 = vector.extract_strided_slice %269 {offsets = [112, 0], sizes = [16, 8], strides = [1, 1]} : vector<128x8xf32> to vector<16x8xf32>
    %344 = arith.subf %343, %284 : vector<16x8xf32>
    %345 = math.exp %344 : vector<16x8xf32>
    %346 = arith.addf %338, %345 : vector<16x8xf32>
    %cst_94 = arith.constant dense<0.000000e+00> : vector<16x32xf32>
    %347 = tpu.matmul %345, %9, %cst_94 {dimension_numbers = #tpu.dot_dimension_numbers<[1], [0], [0], [1], [0, 0, 1, 1], [], []>} : vector<16x8xf32>, vector<8x32xf32>, vector<16x32xf32> -> vector<16x32xf32>
    %348 = vector.extract_strided_slice %263 {offsets = [112, 0], sizes = [16, 32], strides = [1, 1]} : vector<128x32xf32> to vector<16x32xf32>
    %349 = arith.mulf %347, %348 : vector<16x32xf32>
    %350 = arith.addf %342, %349 : vector<16x32xf32>
    %351 = tpu.reciprocal %346 {approx = true} : vector<16x8xf32> -> vector<16x8xf32>
    %cst_95 = arith.constant dense<0.000000e+00> : vector<16x32xf32>
    %352 = tpu.matmul %351, %9, %cst_95 {dimension_numbers = #tpu.dot_dimension_numbers<[1], [0], [0], [1], [0, 0, 1, 1], [], []>} : vector<16x8xf32>, vector<8x32xf32>, vector<16x32xf32> -> vector<16x32xf32>
    %353 = arith.mulf %350, %352 : vector<16x32xf32>
    %cst_96 = arith.constant dense<0.000000e+00> : vector<16x32xf32>
    %354 = tpu.matmul %353, %4, %cst_96 {dimension_numbers = #tpu.dot_dimension_numbers<[1], [0], [0], [1], [0, 0, 1, 1], [], []>} : vector<16x32xf32>, vector<32x32xf32>, vector<16x32xf32> -> vector<16x32xf32>
    %355 = vector.broadcast %14 : vector<1x32xf32> to vector<16x32xf32>
    %356 = arith.addf %354, %355 : vector<16x32xf32>
    %cst_97 = arith.constant dense<0.000000e+00> : vector<16x32xf32>
    %357 = tpu.matmul %18, %356, %cst_97 {dimension_numbers = #tpu.dot_dimension_numbers<[1], [0], [0], [1], [0, 0, 1, 1], [], []>} : vector<16x16xf32>, vector<16x32xf32>, vector<16x32xf32> -> vector<16x32xf32>
    %cst_98 = arith.constant dense<0.000000e+00> : vector<16x32xf32>
    %358 = tpu.matmul %357, %5, %cst_98 {dimension_numbers = #tpu.dot_dimension_numbers<[1], [0], [0], [1], [0, 0, 1, 1], [], []>} : vector<16x32xf32>, vector<32x32xf32>, vector<16x32xf32> -> vector<16x32xf32>
    %359 = vector.broadcast %15 : vector<1x32xf32> to vector<16x32xf32>
    %360 = arith.addf %358, %359 : vector<16x32xf32>
    %cst_99 = arith.constant 0.000000e+00 : f32
    %361 = vector.broadcast %cst_99 : f32 to vector<16x32xf32>
    %362 = arith.maximumf %360, %361 : vector<16x32xf32>
    %cst_100 = arith.constant dense<0.000000e+00> : vector<16x32xf32>
    %363 = tpu.matmul %18, %362, %cst_100 {dimension_numbers = #tpu.dot_dimension_numbers<[1], [0], [0], [1], [0, 0, 1, 1], [], []>} : vector<16x16xf32>, vector<16x32xf32>, vector<16x32xf32> -> vector<16x32xf32>
    %cst_101 = arith.constant dense<0.000000e+00> : vector<16x32xf32>
    %364 = tpu.matmul %363, %6, %cst_101 {dimension_numbers = #tpu.dot_dimension_numbers<[1], [0], [0], [1], [0, 0, 1, 1], [], []>} : vector<16x32xf32>, vector<32x32xf32>, vector<16x32xf32> -> vector<16x32xf32>
    %365 = vector.broadcast %16 : vector<1x32xf32> to vector<16x32xf32>
    %366 = arith.addf %364, %365 : vector<16x32xf32>
    %cst_102 = arith.constant 0.000000e+00 : f32
    %367 = vector.broadcast %cst_102 : f32 to vector<16x32xf32>
    %368 = arith.maximumf %366, %367 : vector<16x32xf32>
    %cst_103 = arith.constant dense<0.000000e+00> : vector<16x128xf32>
    %369 = tpu.matmul %368, %7, %cst_103 {dimension_numbers = #tpu.dot_dimension_numbers<[1], [0], [0], [1], [0, 0, 1, 1], [], []>} : vector<16x32xf32>, vector<32x128xf32>, vector<16x128xf32> -> vector<16x128xf32>
    %370 = vector.broadcast %17 : vector<1x128xf32> to vector<16x128xf32>
    %371 = arith.addf %369, %370 : vector<16x128xf32>
    %c0_104 = arith.constant 0 : index
    %c0_105 = arith.constant 0 : index
    %372 = vector.load %arg4[%c0_104, %c0_105] : memref<32x128xf32, #tpu.memory_space<vmem>>, vector<16x128xf32>
    tpu.vector_store %arg4[%c0_104, %c0_105], %371 {strides = array<i32>} : memref<32x128xf32, #tpu.memory_space<vmem>>, vector<16x128xf32>,
    %373 = vector.extract_strided_slice %258 {offsets = [240, 0], sizes = [16, 32], strides = [1, 1]} : vector<256x32xf32> to vector<16x32xf32>
    %374 = vector.extract_strided_slice %259 {offsets = [128, 0], sizes = [128, 32], strides = [1, 1]} : vector<256x32xf32> to vector<128x32xf32>
    %375 = vector.extract_strided_slice %260 {offsets = [128, 0], sizes = [128, 32], strides = [1, 1]} : vector<256x32xf32> to vector<128x32xf32>
    %376 = vector.shape_cast %373 : vector<16x32xf32> to vector<1x16x32xf32>
    %377 = vector.shape_cast %376 : vector<1x16x32xf32> to vector<1x16x32xf32>
    %378 = vector.broadcast %377 : vector<1x16x32xf32> to vector<8x16x32xf32>
    %379 = vector.shape_cast %378 : vector<8x16x32xf32> to vector<128x32xf32>
    %380 = arith.mulf %374, %379 : vector<128x32xf32>
    %cst_106 = arith.constant dense<0.000000e+00> : vector<128x8xf32>
    %381 = tpu.matmul %380, %8, %cst_106 {dimension_numbers = #tpu.dot_dimension_numbers<[1], [0], [0], [1], [0, 0, 1, 1], [], []>} : vector<128x32xf32>, vector<32x8xf32>, vector<128x8xf32> -> vector<128x8xf32>
    %382 = vector.extract_strided_slice %381 {offsets = [0, 0], sizes = [16, 8], strides = [1, 1]} : vector<128x8xf32> to vector<16x8xf32>
    %383 = vector.extract_strided_slice %381 {offsets = [16, 0], sizes = [16, 8], strides = [1, 1]} : vector<128x8xf32> to vector<16x8xf32>
    %384 = arith.maximumf %382, %383 : vector<16x8xf32>
    %385 = vector.extract_strided_slice %381 {offsets = [32, 0], sizes = [16, 8], strides = [1, 1]} : vector<128x8xf32> to vector<16x8xf32>
    %386 = arith.maximumf %384, %385 : vector<16x8xf32>
    %387 = vector.extract_strided_slice %381 {offsets = [48, 0], sizes = [16, 8], strides = [1, 1]} : vector<128x8xf32> to vector<16x8xf32>
    %388 = arith.maximumf %386, %387 : vector<16x8xf32>
    %389 = vector.extract_strided_slice %381 {offsets = [64, 0], sizes = [16, 8], strides = [1, 1]} : vector<128x8xf32> to vector<16x8xf32>
    %390 = arith.maximumf %388, %389 : vector<16x8xf32>
    %391 = vector.extract_strided_slice %381 {offsets = [80, 0], sizes = [16, 8], strides = [1, 1]} : vector<128x8xf32> to vector<16x8xf32>
    %392 = arith.maximumf %390, %391 : vector<16x8xf32>
    %393 = vector.extract_strided_slice %381 {offsets = [96, 0], sizes = [16, 8], strides = [1, 1]} : vector<128x8xf32> to vector<16x8xf32>
    %394 = arith.maximumf %392, %393 : vector<16x8xf32>
    %395 = vector.extract_strided_slice %381 {offsets = [112, 0], sizes = [16, 8], strides = [1, 1]} : vector<128x8xf32> to vector<16x8xf32>
    %396 = arith.maximumf %394, %395 : vector<16x8xf32>
    %cst_107 = arith.constant 0.000000e+00 : f32
    %397 = vector.broadcast %cst_107 : f32 to vector<16x8xf32>
    %cst_108 = arith.constant 0.000000e+00 : f32
    %398 = vector.broadcast %cst_108 : f32 to vector<16x32xf32>
    %399 = vector.extract_strided_slice %381 {offsets = [0, 0], sizes = [16, 8], strides = [1, 1]} : vector<128x8xf32> to vector<16x8xf32>
    %400 = arith.subf %399, %396 : vector<16x8xf32>
    %401 = math.exp %400 : vector<16x8xf32>
    %402 = arith.addf %397, %401 : vector<16x8xf32>
    %cst_109 = arith.constant dense<0.000000e+00> : vector<16x32xf32>
    %403 = tpu.matmul %401, %9, %cst_109 {dimension_numbers = #tpu.dot_dimension_numbers<[1], [0], [0], [1], [0, 0, 1, 1], [], []>} : vector<16x8xf32>, vector<8x32xf32>, vector<16x32xf32> -> vector<16x32xf32>
    %404 = vector.extract_strided_slice %375 {offsets = [0, 0], sizes = [16, 32], strides = [1, 1]} : vector<128x32xf32> to vector<16x32xf32>
    %405 = arith.mulf %403, %404 : vector<16x32xf32>
    %406 = arith.addf %398, %405 : vector<16x32xf32>
    %407 = vector.extract_strided_slice %381 {offsets = [16, 0], sizes = [16, 8], strides = [1, 1]} : vector<128x8xf32> to vector<16x8xf32>
    %408 = arith.subf %407, %396 : vector<16x8xf32>
    %409 = math.exp %408 : vector<16x8xf32>
    %410 = arith.addf %402, %409 : vector<16x8xf32>
    %cst_110 = arith.constant dense<0.000000e+00> : vector<16x32xf32>
    %411 = tpu.matmul %409, %9, %cst_110 {dimension_numbers = #tpu.dot_dimension_numbers<[1], [0], [0], [1], [0, 0, 1, 1], [], []>} : vector<16x8xf32>, vector<8x32xf32>, vector<16x32xf32> -> vector<16x32xf32>
    %412 = vector.extract_strided_slice %375 {offsets = [16, 0], sizes = [16, 32], strides = [1, 1]} : vector<128x32xf32> to vector<16x32xf32>
    %413 = arith.mulf %411, %412 : vector<16x32xf32>
    %414 = arith.addf %406, %413 : vector<16x32xf32>
    %415 = vector.extract_strided_slice %381 {offsets = [32, 0], sizes = [16, 8], strides = [1, 1]} : vector<128x8xf32> to vector<16x8xf32>
    %416 = arith.subf %415, %396 : vector<16x8xf32>
    %417 = math.exp %416 : vector<16x8xf32>
    %418 = arith.addf %410, %417 : vector<16x8xf32>
    %cst_111 = arith.constant dense<0.000000e+00> : vector<16x32xf32>
    %419 = tpu.matmul %417, %9, %cst_111 {dimension_numbers = #tpu.dot_dimension_numbers<[1], [0], [0], [1], [0, 0, 1, 1], [], []>} : vector<16x8xf32>, vector<8x32xf32>, vector<16x32xf32> -> vector<16x32xf32>
    %420 = vector.extract_strided_slice %375 {offsets = [32, 0], sizes = [16, 32], strides = [1, 1]} : vector<128x32xf32> to vector<16x32xf32>
    %421 = arith.mulf %419, %420 : vector<16x32xf32>
    %422 = arith.addf %414, %421 : vector<16x32xf32>
    %423 = vector.extract_strided_slice %381 {offsets = [48, 0], sizes = [16, 8], strides = [1, 1]} : vector<128x8xf32> to vector<16x8xf32>
    %424 = arith.subf %423, %396 : vector<16x8xf32>
    %425 = math.exp %424 : vector<16x8xf32>
    %426 = arith.addf %418, %425 : vector<16x8xf32>
    %cst_112 = arith.constant dense<0.000000e+00> : vector<16x32xf32>
    %427 = tpu.matmul %425, %9, %cst_112 {dimension_numbers = #tpu.dot_dimension_numbers<[1], [0], [0], [1], [0, 0, 1, 1], [], []>} : vector<16x8xf32>, vector<8x32xf32>, vector<16x32xf32> -> vector<16x32xf32>
    %428 = vector.extract_strided_slice %375 {offsets = [48, 0], sizes = [16, 32], strides = [1, 1]} : vector<128x32xf32> to vector<16x32xf32>
    %429 = arith.mulf %427, %428 : vector<16x32xf32>
    %430 = arith.addf %422, %429 : vector<16x32xf32>
    %431 = vector.extract_strided_slice %381 {offsets = [64, 0], sizes = [16, 8], strides = [1, 1]} : vector<128x8xf32> to vector<16x8xf32>
    %432 = arith.subf %431, %396 : vector<16x8xf32>
    %433 = math.exp %432 : vector<16x8xf32>
    %434 = arith.addf %426, %433 : vector<16x8xf32>
    %cst_113 = arith.constant dense<0.000000e+00> : vector<16x32xf32>
    %435 = tpu.matmul %433, %9, %cst_113 {dimension_numbers = #tpu.dot_dimension_numbers<[1], [0], [0], [1], [0, 0, 1, 1], [], []>} : vector<16x8xf32>, vector<8x32xf32>, vector<16x32xf32> -> vector<16x32xf32>
    %436 = vector.extract_strided_slice %375 {offsets = [64, 0], sizes = [16, 32], strides = [1, 1]} : vector<128x32xf32> to vector<16x32xf32>
    %437 = arith.mulf %435, %436 : vector<16x32xf32>
    %438 = arith.addf %430, %437 : vector<16x32xf32>
    %439 = vector.extract_strided_slice %381 {offsets = [80, 0], sizes = [16, 8], strides = [1, 1]} : vector<128x8xf32> to vector<16x8xf32>
    %440 = arith.subf %439, %396 : vector<16x8xf32>
    %441 = math.exp %440 : vector<16x8xf32>
    %442 = arith.addf %434, %441 : vector<16x8xf32>
    %cst_114 = arith.constant dense<0.000000e+00> : vector<16x32xf32>
    %443 = tpu.matmul %441, %9, %cst_114 {dimension_numbers = #tpu.dot_dimension_numbers<[1], [0], [0], [1], [0, 0, 1, 1], [], []>} : vector<16x8xf32>, vector<8x32xf32>, vector<16x32xf32> -> vector<16x32xf32>
    %444 = vector.extract_strided_slice %375 {offsets = [80, 0], sizes = [16, 32], strides = [1, 1]} : vector<128x32xf32> to vector<16x32xf32>
    %445 = arith.mulf %443, %444 : vector<16x32xf32>
    %446 = arith.addf %438, %445 : vector<16x32xf32>
    %447 = vector.extract_strided_slice %381 {offsets = [96, 0], sizes = [16, 8], strides = [1, 1]} : vector<128x8xf32> to vector<16x8xf32>
    %448 = arith.subf %447, %396 : vector<16x8xf32>
    %449 = math.exp %448 : vector<16x8xf32>
    %450 = arith.addf %442, %449 : vector<16x8xf32>
    %cst_115 = arith.constant dense<0.000000e+00> : vector<16x32xf32>
    %451 = tpu.matmul %449, %9, %cst_115 {dimension_numbers = #tpu.dot_dimension_numbers<[1], [0], [0], [1], [0, 0, 1, 1], [], []>} : vector<16x8xf32>, vector<8x32xf32>, vector<16x32xf32> -> vector<16x32xf32>
    %452 = vector.extract_strided_slice %375 {offsets = [96, 0], sizes = [16, 32], strides = [1, 1]} : vector<128x32xf32> to vector<16x32xf32>
    %453 = arith.mulf %451, %452 : vector<16x32xf32>
    %454 = arith.addf %446, %453 : vector<16x32xf32>
    %455 = vector.extract_strided_slice %381 {offsets = [112, 0], sizes = [16, 8], strides = [1, 1]} : vector<128x8xf32> to vector<16x8xf32>
    %456 = arith.subf %455, %396 : vector<16x8xf32>
    %457 = math.exp %456 : vector<16x8xf32>
    %458 = arith.addf %450, %457 : vector<16x8xf32>
    %cst_116 = arith.constant dense<0.000000e+00> : vector<16x32xf32>
    %459 = tpu.matmul %457, %9, %cst_116 {dimension_numbers = #tpu.dot_dimension_numbers<[1], [0], [0], [1], [0, 0, 1, 1], [], []>} : vector<16x8xf32>, vector<8x32xf32>, vector<16x32xf32> -> vector<16x32xf32>
    %460 = vector.extract_strided_slice %375 {offsets = [112, 0], sizes = [16, 32], strides = [1, 1]} : vector<128x32xf32> to vector<16x32xf32>
    %461 = arith.mulf %459, %460 : vector<16x32xf32>
    %462 = arith.addf %454, %461 : vector<16x32xf32>
    %463 = tpu.reciprocal %458 {approx = true} : vector<16x8xf32> -> vector<16x8xf32>
    %cst_117 = arith.constant dense<0.000000e+00> : vector<16x32xf32>
    %464 = tpu.matmul %463, %9, %cst_117 {dimension_numbers = #tpu.dot_dimension_numbers<[1], [0], [0], [1], [0, 0, 1, 1], [], []>} : vector<16x8xf32>, vector<8x32xf32>, vector<16x32xf32> -> vector<16x32xf32>
    %465 = arith.mulf %462, %464 : vector<16x32xf32>
    %cst_118 = arith.constant dense<0.000000e+00> : vector<16x32xf32>
    %466 = tpu.matmul %465, %4, %cst_118 {dimension_numbers = #tpu.dot_dimension_numbers<[1], [0], [0], [1], [0, 0, 1, 1], [], []>} : vector<16x32xf32>, vector<32x32xf32>, vector<16x32xf32> -> vector<16x32xf32>
    %467 = vector.broadcast %14 : vector<1x32xf32> to vector<16x32xf32>
    %468 = arith.addf %466, %467 : vector<16x32xf32>
    %cst_119 = arith.constant dense<0.000000e+00> : vector<16x32xf32>
    %469 = tpu.matmul %18, %468, %cst_119 {dimension_numbers = #tpu.dot_dimension_numbers<[1], [0], [0], [1], [0, 0, 1, 1], [], []>} : vector<16x16xf32>, vector<16x32xf32>, vector<16x32xf32> -> vector<16x32xf32>
    %cst_120 = arith.constant dense<0.000000e+00> : vector<16x32xf32>
    %470 = tpu.matmul %469, %5, %cst_120 {dimension_numbers = #tpu.dot_dimension_numbers<[1], [0], [0], [1], [0, 0, 1, 1], [], []>} : vector<16x32xf32>, vector<32x32xf32>, vector<16x32xf32> -> vector<16x32xf32>
    %471 = vector.broadcast %15 : vector<1x32xf32> to vector<16x32xf32>
    %472 = arith.addf %470, %471 : vector<16x32xf32>
    %cst_121 = arith.constant 0.000000e+00 : f32
    %473 = vector.broadcast %cst_121 : f32 to vector<16x32xf32>
    %474 = arith.maximumf %472, %473 : vector<16x32xf32>
    %cst_122 = arith.constant dense<0.000000e+00> : vector<16x32xf32>
    %475 = tpu.matmul %18, %474, %cst_122 {dimension_numbers = #tpu.dot_dimension_numbers<[1], [0], [0], [1], [0, 0, 1, 1], [], []>} : vector<16x16xf32>, vector<16x32xf32>, vector<16x32xf32> -> vector<16x32xf32>
    %cst_123 = arith.constant dense<0.000000e+00> : vector<16x32xf32>
    %476 = tpu.matmul %475, %6, %cst_123 {dimension_numbers = #tpu.dot_dimension_numbers<[1], [0], [0], [1], [0, 0, 1, 1], [], []>} : vector<16x32xf32>, vector<32x32xf32>, vector<16x32xf32> -> vector<16x32xf32>
    %477 = vector.broadcast %16 : vector<1x32xf32> to vector<16x32xf32>
    %478 = arith.addf %476, %477 : vector<16x32xf32>
    %cst_124 = arith.constant 0.000000e+00 : f32
    %479 = vector.broadcast %cst_124 : f32 to vector<16x32xf32>
    %480 = arith.maximumf %478, %479 : vector<16x32xf32>
    %cst_125 = arith.constant dense<0.000000e+00> : vector<16x128xf32>
    %481 = tpu.matmul %480, %7, %cst_125 {dimension_numbers = #tpu.dot_dimension_numbers<[1], [0], [0], [1], [0, 0, 1, 1], [], []>} : vector<16x32xf32>, vector<32x128xf32>, vector<16x128xf32> -> vector<16x128xf32>
    %482 = vector.broadcast %17 : vector<1x128xf32> to vector<16x128xf32>
    %483 = arith.addf %481, %482 : vector<16x128xf32>
    %c16_126 = arith.constant 16 : index
    %c0_127 = arith.constant 0 : index
    %484 = vector.load %arg4[%c16_126, %c0_127] : memref<32x128xf32, #tpu.memory_space<vmem>>, vector<16x128xf32>
    tpu.vector_store %arg4[%c16_126, %c0_127], %483 {strides = array<i32>} : memref<32x128xf32, #tpu.memory_space<vmem>>, vector<16x128xf32>,
    return
  }
  func.func @transform_0(%arg0: i32) -> (i32, i32) {
    %c0_i32 = arith.constant 0 : i32
    %c0_i32_0 = arith.constant 0 : i32
    return %arg0, %c0_i32 : i32, i32
  }
  func.func @transform_1(%arg0: i32) -> (i32, i32) {
    %c0_i32 = arith.constant 0 : i32
    %c0_i32_0 = arith.constant 0 : i32
    %c0_i32_1 = arith.constant 0 : i32
    return %c0_i32, %c0_i32_0 : i32, i32
  }
  func.func @transform_2(%arg0: i32) -> (i32, i32) {
    %c0_i32 = arith.constant 0 : i32
    %c0_i32_0 = arith.constant 0 : i32
    %c0_i32_1 = arith.constant 0 : i32
    return %c0_i32, %c0_i32_0 : i32, i32
  }
  func.func @transform_3(%arg0: i32) -> (i32, i32) {
    %c0_i32 = arith.constant 0 : i32
    %c0_i32_0 = arith.constant 0 : i32
    return %arg0, %c0_i32 : i32, i32
  }
}

</mosaic_0001>

<llo_original>
// kernel: astgcn_forward.1
$region0: #{astgcn_forward.1}
  #allocation0 [shape = 'u32[]', space=smem, size = 0x4, offset = 0x4, fixed_abs, tag = 'smem constant byte address 0x4 - core index']
  #allocation1 [shape = 'u32[144,128]{1,0:T(1,128)}', space=vmem, size = 0x12000, scoped, tag = 'internal scratch']
  #allocation2 [shape = 'f32[256,32]{1,0:T(8,128)}', space=vmem, size = 0x20000, scoped, tag = 'scratch operand']
  %s0 = inlined_call_operand.vmem [shape: f32[256,4], index: 0, kind: input, shape index: {}]
  %s1 = inlined_call_operand.vmem [shape: f32[16,16], index: 1, kind: input, shape index: {}]
  %s2 = inlined_call_operand.vmem [shape: f32[256,128], index: 2, kind: input, shape index: {}]
  %s3 = inlined_call_operand.vmem [shape: f32[32,128], index: 3, kind: output, shape index: {}]
  %s4 = sld [smem:[#allocation0]]
  $region22: #{astgcn_forward.1} parent=0
    _
  %s6 = ssub.s32 1, %s4
  %s7 = scalar_select 0, %s6, %s4
  // Predicated region
  $region2: #{astgcn_forward.1} parent=0 // pred_check
    _
  $region3: #{astgcn_forward.1} parent=0 // pred_check_branch
    %9 = sbr.rel (0) target = $region5
  $region4: #{astgcn_forward.1} parent=0 // pred_region
    _
  $region5: #{astgcn_forward.1} parent=0 // pred_fallthru
    _
  // Predicated region
  $region6: #{astgcn_forward.1} parent=0 // pred_check
    _
  $region7: #{astgcn_forward.1} parent=0 // pred_check_branch
    %11 = sbr.rel (0) target = $region9
  $region8: #{astgcn_forward.1} parent=0 // pred_region
    _
  $region9: #{astgcn_forward.1} parent=0 // pred_fallthru
    _
  // Predicated region
  $region10: #{astgcn_forward.1} parent=0 // pred_check
    _
  $region11: #{astgcn_forward.1} parent=0 // pred_check_branch
    %13 = sbr.rel (0) target = $region13
  $region12: #{astgcn_forward.1} parent=0 // pred_region
    _
  $region13: #{astgcn_forward.1} parent=0 // pred_fallthru
    _
  %v14 = vld [vmem:[%s2] sm:$0xf]
  %v15 = vld [vmem:[%s2 + $0x8] sm:$0xf]
  %v16 = vld [vmem:[%s2 + $0x10] sm:$0xff]
  %v17 = vld [vmem:[%s2 + $0x18] sm:$0xff]
  %v18 = vld [vmem:[%s2 + $0x20] sm:$0xff]
  %v19 = vld [vmem:[%s2 + $0x28] sm:$0xff]
  %v20 = vld [vmem:[%s2 + $0x30] sm:$0xff]
  %v21 = vld [vmem:[%s2 + $0x38] sm:$0xff]
  %v22 = vld [vmem:[%s2 + $0x40] sm:$0xff]
  %v23 = vld [vmem:[%s2 + $0x48] sm:$0xff]
  %v24 = vld [vmem:[%s2 + $0x50] sm:$0xff]
  %v25 = vld [vmem:[%s2 + $0x58] sm:$0xff]
  %v26 = vld [vmem:[%s2 + $0x60] sm:$0xff]
  %v27 = vld [vmem:[%s2 + $0x68] sm:$0xff]
  %v28 = vld [vmem:[%s2 + $0x70] sm:$0xff]
  %v29 = vld [vmem:[%s2 + $0x78] sm:$0xff]
  %v30 = vld [vmem:[%s2 + $0x80] sm:$0xff]
  %v31 = vld [vmem:[%s2 + $0x88] sm:$0xff]
  %v32 = vld [vmem:[%s2 + $0x90] sm:$0xff]
  %v33 = vld [vmem:[%s2 + $0x98] sm:$0xff]
  %v34 = vld [vmem:[%s2 + $0xa0] sm:$0xff]
  %v35 = vld [vmem:[%s2 + $0xa8] sm:$0xff]
  %v36 = vld [vmem:[%s2 + $0xb0] sm:$0xff]
  %v37 = vld [vmem:[%s2 + $0xb8] sm:$0xff]
  %v38 = vld [vmem:[%s2 + $0xc0] sm:$0xff]
  %v39 = vld [vmem:[%s2 + $0xc8] sm:$0xff]
  %v40 = vld [vmem:[%s2 + $0xd0] sm:$0xff]
  %v41 = vld [vmem:[%s2 + $0xd8] sm:$0xff]
  %v42 = vld [vmem:[%s2 + $0xe0] sm:$0xff]
  %v43 = vld [vmem:[%s2 + $0xe8] sm:$0xff]
  %v44 = vld [vmem:[%s2 + $0xf0] sm:$0xff]
  %v45 = vld [vmem:[%s2 + $0xf8] sm:$0x1]
  %v46 = vld [vmem:[%s2 + $0xf9] sm:$0x1]
  %v47 = vld [vmem:[%s2 + $0xfa] sm:$0x1]
  %v48 = vld [vmem:[%s2 + $0xfb] sm:$0x1]
  %v49 = vld [vmem:[%s2 + $0xfc] sm:$0x1]
  %v50 = vld [vmem:[%s2 + $0xfd] sm:$0x1]
  %v51 = vld [vmem:[%s2 + $0xfe] sm:$0x1]
  %v52 = vld [vmem:[%s2 + $0xff] sm:$0x1]
  %v53 = vld [vmem:[%s1] sm:$0xff]
  %v54 = vld [vmem:[%s1 + $0x8] sm:$0xff]
  %v55 = vld [vmem:[%s0] sm:$0xff]
  %v56 = vld [vmem:[%s0 + $0x8] sm:$0xff]
  %v57 = vld [vmem:[%s0 + $0x10] sm:$0xff]
  %v58 = vld [vmem:[%s0 + $0x18] sm:$0xff]
  %v59 = vld [vmem:[%s0 + $0x20] sm:$0xff]
  %v60 = vld [vmem:[%s0 + $0x28] sm:$0xff]
  %v61 = vld [vmem:[%s0 + $0x30] sm:$0xff]
  %v62 = vld [vmem:[%s0 + $0x38] sm:$0xff]
  %v63 = vld [vmem:[%s0 + $0x40] sm:$0xff]
  %v64 = vld [vmem:[%s0 + $0x48] sm:$0xff]
  %v65 = vld [vmem:[%s0 + $0x50] sm:$0xff]
  %v66 = vld [vmem:[%s0 + $0x58] sm:$0xff]
  %v67 = vld [vmem:[%s0 + $0x60] sm:$0xff]
  %v68 = vld [vmem:[%s0 + $0x68] sm:$0xff]
  %v69 = vld [vmem:[%s0 + $0x70] sm:$0xff]
  %v70 = vld [vmem:[%s0 + $0x78] sm:$0xff]
  %v71 = vld [vmem:[%s0 + $0x80] sm:$0xff]
  %v72 = vld [vmem:[%s0 + $0x88] sm:$0xff]
  %v73 = vld [vmem:[%s0 + $0x90] sm:$0xff]
  %v74 = vld [vmem:[%s0 + $0x98] sm:$0xff]
  %v75 = vld [vmem:[%s0 + $0xa0] sm:$0xff]
  %v76 = vld [vmem:[%s0 + $0xa8] sm:$0xff]
  %v77 = vld [vmem:[%s0 + $0xb0] sm:$0xff]
  %v78 = vld [vmem:[%s0 + $0xb8] sm:$0xff]
  %v79 = vld [vmem:[%s0 + $0xc0] sm:$0xff]
  %v80 = vld [vmem:[%s0 + $0xc8] sm:$0xff]
  %v81 = vld [vmem:[%s0 + $0xd0] sm:$0xff]
  %v82 = vld [vmem:[%s0 + $0xd8] sm:$0xff]
  %v83 = vld [vmem:[%s0 + $0xe0] sm:$0xff]
  %v84 = vld [vmem:[%s0 + $0xe8] sm:$0xff]
  %v85 = vld [vmem:[%s0 + $0xf0] sm:$0xff]
  %v86 = vld [vmem:[%s0 + $0xf8] sm:$0xff]
  %v87 = vlaneseq
  %v88 = vshrl.u32 %v87, 7
  %v89 = vsub.s32 0, %v88
  %v90 = vrot.slane %v45, %v89
  %vm91 = vcmask 31744
  %v93 = vsel %vm91, %v55, 0
  %v96 = vsel %vm91, %v56, 0
  %v99 = vsel %vm91, %v57, 0
  %v102 = vsel %vm91, %v58, 0
  %v105 = vsel %vm91, %v59, 0
  %v108 = vsel %vm91, %v60, 0
  %v111 = vsel %vm91, %v61, 0
  %v114 = vsel %vm91, %v62, 0
  %v117 = vsel %vm91, %v63, 0
  %v120 = vsel %vm91, %v64, 0
  %v123 = vsel %vm91, %v65, 0
  %v126 = vsel %vm91, %v66, 0
  %v129 = vsel %vm91, %v67, 0
  %v132 = vsel %vm91, %v68, 0
  %v135 = vsel %vm91, %v69, 0
  %v138 = vsel %vm91, %v70, 0
  %v141 = vsel %vm91, %v71, 0
  %v144 = vsel %vm91, %v72, 0
  %v147 = vsel %vm91, %v73, 0
  %v150 = vsel %vm91, %v74, 0
  %v153 = vsel %vm91, %v75, 0
  %v156 = vsel %vm91, %v76, 0
  %v159 = vsel %vm91, %v77, 0
  %v162 = vsel %vm91, %v78, 0
  %v165 = vsel %vm91, %v79, 0
  %v168 = vsel %vm91, %v80, 0
  %v171 = vsel %vm91, %v81, 0
  %v174 = vsel %vm91, %v82, 0
  %v177 = vsel %vm91, %v83, 0
  %v180 = vsel %vm91, %v84, 0
  %v183 = vsel %vm91, %v85, 0
  %v186 = vsel %vm91, %v86, 0
  %vm188 = vcmask 1043456
  %v190 = vsel %vm188, %v14, 0
  %192 = vmatprep.subr.mxu0 0.0
  %193 = vmatpush1.msra.mxu0 0.0
  %194 = vmatprep.subr.mxu0 0.0
  %195 = vmatpush1.msra.mxu0 0.0
  %196 = vmatprep.subr.mxu0 0.0
  %197 = vmatpush1.msra.mxu0 0.0
  %198 = vmatprep.subr.mxu0 0.0
  %199 = vmatpush1.msra.mxu0 0.0
  %200 = vmatprep.subr.mxu0 0.0
  %201 = vmatpush1.msra.mxu0 0.0
  %202 = vmatprep.subr.mxu0 0.0
  %203 = vmatpush1.msra.mxu0 0.0
  %204 = vmatprep.subr.mxu0 0.0
  %205 = vmatpush1.msra.mxu0 0.0
  %206 = vmatprep.subr.mxu0 0.0
  %207 = vmatpush1.msra.mxu0 0.0
  %208 = vmatprep.subr.mxu0 0.0
  %209 = vmatpush1.msra.mxu0 0.0
  %210 = vmatprep.subr.mxu0 0.0
  %211 = vmatpush1.msra.mxu0 0.0
  %212 = vmatprep.subr.mxu0 0.0
  %213 = vmatpush1.msra.mxu0 0.0
  %214 = vmatprep.subr.mxu0 0.0
  %215 = vmatpush1.msra.mxu0 0.0
  %216 = vmatprep.subr.mxu0 0.0
  %217 = vmatpush1.msra.mxu0 0.0
  %218 = vmatprep.subr.mxu0 0.0
  %219 = vmatpush1.msra.mxu0 0.0
  %220 = vmatprep.subr.mxu0 0.0
  %221 = vmatpush1.msra.mxu0 0.0
  %222 = vmatprep.subr.mxu0 0.0
  %223 = vmatpush1.msra.mxu0 %v190
  %224 = vmatprep.subr.mxu0 0.0
  %225 = vmatpush2.msra.mxu0 0.0
  %226 = vmatprep.subr.mxu0 0.0
  %227 = vmatpush2.msra.mxu0 0.0
  %228 = vmatprep.subr.mxu0 0.0
  %229 = vmatpush2.msra.mxu0 0.0
  %230 = vmatprep.subr.mxu0 0.0
  %231 = vmatpush2.msra.mxu0 0.0
  %232 = vmatprep.subr.mxu0 0.0
  %233 = vmatpush2.msra.mxu0 0.0
  %234 = vmatprep.subr.mxu0 0.0
  %235 = vmatpush2.msra.mxu0 0.0
  %236 = vmatprep.subr.mxu0 0.0
  %237 = vmatpush2.msra.mxu0 0.0
  %238 = vmatprep.subr.mxu0 0.0
  %239 = vmatpush2.msra.mxu0 0.0
  %240 = vmatprep.subr.mxu0 0.0
  %241 = vmatpush2.msra.mxu0 0.0
  %242 = vmatprep.subr.mxu0 0.0
  %243 = vmatpush2.msra.mxu0 0.0
  %244 = vmatprep.subr.mxu0 0.0
  %245 = vmatpush2.msra.mxu0 0.0
  %246 = vmatprep.subr.mxu0 0.0
  %247 = vmatpush2.msra.mxu0 0.0
  %248 = vmatprep.subr.mxu0 0.0
  %249 = vmatpush2.msra.mxu0 0.0
  %250 = vmatprep.subr.mxu0 0.0
  %251 = vmatpush2.msra.mxu0 0.0
  %252 = vmatprep.subr.mxu0 0.0
  %253 = vmatpush2.msra.mxu0 0.0
  %254 = vmatprep.subr.mxu0 0.0
  %255 = vmatpush2.msra.mxu0 0.0
  %256 = vmatprep.mubr.f32.mxu0 0.0
  %257 = vmatmul.mubr.f32.gmra.mxu0 %v93
  %v258 = vpop.f32.mrf.mxu0
  %v259 = vadd.f32 %v90, %v258
  %v260 = vpop.f32.mrf.mxu0
  %261 = vmatprep.mubr.f32.mxu0 0.0
  %262 = vmatmul.mubr.f32.gmra.mxu0 %v96
  %v263 = vpop.f32.mrf.mxu0
  %v264 = vadd.f32 %v90, %v263
  %v265 = vpop.f32.mrf.mxu0
  %266 = vmatprep.mubr.f32.mxu0 0.0
  %267 = vmatmul.mubr.f32.gmra.mxu0 %v99
  %v268 = vpop.f32.mrf.mxu0
  %v269 = vadd.f32 %v90, %v268
  %v270 = vpop.f32.mrf.mxu0
  %271 = vmatprep.mubr.f32.mxu0 0.0
  %272 = vmatmul.mubr.f32.gmra.mxu0 %v102
  %v273 = vpop.f32.mrf.mxu0
  %v274 = vadd.f32 %v90, %v273
  %v275 = vpop.f32.mrf.mxu0
  %276 = vmatprep.mubr.f32.mxu0 0.0
  %277 = vmatmul.mubr.f32.gmra.mxu0 %v105
  %v278 = vpop.f32.mrf.mxu0
  %v279 = vadd.f32 %v90, %v278
  %v280 = vpop.f32.mrf.mxu0
  %281 = vmatprep.mubr.f32.mxu0 0.0
  %282 = vmatmul.mubr.f32.gmra.mxu0 %v108
  %v283 = vpop.f32.mrf.mxu0
  %v284 = vadd.f32 %v90, %v283
  %v285 = vpop.f32.mrf.mxu0
  %286 = vmatprep.mubr.f32.mxu0 0.0
  %287 = vmatmul.mubr.f32.gmra.mxu0 %v111
  %v288 = vpop.f32.mrf.mxu0
  %v289 = vadd.f32 %v90, %v288
  %v290 = vpop.f32.mrf.mxu0
  %291 = vmatprep.mubr.f32.mxu0 0.0
  %292 = vmatmul.mubr.f32.gmra.mxu0 %v114
  %v293 = vpop.f32.mrf.mxu0
  %v294 = vadd.f32 %v90, %v293
  %v295 = vpop.f32.mrf.mxu0
  %296 = vmatprep.mubr.f32.mxu0 0.0
  %297 = vmatmul.mubr.f32.gmra.mxu0 %v117
  %v298 = vpop.f32.mrf.mxu0
  %v299 = vadd.f32 %v90, %v298
  %v300 = vpop.f32.mrf.mxu0
  %301 = vmatprep.mubr.f32.mxu0 0.0
  %302 = vmatmul.mubr.f32.gmra.mxu0 %v120
  %v303 = vpop.f32.mrf.mxu0
  %v304 = vadd.f32 %v90, %v303
  %v305 = vpop.f32.mrf.mxu0
  %306 = vmatprep.mubr.f32.mxu0 0.0
  %307 = vmatmul.mubr.f32.gmra.mxu0 %v123
  %v308 = vpop.f32.mrf.mxu0
  %v309 = vadd.f32 %v90, %v308
  %v310 = vpop.f32.mrf.mxu0
  %311 = vmatprep.mubr.f32.mxu0 0.0
  %312 = vmatmul.mubr.f32.gmra.mxu0 %v126
  %v313 = vpop.f32.mrf.mxu0
  %v314 = vadd.f32 %v90, %v313
  %v315 = vpop.f32.mrf.mxu0
  %316 = vmatprep.mubr.f32.mxu0 0.0
  %317 = vmatmul.mubr.f32.gmra.mxu0 %v129
  %v318 = vpop.f32.mrf.mxu0
  %v319 = vadd.f32 %v90, %v318
  %v320 = vpop.f32.mrf.mxu0
  %321 = vmatprep.mubr.f32.mxu0 0.0
  %322 = vmatmul.mubr.f32.gmra.mxu0 %v132
  %v323 = vpop.f32.mrf.mxu0
  %v324 = vadd.f32 %v90, %v323
  %v325 = vpop.f32.mrf.mxu0
  %326 = vmatprep.mubr.f32.mxu0 0.0
  %327 = vmatmul.mubr.f32.gmra.mxu0 %v135
  %v328 = vpop.f32.mrf.mxu0
  %v329 = vadd.f32 %v90, %v328
  %v330 = vpop.f32.mrf.mxu0
  %331 = vmatprep.mubr.f32.mxu0 0.0
  %332 = vmatmul.mubr.f32.gmra.mxu0 %v138
  %v333 = vpop.f32.mrf.mxu0
  %v334 = vadd.f32 %v90, %v333
  %v335 = vpop.f32.mrf.mxu0
  %336 = vmatprep.mubr.f32.mxu0 0.0
  %337 = vmatmul.mubr.f32.gmra.mxu0 %v141
  %v338 = vpop.f32.mrf.mxu0
  %v339 = vadd.f32 %v90, %v338
  %v340 = vpop.f32.mrf.mxu0
  %341 = vmatprep.mubr.f32.mxu0 0.0
  %342 = vmatmul.mubr.f32.gmra.mxu0 %v144
  %v343 = vpop.f32.mrf.mxu0
  %v344 = vadd.f32 %v90, %v343
  %v345 = vpop.f32.mrf.mxu0
  %346 = vmatprep.mubr.f32.mxu0 0.0
  %347 = vmatmul.mubr.f32.gmra.mxu0 %v147
  %v348 = vpop.f32.mrf.mxu0
  %v349 = vadd.f32 %v90, %v348
  %v350 = vpop.f32.mrf.mxu0
  %351 = vmatprep.mubr.f32.mxu0 0.0
  %352 = vmatmul.mubr.f32.gmra.mxu0 %v150
  %v353 = vpop.f32.mrf.mxu0
  %v354 = vadd.f32 %v90, %v353
  %v355 = vpop.f32.mrf.mxu0
  %356 = vmatprep.mubr.f32.mxu0 0.0
  %357 = vmatmul.mubr.f32.gmra.mxu0 %v153
  %v358 = vpop.f32.mrf.mxu0
  %v359 = vadd.f32 %v90, %v358
  %v360 = vpop.f32.mrf.mxu0
  %361 = vmatprep.mubr.f32.mxu0 0.0
  %362 = vmatmul.mubr.f32.gmra.mxu0 %v156
  %v363 = vpop.f32.mrf.mxu0
  %v364 = vadd.f32 %v90, %v363
  %v365 = vpop.f32.mrf.mxu0
  %366 = vmatprep.mubr.f32.mxu0 0.0
  %367 = vmatmul.mubr.f32.gmra.mxu0 %v159
  %v368 = vpop.f32.mrf.mxu0
  %v369 = vadd.f32 %v90, %v368
  %v370 = vpop.f32.mrf.mxu0
  %371 = vmatprep.mubr.f32.mxu0 0.0
  %372 = vmatmul.mubr.f32.gmra.mxu0 %v162
  %v373 = vpop.f32.mrf.mxu0
  %v374 = vadd.f32 %v90, %v373
  %v375 = vpop.f32.mrf.mxu0
  %376 = vmatprep.mubr.f32.mxu0 0.0
  %377 = vmatmul.mubr.f32.gmra.mxu0 %v165
  %v378 = vpop.f32.mrf.mxu0
  %v379 = vadd.f32 %v90, %v378
  %v380 = vpop.f32.mrf.mxu0
  %381 = vmatprep.mubr.f32.mxu0 0.0
  %382 = vmatmul.mubr.f32.gmra.mxu0 %v168
  %v383 = vpop.f32.mrf.mxu0
  %v384 = vadd.f32 %v90, %v383
  %v385 = vpop.f32.mrf.mxu0
  %386 = vmatprep.mubr.f32.mxu0 0.0
  %387 = vmatmul.mubr.f32.gmra.mxu0 %v171
  %v388 = vpop.f32.mrf.mxu0
  %v389 = vadd.f32 %v90, %v388
  %v390 = vpop.f32.mrf.mxu0
  %391 = vmatprep.mubr.f32.mxu0 0.0
  %392 = vmatmul.mubr.f32.gmra.mxu0 %v174
  %v393 = vpop.f32.mrf.mxu0
  %v394 = vadd.f32 %v90, %v393
  %v395 = vpop.f32.mrf.mxu0
  %396 = vmatprep.mubr.f32.mxu0 0.0
  %397 = vmatmul.mubr.f32.gmra.mxu0 %v177
  %v398 = vpop.f32.mrf.mxu0
  %v399 = vadd.f32 %v90, %v398
  %v400 = vpop.f32.mrf.mxu0
  %401 = vmatprep.mubr.f32.mxu0 0.0
  %402 = vmatmul.mubr.f32.gmra.mxu0 %v180
  %v403 = vpop.f32.mrf.mxu0
  %v404 = vadd.f32 %v90, %v403
  %v405 = vpop.f32.mrf.mxu0
  %406 = vmatprep.mubr.f32.mxu0 0.0
  %407 = vmatmul.mubr.f32.gmra.mxu0 %v183
  %v408 = vpop.f32.mrf.mxu0
  %v409 = vadd.f32 %v90, %v408
  %v410 = vpop.f32.mrf.mxu0
  %411 = vmatprep.mubr.f32.mxu0 0.0
  %412 = vmatmul.mubr.f32.gmra.mxu0 %v186
  %v413 = vpop.f32.mrf.mxu0
  %v414 = vadd.f32 %v90, %v413
  %v415 = vpop.f32.mrf.mxu0
  %416 = vdwg.mxu0
  %v417 = vlaneseq
  %v418 = vshrl.u32 %v417, 7
  %v419 = vsub.s32 0, %v418
  %v420 = vrot.slane %v46, %v419
  %v422 = vsel %vm188, %v15, 0
  %424 = vmatprep.subr.mxu0 0.0
  %425 = vmatpush1.msra.mxu0 0.0
  %426 = vmatprep.subr.mxu0 0.0
  %427 = vmatpush1.msra.mxu0 0.0
  %428 = vmatprep.subr.mxu0 0.0
  %429 = vmatpush1.msra.mxu0 0.0
  %430 = vmatprep.subr.mxu0 0.0
  %431 = vmatpush1.msra.mxu0 0.0
  %432 = vmatprep.subr.mxu0 0.0
  %433 = vmatpush1.msra.mxu0 0.0
  %434 = vmatprep.subr.mxu0 0.0
  %435 = vmatpush1.msra.mxu0 0.0
  %436 = vmatprep.subr.mxu0 0.0
  %437 = vmatpush1.msra.mxu0 0.0
  %438 = vmatprep.subr.mxu0 0.0
  %439 = vmatpush1.msra.mxu0 0.0
  %440 = vmatprep.subr.mxu0 0.0
  %441 = vmatpush1.msra.mxu0 0.0
  %442 = vmatprep.subr.mxu0 0.0
  %443 = vmatpush1.msra.mxu0 0.0
  %444 = vmatprep.subr.mxu0 0.0
  %445 = vmatpush1.msra.mxu0 0.0
  %446 = vmatprep.subr.mxu0 0.0
  %447 = vmatpush1.msra.mxu0 0.0
  %448 = vmatprep.subr.mxu0 0.0
  %449 = vmatpush1.msra.mxu0 0.0
  %450 = vmatprep.subr.mxu0 0.0
  %451 = vmatpush1.msra.mxu0 0.0
  %452 = vmatprep.subr.mxu0 0.0
  %453 = vmatpush1.msra.mxu0 0.0
  %454 = vmatprep.subr.mxu0 0.0
  %455 = vmatpush1.msra.mxu0 %v422
  %456 = vmatprep.subr.mxu0 0.0
  %457 = vmatpush2.msra.mxu0 0.0
  %458 = vmatprep.subr.mxu0 0.0
  %459 = vmatpush2.msra.mxu0 0.0
  %460 = vmatprep.subr.mxu0 0.0
  %461 = vmatpush2.msra.mxu0 0.0
  %462 = vmatprep.subr.mxu0 0.0
  %463 = vmatpush2.msra.mxu0 0.0
  %464 = vmatprep.subr.mxu0 0.0
  %465 = vmatpush2.msra.mxu0 0.0
  %466 = vmatprep.subr.mxu0 0.0
  %467 = vmatpush2.msra.mxu0 0.0
  %468 = vmatprep.subr.mxu0 0.0
  %469 = vmatpush2.msra.mxu0 0.0
  %470 = vmatprep.subr.mxu0 0.0
  %471 = vmatpush2.msra.mxu0 0.0
  %472 = vmatprep.subr.mxu0 0.0
  %473 = vmatpush2.msra.mxu0 0.0
  %474 = vmatprep.subr.mxu0 0.0
  %475 = vmatpush2.msra.mxu0 0.0
  %476 = vmatprep.subr.mxu0 0.0
  %477 = vmatpush2.msra.mxu0 0.0
  %478 = vmatprep.subr.mxu0 0.0
  %479 = vmatpush2.msra.mxu0 0.0
  %480 = vmatprep.subr.mxu0 0.0
  %481 = vmatpush2.msra.mxu0 0.0
  %482 = vmatprep.subr.mxu0 0.0
  %483 = vmatpush2.msra.mxu0 0.0
  %484 = vmatprep.subr.mxu0 0.0
  %485 = vmatpush2.msra.mxu0 0.0
  %486 = vmatprep.subr.mxu0 0.0
  %487 = vmatpush2.msra.mxu0 0.0
  %488 = vmatprep.mubr.f32.mxu0 0.0
  %489 = vmatmul.mubr.f32.gmra.mxu0 %v93
  %v490 = vpop.f32.mrf.mxu0
  %v491 = vadd.f32 %v420, %v490
  %v492 = vpop.f32.mrf.mxu0
  %493 = vmatprep.mubr.f32.mxu0 0.0
  %494 = vmatmul.mubr.f32.gmra.mxu0 %v96
  %v495 = vpop.f32.mrf.mxu0
  %v496 = vadd.f32 %v420, %v495
  %v497 = vpop.f32.mrf.mxu0
  %498 = vmatprep.mubr.f32.mxu0 0.0
  %499 = vmatmul.mubr.f32.gmra.mxu0 %v99
  %v500 = vpop.f32.mrf.mxu0
  %v501 = vadd.f32 %v420, %v500
  %v502 = vpop.f32.mrf.mxu0
  %503 = vmatprep.mubr.f32.mxu0 0.0
  %504 = vmatmul.mubr.f32.gmra.mxu0 %v102
  %v505 = vpop.f32.mrf.mxu0
  %v506 = vadd.f32 %v420, %v505
  %v507 = vpop.f32.mrf.mxu0
  %508 = vmatprep.mubr.f32.mxu0 0.0
  %509 = vmatmul.mubr.f32.gmra.mxu0 %v105
  %v510 = vpop.f32.mrf.mxu0
  %v511 = vadd.f32 %v420, %v510
  %v512 = vpop.f32.mrf.mxu0
  %513 = vmatprep.mubr.f32.mxu0 0.0
  %514 = vmatmul.mubr.f32.gmra.mxu0 %v108
  %v515 = vpop.f32.mrf.mxu0
  %v516 = vadd.f32 %v420, %v515
  %v517 = vpop.f32.mrf.mxu0
  %518 = vmatprep.mubr.f32.mxu0 0.0
  %519 = vmatmul.mubr.f32.gmra.mxu0 %v111
  %v520 = vpop.f32.mrf.mxu0
  %v521 = vadd.f32 %v420, %v520
  %v522 = vpop.f32.mrf.mxu0
  %523 = vmatprep.mubr.f32.mxu0 0.0
  %524 = vmatmul.mubr.f32.gmra.mxu0 %v114
  %v525 = vpop.f32.mrf.mxu0
  %v526 = vadd.f32 %v420, %v525
  %v527 = vpop.f32.mrf.mxu0
  %528 = vmatprep.mubr.f32.mxu0 0.0
  %529 = vmatmul.mubr.f32.gmra.mxu0 %v117
  %v530 = vpop.f32.mrf.mxu0
  %v531 = vadd.f32 %v420, %v530
  %v532 = vpop.f32.mrf.mxu0
  %533 = vmatprep.mubr.f32.mxu0 0.0
  %534 = vmatmul.mubr.f32.gmra.mxu0 %v120
  %v535 = vpop.f32.mrf.mxu0
  %v536 = vadd.f32 %v420, %v535
  %v537 = vpop.f32.mrf.mxu0
  %538 = vmatprep.mubr.f32.mxu0 0.0
  %539 = vmatmul.mubr.f32.gmra.mxu0 %v123
  %v540 = vpop.f32.mrf.mxu0
  %v541 = vadd.f32 %v420, %v540
  %v542 = vpop.f32.mrf.mxu0
  %543 = vmatprep.mubr.f32.mxu0 0.0
  %544 = vmatmul.mubr.f32.gmra.mxu0 %v126
  %v545 = vpop.f32.mrf.mxu0
  %v546 = vadd.f32 %v420, %v545
  %v547 = vpop.f32.mrf.mxu0
  %548 = vmatprep.mubr.f32.mxu0 0.0
  %549 = vmatmul.mubr.f32.gmra.mxu0 %v129
  %v550 = vpop.f32.mrf.mxu0
  %v551 = vadd.f32 %v420, %v550
  %v552 = vpop.f32.mrf.mxu0
  %553 = vmatprep.mubr.f32.mxu0 0.0
  %554 = vmatmul.mubr.f32.gmra.mxu0 %v132
  %v555 = vpop.f32.mrf.mxu0
  %v556 = vadd.f32 %v420, %v555
  %v557 = vpop.f32.mrf.mxu0
  %558 = vmatprep.mubr.f32.mxu0 0.0
  %559 = vmatmul.mubr.f32.gmra.mxu0 %v135
  %v560 = vpop.f32.mrf.mxu0
  %v561 = vadd.f32 %v420, %v560
  %v562 = vpop.f32.mrf.mxu0
  %563 = vmatprep.mubr.f32.mxu0 0.0
  %564 = vmatmul.mubr.f32.gmra.mxu0 %v138
  %v565 = vpop.f32.mrf.mxu0
  %v566 = vadd.f32 %v420, %v565
  %v567 = vpop.f32.mrf.mxu0
  %568 = vmatprep.mubr.f32.mxu0 0.0
  %569 = vmatmul.mubr.f32.gmra.mxu0 %v141
  %v570 = vpop.f32.mrf.mxu0
  %v571 = vadd.f32 %v420, %v570
  %v572 = vpop.f32.mrf.mxu0
  %573 = vmatprep.mubr.f32.mxu0 0.0
  %574 = vmatmul.mubr.f32.gmra.mxu0 %v144
  %v575 = vpop.f32.mrf.mxu0
  %v576 = vadd.f32 %v420, %v575
  %v577 = vpop.f32.mrf.mxu0
  %578 = vmatprep.mubr.f32.mxu0 0.0
  %579 = vmatmul.mubr.f32.gmra.mxu0 %v147
  %v580 = vpop.f32.mrf.mxu0
  %v581 = vadd.f32 %v420, %v580
  %v582 = vpop.f32.mrf.mxu0
  %583 = vmatprep.mubr.f32.mxu0 0.0
  %584 = vmatmul.mubr.f32.gmra.mxu0 %v150
  %v585 = vpop.f32.mrf.mxu0
  %v586 = vadd.f32 %v420, %v585
  %v587 = vpop.f32.mrf.mxu0
  %588 = vmatprep.mubr.f32.mxu0 0.0
  %589 = vmatmul.mubr.f32.gmra.mxu0 %v153
  %v590 = vpop.f32.mrf.mxu0
  %v591 = vadd.f32 %v420, %v590
  %v592 = vpop.f32.mrf.mxu0
  %593 = vmatprep.mubr.f32.mxu0 0.0
  %594 = vmatmul.mubr.f32.gmra.mxu0 %v156
  %v595 = vpop.f32.mrf.mxu0
  %v596 = vadd.f32 %v420, %v595
  %v597 = vpop.f32.mrf.mxu0
  %598 = vmatprep.mubr.f32.mxu0 0.0
  %599 = vmatmul.mubr.f32.gmra.mxu0 %v159
  %v600 = vpop.f32.mrf.mxu0
  %v601 = vadd.f32 %v420, %v600
  %v602 = vpop.f32.mrf.mxu0
  %603 = vmatprep.mubr.f32.mxu0 0.0
  %604 = vmatmul.mubr.f32.gmra.mxu0 %v162
  %v605 = vpop.f32.mrf.mxu0
  %v606 = vadd.f32 %v420, %v605
  %v607 = vpop.f32.mrf.mxu0
  %608 = vmatprep.mubr.f32.mxu0 0.0
  %609 = vmatmul.mubr.f32.gmra.mxu0 %v165
  %v610 = vpop.f32.mrf.mxu0
  %v611 = vadd.f32 %v420, %v610
  %v612 = vpop.f32.mrf.mxu0
  %613 = vmatprep.mubr.f32.mxu0 0.0
  %614 = vmatmul.mubr.f32.gmra.mxu0 %v168
  %v615 = vpop.f32.mrf.mxu0
  %v616 = vadd.f32 %v420, %v615
  %v617 = vpop.f32.mrf.mxu0
  %618 = vmatprep.mubr.f32.mxu0 0.0
  %619 = vmatmul.mubr.f32.gmra.mxu0 %v171
  %v620 = vpop.f32.mrf.mxu0
  %v621 = vadd.f32 %v420, %v620
  %v622 = vpop.f32.mrf.mxu0
  %623 = vmatprep.mubr.f32.mxu0 0.0
  %624 = vmatmul.mubr.f32.gmra.mxu0 %v174
  %v625 = vpop.f32.mrf.mxu0
  %v626 = vadd.f32 %v420, %v625
  %v627 = vpop.f32.mrf.mxu0
  %628 = vmatprep.mubr.f32.mxu0 0.0
  %629 = vmatmul.mubr.f32.gmra.mxu0 %v177
  %v630 = vpop.f32.mrf.mxu0
  %v631 = vadd.f32 %v420, %v630
  %v632 = vpop.f32.mrf.mxu0
  %633 = vmatprep.mubr.f32.mxu0 0.0
  %634 = vmatmul.mubr.f32.gmra.mxu0 %v180
  %v635 = vpop.f32.mrf.mxu0
  %v636 = vadd.f32 %v420, %v635
  %v637 = vpop.f32.mrf.mxu0
  %638 = vmatprep.mubr.f32.mxu0 0.0
  %639 = vmatmul.mubr.f32.gmra.mxu0 %v183
  %v640 = vpop.f32.mrf.mxu0
  %v641 = vadd.f32 %v420, %v640
  %v642 = vpop.f32.mrf.mxu0
  %643 = vmatprep.mubr.f32.mxu0 0.0
  %644 = vmatmul.mubr.f32.gmra.mxu0 %v186
  %v645 = vpop.f32.mrf.mxu0
  %v646 = vadd.f32 %v420, %v645
  %v647 = vpop.f32.mrf.mxu0
  %648 = vdwg.mxu0
  %v649 = vtanh.pop %v491
  %v650 = vtanh.pop %v496
  %v651 = vtanh.pop %v501
  %v652 = vtanh.pop %v506
  %v653 = vtanh.pop %v511
  %v654 = vtanh.pop %v516
  %v655 = vtanh.pop %v521
  %v656 = vtanh.pop %v526
  %v657 = vtanh.pop %v531
  %v658 = vtanh.pop %v536
  %v659 = vtanh.pop %v541
  %v660 = vtanh.pop %v546
  %v661 = vtanh.pop %v551
  %v662 = vtanh.pop %v556
  %v663 = vtanh.pop %v561
  %v664 = vtanh.pop %v566
  %v665 = vtanh.pop %v571
  %v666 = vtanh.pop %v576
  %v667 = vtanh.pop %v581
  %v668 = vtanh.pop %v586
  %v669 = vtanh.pop %v591
  %v670 = vtanh.pop %v596
  %v671 = vtanh.pop %v601
  %v672 = vtanh.pop %v606
  %v673 = vtanh.pop %v611
  %v674 = vtanh.pop %v616
  %v675 = vtanh.pop %v621
  %v676 = vtanh.pop %v626
  %v677 = vtanh.pop %v631
  %v678 = vtanh.pop %v636
  %v679 = vtanh.pop %v641
  %v680 = vtanh.pop %v646
  %v681 = vlaneseq
  %v682 = vshrl.u32 %v681, 7
  %v683 = vsub.s32 0, %v682
  %v684 = vrot.slane %v47, %v683
  %vm685 = vcmask 261120
  %v687 = vsel %vm685, %v649, 0
  %v690 = vsel %vm685, %v650, 0
  %v693 = vsel %vm685, %v651, 0
  %v696 = vsel %vm685, %v652, 0
  %v699 = vsel %vm685, %v653, 0
  %v702 = vsel %vm685, %v654, 0
  %v705 = vsel %vm685, %v655, 0
  %v708 = vsel %vm685, %v656, 0
  %v711 = vsel %vm685, %v657, 0
  %v714 = vsel %vm685, %v658, 0
  %v717 = vsel %vm685, %v659, 0
  %v720 = vsel %vm685, %v660, 0
  %v723 = vsel %vm685, %v661, 0
  %v726 = vsel %vm685, %v662, 0
  %v729 = vsel %vm685, %v663, 0
  %v732 = vsel %vm685, %v664, 0
  %v735 = vsel %vm685, %v665, 0
  %v738 = vsel %vm685, %v666, 0
  %v741 = vsel %vm685, %v667, 0
  %v744 = vsel %vm685, %v668, 0
  %v747 = vsel %vm685, %v669, 0
  %v750 = vsel %vm685, %v670, 0
  %v753 = vsel %vm685, %v671, 0
  %v756 = vsel %vm685, %v672, 0
  %v759 = vsel %vm685, %v673, 0
  %v762 = vsel %vm685, %v674, 0
  %v765 = vsel %vm685, %v675, 0
  %v768 = vsel %vm685, %v676, 0
  %v771 = vsel %vm685, %v677, 0
  %v774 = vsel %vm685, %v678, 0
  %v777 = vsel %vm685, %v679, 0
  %v780 = vsel %vm685, %v680, 0
  %782 = vmatprep.subr.mxu0 0.0
  %783 = vmatpush1.msra.mxu0 0.0
  %784 = vmatprep.subr.mxu0 0.0
  %785 = vmatpush1.msra.mxu0 0.0
  %786 = vmatprep.subr.mxu0 0.0
  %787 = vmatpush1.msra.mxu0 0.0
  %788 = vmatprep.subr.mxu0 0.0
  %789 = vmatpush1.msra.mxu0 0.0
  %790 = vmatprep.subr.mxu0 0.0
  %791 = vmatpush1.msra.mxu0 0.0
  %792 = vmatprep.subr.mxu0 0.0
  %793 = vmatpush1.msra.mxu0 0.0
  %794 = vmatprep.subr.mxu0 0.0
  %795 = vmatpush1.msra.mxu0 0.0
  %796 = vmatprep.subr.mxu0 0.0
  %797 = vmatpush1.msra.mxu0 0.0
  %798 = vmatprep.subr.mxu0 0.0
  %799 = vmatpush1.msra.mxu0 0.0
  %800 = vmatprep.subr.mxu0 0.0
  %801 = vmatpush1.msra.mxu0 0.0
  %802 = vmatprep.subr.mxu0 0.0
  %803 = vmatpush1.msra.mxu0 0.0
  %804 = vmatprep.subr.mxu0 0.0
  %805 = vmatpush1.msra.mxu0 0.0
  %806 = vmatprep.subr.mxu0 0.0
  %807 = vmatpush1.msra.mxu0 %v19
  %808 = vmatprep.subr.mxu0 0.0
  %809 = vmatpush1.msra.mxu0 %v18
  %810 = vmatprep.subr.mxu0 0.0
  %811 = vmatpush1.msra.mxu0 %v17
  %812 = vmatprep.subr.mxu0 0.0
  %813 = vmatpush1.msra.mxu0 %v16
  %814 = vmatprep.subr.mxu0 0.0
  %815 = vmatpush2.msra.mxu0 0.0
  %816 = vmatprep.subr.mxu0 0.0
  %817 = vmatpush2.msra.mxu0 0.0
  %818 = vmatprep.subr.mxu0 0.0
  %819 = vmatpush2.msra.mxu0 0.0
  %820 = vmatprep.subr.mxu0 0.0
  %821 = vmatpush2.msra.mxu0 0.0
  %822 = vmatprep.subr.mxu0 0.0
  %823 = vmatpush2.msra.mxu0 0.0
  %824 = vmatprep.subr.mxu0 0.0
  %825 = vmatpush2.msra.mxu0 0.0
  %826 = vmatprep.subr.mxu0 0.0
  %827 = vmatpush2.msra.mxu0 0.0
  %828 = vmatprep.subr.mxu0 0.0
  %829 = vmatpush2.msra.mxu0 0.0
  %830 = vmatprep.subr.mxu0 0.0
  %831 = vmatpush2.msra.mxu0 0.0
  %832 = vmatprep.subr.mxu0 0.0
  %833 = vmatpush2.msra.mxu0 0.0
  %834 = vmatprep.subr.mxu0 0.0
  %835 = vmatpush2.msra.mxu0 0.0
  %836 = vmatprep.subr.mxu0 0.0
  %837 = vmatpush2.msra.mxu0 0.0
  %838 = vmatprep.subr.mxu0 0.0
  %839 = vmatpush2.msra.mxu0 0.0
  %840 = vmatprep.subr.mxu0 0.0
  %841 = vmatpush2.msra.mxu0 0.0
  %842 = vmatprep.subr.mxu0 0.0
  %843 = vmatpush2.msra.mxu0 0.0
  %844 = vmatprep.subr.mxu0 0.0
  %845 = vmatpush2.msra.mxu0 0.0
  %846 = vmatprep.mubr.f32.mxu0 0.0
  %847 = vmatmul.mubr.f32.gmra.mxu0 %v687
  %v848 = vpop.f32.mrf.mxu0
  %v849 = vadd.f32 %v684, %v848
  %v850 = vpop.f32.mrf.mxu0
  %851 = vmatprep.mubr.f32.mxu0 0.0
  %852 = vmatmul.mubr.f32.gmra.mxu0 %v690
  %v853 = vpop.f32.mrf.mxu0
  %v854 = vadd.f32 %v684, %v853
  %v855 = vpop.f32.mrf.mxu0
  %856 = vmatprep.mubr.f32.mxu0 0.0
  %857 = vmatmul.mubr.f32.gmra.mxu0 %v693
  %v858 = vpop.f32.mrf.mxu0
  %v859 = vadd.f32 %v684, %v858
  %v860 = vpop.f32.mrf.mxu0
  %861 = vmatprep.mubr.f32.mxu0 0.0
  %862 = vmatmul.mubr.f32.gmra.mxu0 %v696
  %v863 = vpop.f32.mrf.mxu0
  %v864 = vadd.f32 %v684, %v863
  %v865 = vpop.f32.mrf.mxu0
  %866 = vmatprep.mubr.f32.mxu0 0.0
  %867 = vmatmul.mubr.f32.gmra.mxu0 %v699
  %v868 = vpop.f32.mrf.mxu0
  %v869 = vadd.f32 %v684, %v868
  %v870 = vpop.f32.mrf.mxu0
  %871 = vmatprep.mubr.f32.mxu0 0.0
  %872 = vmatmul.mubr.f32.gmra.mxu0 %v702
  %v873 = vpop.f32.mrf.mxu0
  %v874 = vadd.f32 %v684, %v873
  %v875 = vpop.f32.mrf.mxu0
  %876 = vmatprep.mubr.f32.mxu0 0.0
  %877 = vmatmul.mubr.f32.gmra.mxu0 %v705
  %v878 = vpop.f32.mrf.mxu0
  %v879 = vadd.f32 %v684, %v878
  %v880 = vpop.f32.mrf.mxu0
  %881 = vmatprep.mubr.f32.mxu0 0.0
  %882 = vmatmul.mubr.f32.gmra.mxu0 %v708
  %v883 = vpop.f32.mrf.mxu0
  %v884 = vadd.f32 %v684, %v883
  %v885 = vpop.f32.mrf.mxu0
  %886 = vmatprep.mubr.f32.mxu0 0.0
  %887 = vmatmul.mubr.f32.gmra.mxu0 %v711
  %v888 = vpop.f32.mrf.mxu0
  %v889 = vadd.f32 %v684, %v888
  %v890 = vpop.f32.mrf.mxu0
  %891 = vmatprep.mubr.f32.mxu0 0.0
  %892 = vmatmul.mubr.f32.gmra.mxu0 %v714
  %v893 = vpop.f32.mrf.mxu0
  %v894 = vadd.f32 %v684, %v893
  %v895 = vpop.f32.mrf.mxu0
  %896 = vmatprep.mubr.f32.mxu0 0.0
  %897 = vmatmul.mubr.f32.gmra.mxu0 %v717
  %v898 = vpop.f32.mrf.mxu0
  %v899 = vadd.f32 %v684, %v898
  %v900 = vpop.f32.mrf.mxu0
  %901 = vmatprep.mubr.f32.mxu0 0.0
  %902 = vmatmul.mubr.f32.gmra.mxu0 %v720
  %v903 = vpop.f32.mrf.mxu0
  %v904 = vadd.f32 %v684, %v903
  %v905 = vpop.f32.mrf.mxu0
  %906 = vmatprep.mubr.f32.mxu0 0.0
  %907 = vmatmul.mubr.f32.gmra.mxu0 %v723
  %v908 = vpop.f32.mrf.mxu0
  %v909 = vadd.f32 %v684, %v908
  %v910 = vpop.f32.mrf.mxu0
  %911 = vmatprep.mubr.f32.mxu0 0.0
  %912 = vmatmul.mubr.f32.gmra.mxu0 %v726
  %v913 = vpop.f32.mrf.mxu0
  %v914 = vadd.f32 %v684, %v913
  %v915 = vpop.f32.mrf.mxu0
  %916 = vmatprep.mubr.f32.mxu0 0.0
  %917 = vmatmul.mubr.f32.gmra.mxu0 %v729
  %v918 = vpop.f32.mrf.mxu0
  %v919 = vadd.f32 %v684, %v918
  %v920 = vpop.f32.mrf.mxu0
  %921 = vmatprep.mubr.f32.mxu0 0.0
  %922 = vmatmul.mubr.f32.gmra.mxu0 %v732
  %v923 = vpop.f32.mrf.mxu0
  %v924 = vadd.f32 %v684, %v923
  %v925 = vpop.f32.mrf.mxu0
  %926 = vmatprep.mubr.f32.mxu0 0.0
  %927 = vmatmul.mubr.f32.gmra.mxu0 %v735
  %v928 = vpop.f32.mrf.mxu0
  %v929 = vadd.f32 %v684, %v928
  %v930 = vpop.f32.mrf.mxu0
  %931 = vmatprep.mubr.f32.mxu0 0.0
  %932 = vmatmul.mubr.f32.gmra.mxu0 %v738
  %v933 = vpop.f32.mrf.mxu0
  %v934 = vadd.f32 %v684, %v933
  %v935 = vpop.f32.mrf.mxu0
  %936 = vmatprep.mubr.f32.mxu0 0.0
  %937 = vmatmul.mubr.f32.gmra.mxu0 %v741
  %v938 = vpop.f32.mrf.mxu0
  %v939 = vadd.f32 %v684, %v938
  %v940 = vpop.f32.mrf.mxu0
  %941 = vmatprep.mubr.f32.mxu0 0.0
  %942 = vmatmul.mubr.f32.gmra.mxu0 %v744
  %v943 = vpop.f32.mrf.mxu0
  %v944 = vadd.f32 %v684, %v943
  %v945 = vpop.f32.mrf.mxu0
  %946 = vmatprep.mubr.f32.mxu0 0.0
  %947 = vmatmul.mubr.f32.gmra.mxu0 %v747
  %v948 = vpop.f32.mrf.mxu0
  %v949 = vadd.f32 %v684, %v948
  %v950 = vpop.f32.mrf.mxu0
  %951 = vmatprep.mubr.f32.mxu0 0.0
  %952 = vmatmul.mubr.f32.gmra.mxu0 %v750
  %v953 = vpop.f32.mrf.mxu0
  %v954 = vadd.f32 %v684, %v953
  %v955 = vpop.f32.mrf.mxu0
  %956 = vmatprep.mubr.f32.mxu0 0.0
  %957 = vmatmul.mubr.f32.gmra.mxu0 %v753
  %v958 = vpop.f32.mrf.mxu0
  %v959 = vadd.f32 %v684, %v958
  %v960 = vpop.f32.mrf.mxu0
  %961 = vmatprep.mubr.f32.mxu0 0.0
  %962 = vmatmul.mubr.f32.gmra.mxu0 %v756
  %v963 = vpop.f32.mrf.mxu0
  %v964 = vadd.f32 %v684, %v963
  %v965 = vpop.f32.mrf.mxu0
  %966 = vmatprep.mubr.f32.mxu0 0.0
  %967 = vmatmul.mubr.f32.gmra.mxu0 %v759
  %v968 = vpop.f32.mrf.mxu0
  %v969 = vadd.f32 %v684, %v968
  %v970 = vpop.f32.mrf.mxu0
  %971 = vmatprep.mubr.f32.mxu0 0.0
  %972 = vmatmul.mubr.f32.gmra.mxu0 %v762
  %v973 = vpop.f32.mrf.mxu0
  %v974 = vadd.f32 %v684, %v973
  %v975 = vpop.f32.mrf.mxu0
  %976 = vmatprep.mubr.f32.mxu0 0.0
  %977 = vmatmul.mubr.f32.gmra.mxu0 %v765
  %v978 = vpop.f32.mrf.mxu0
  %v979 = vadd.f32 %v684, %v978
  %v980 = vpop.f32.mrf.mxu0
  %981 = vmatprep.mubr.f32.mxu0 0.0
  %982 = vmatmul.mubr.f32.gmra.mxu0 %v768
  %v983 = vpop.f32.mrf.mxu0
  %v984 = vadd.f32 %v684, %v983
  %v985 = vpop.f32.mrf.mxu0
  %986 = vmatprep.mubr.f32.mxu0 0.0
  %987 = vmatmul.mubr.f32.gmra.mxu0 %v771
  %v988 = vpop.f32.mrf.mxu0
  %v989 = vadd.f32 %v684, %v988
  %v990 = vpop.f32.mrf.mxu0
  %991 = vmatprep.mubr.f32.mxu0 0.0
  %992 = vmatmul.mubr.f32.gmra.mxu0 %v774
  %v993 = vpop.f32.mrf.mxu0
  %v994 = vadd.f32 %v684, %v993
  %v995 = vpop.f32.mrf.mxu0
  %996 = vmatprep.mubr.f32.mxu0 0.0
  %997 = vmatmul.mubr.f32.gmra.mxu0 %v777
  %v998 = vpop.f32.mrf.mxu0
  %v999 = vadd.f32 %v684, %v998
  %v1000 = vpop.f32.mrf.mxu0
  %1001 = vmatprep.mubr.f32.mxu0 0.0
  %1002 = vmatmul.mubr.f32.gmra.mxu0 %v780
  %v1003 = vpop.f32.mrf.mxu0
  %v1004 = vadd.f32 %v684, %v1003
  %v1005 = vpop.f32.mrf.mxu0
  %1006 = vdwg.mxu0
  %v1007 = vsel %vm685, %v849, -inf
  %v1008 = vsel %vm685, %v854, -inf
  %v1009 = vmax.f32 %v1007, %v1008
  %v1010 = vrot.slane %v1009, 4
  %v1011 = vmax.f32 %v1009, %v1010
  %v1012 = vrot.slane %v1011, 2
  %v1013 = vmax.f32 %v1011, %v1012
  %v1014 = vrot.slane %v1013, 1
  %v1015 = vmax.f32 %v1013, %v1014
  %v1016 = vsub.f32 %v849, %v1015
  %v1017 = vsub.f32 %v854, %v1015
  %v1018 = vmul.f32 %v1016, 1.442695
  %v1019 = vpow.pop %v1018
  %v1020 = vmul.f32 %v1017, 1.442695
  %v1021 = vpow.pop %v1020
  %v1022 = vsel %vm685, %v1019, 0.0
  %v1023 = vsel %vm685, %v1021, 0.0
  %v1024 = vadd.f32 %v1022, %v1023
  %v1025 = vrot.slane %v1024, 4
  %v1026 = vadd.f32 %v1024, %v1025
  %v1027 = vrot.slane %v1026, 2
  %v1028 = vadd.f32 %v1026, %v1027
  %v1029 = vrot.slane %v1028, 1
  %v1030 = vadd.f32 %v1028, %v1029
  %v1031 = vrcp.pop %v1030
  %v1032 = vmul.f32 %v1019, %v1031
  %v1033 = vmul.f32 %v1021, %v1031
  %v1034 = vmul.f32 %v259, %v1032
  %v1035 = vmul.f32 %v264, %v1033
  %1036 = vst.msk [vmem:[#allocation2] sm:$0xff] %vm685, %v1034
  %1037 = vst.msk [vmem:[#allocation2 + $0x8] sm:$0xff] %vm685, %v1035
  %v1038 = vsel %vm685, %v859, -inf
  %v1039 = vsel %vm685, %v864, -inf
  %v1040 = vmax.f32 %v1038, %v1039
  %v1041 = vrot.slane %v1040, 4
  %v1042 = vmax.f32 %v1040, %v1041
  %v1043 = vrot.slane %v1042, 2
  %v1044 = vmax.f32 %v1042, %v1043
  %v1045 = vrot.slane %v1044, 1
  %v1046 = vmax.f32 %v1044, %v1045
  %v1047 = vsub.f32 %v859, %v1046
  %v1048 = vsub.f32 %v864, %v1046
  %v1049 = vmul.f32 %v1047, 1.442695
  %v1050 = vpow.pop %v1049
  %v1051 = vmul.f32 %v1048, 1.442695
  %v1052 = vpow.pop %v1051
  %v1053 = vsel %vm685, %v1050, 0.0
  %v1054 = vsel %vm685, %v1052, 0.0
  %v1055 = vadd.f32 %v1053, %v1054
  %v1056 = vrot.slane %v1055, 4
  %v1057 = vadd.f32 %v1055, %v1056
  %v1058 = vrot.slane %v1057, 2
  %v1059 = vadd.f32 %v1057, %v1058
  %v1060 = vrot.slane %v1059, 1
  %v1061 = vadd.f32 %v1059, %v1060
  %v1062 = vrcp.pop %v1061
  %v1063 = vmul.f32 %v1050, %v1062
  %v1064 = vmul.f32 %v1052, %v1062
  %v1065 = vmul.f32 %v269, %v1063
  %v1066 = vmul.f32 %v274, %v1064
  %1067 = vst.msk [vmem:[#allocation2 + $0x10] sm:$0xff] %vm685, %v1065
  %1068 = vst.msk [vmem:[#allocation2 + $0x18] sm:$0xff] %vm685, %v1066
  %v1069 = vsel %vm685, %v869, -inf
  %v1070 = vsel %vm685, %v874, -inf
  %v1071 = vmax.f32 %v1069, %v1070
  %v1072 = vrot.slane %v1071, 4
  %v1073 = vmax.f32 %v1071, %v1072
  %v1074 = vrot.slane %v1073, 2
  %v1075 = vmax.f32 %v1073, %v1074
  %v1076 = vrot.slane %v1075, 1
  %v1077 = vmax.f32 %v1075, %v1076
  %v1078 = vsub.f32 %v869, %v1077
  %v1079 = vsub.f32 %v874, %v1077
  %v1080 = vmul.f32 %v1078, 1.442695
  %v1081 = vpow.pop %v1080
  %v1082 = vmul.f32 %v1079, 1.442695
  %v1083 = vpow.pop %v1082
  %v1084 = vsel %vm685, %v1081, 0.0
  %v1085 = vsel %vm685, %v1083, 0.0
  %v1086 = vadd.f32 %v1084, %v1085
  %v1087 = vrot.slane %v1086, 4
  %v1088 = vadd.f32 %v1086, %v1087
  %v1089 = vrot.slane %v1088, 2
  %v1090 = vadd.f32 %v1088, %v1089
  %v1091 = vrot.slane %v1090, 1
  %v1092 = vadd.f32 %v1090, %v1091
  %v1093 = vrcp.pop %v1092
  %v1094 = vmul.f32 %v1081, %v1093
  %v1095 = vmul.f32 %v1083, %v1093
  %v1096 = vmul.f32 %v279, %v1094
  %v1097 = vmul.f32 %v284, %v1095
  %1098 = vst.msk [vmem:[#allocation2 + $0x20] sm:$0xff] %vm685, %v1096
  %1099 = vst.msk [vmem:[#allocation2 + $0x28] sm:$0xff] %vm685, %v1097
  %v1100 = vsel %vm685, %v879, -inf
  %v1101 = vsel %vm685, %v884, -inf
  %v1102 = vmax.f32 %v1100, %v1101
  %v1103 = vrot.slane %v1102, 4
  %v1104 = vmax.f32 %v1102, %v1103
  %v1105 = vrot.slane %v1104, 2
  %v1106 = vmax.f32 %v1104, %v1105
  %v1107 = vrot.slane %v1106, 1
  %v1108 = vmax.f32 %v1106, %v1107
  %v1109 = vsub.f32 %v879, %v1108
  %v1110 = vsub.f32 %v884, %v1108
  %v1111 = vmul.f32 %v1109, 1.442695
  %v1112 = vpow.pop %v1111
  %v1113 = vmul.f32 %v1110, 1.442695
  %v1114 = vpow.pop %v1113
  %v1115 = vsel %vm685, %v1112, 0.0
  %v1116 = vsel %vm685, %v1114, 0.0
  %v1117 = vadd.f32 %v1115, %v1116
  %v1118 = vrot.slane %v1117, 4
  %v1119 = vadd.f32 %v1117, %v1118
  %v1120 = vrot.slane %v1119, 2
  %v1121 = vadd.f32 %v1119, %v1120
  %v1122 = vrot.slane %v1121, 1
  %v1123 = vadd.f32 %v1121, %v1122
  %v1124 = vrcp.pop %v1123
  %v1125 = vmul.f32 %v1112, %v1124
  %v1126 = vmul.f32 %v1114, %v1124
  %v1127 = vmul.f32 %v289, %v1125
  %v1128 = vmul.f32 %v294, %v1126
  %1129 = vst.msk [vmem:[#allocation2 + $0x30] sm:$0xff] %vm685, %v1127
  %1130 = vst.msk [vmem:[#allocation2 + $0x38] sm:$0xff] %vm685, %v1128
  %v1131 = vsel %vm685, %v889, -inf
  %v1132 = vsel %vm685, %v894, -inf
  %v1133 = vmax.f32 %v1131, %v1132
  %v1134 = vrot.slane %v1133, 4
  %v1135 = vmax.f32 %v1133, %v1134
  %v1136 = vrot.slane %v1135, 2
  %v1137 = vmax.f32 %v1135, %v1136
  %v1138 = vrot.slane %v1137, 1
  %v1139 = vmax.f32 %v1137, %v1138
  %v1140 = vsub.f32 %v889, %v1139
  %v1141 = vsub.f32 %v894, %v1139
  %v1142 = vmul.f32 %v1140, 1.442695
  %v1143 = vpow.pop %v1142
  %v1144 = vmul.f32 %v1141, 1.442695
  %v1145 = vpow.pop %v1144
  %v1146 = vsel %vm685, %v1143, 0.0
  %v1147 = vsel %vm685, %v1145, 0.0
  %v1148 = vadd.f32 %v1146, %v1147
  %v1149 = vrot.slane %v1148, 4
  %v1150 = vadd.f32 %v1148, %v1149
  %v1151 = vrot.slane %v1150, 2
  %v1152 = vadd.f32 %v1150, %v1151
  %v1153 = vrot.slane %v1152, 1
  %v1154 = vadd.f32 %v1152, %v1153
  %v1155 = vrcp.pop %v1154
  %v1156 = vmul.f32 %v1143, %v1155
  %v1157 = vmul.f32 %v1145, %v1155
  %v1158 = vmul.f32 %v299, %v1156
  %v1159 = vmul.f32 %v304, %v1157
  %1160 = vst.msk [vmem:[#allocation2 + $0x40] sm:$0xff] %vm685, %v1158
  %1161 = vst.msk [vmem:[#allocation2 + $0x48] sm:$0xff] %vm685, %v1159
  %v1162 = vsel %vm685, %v899, -inf
  %v1163 = vsel %vm685, %v904, -inf
  %v1164 = vmax.f32 %v1162, %v1163
  %v1165 = vrot.slane %v1164, 4
  %v1166 = vmax.f32 %v1164, %v1165
  %v1167 = vrot.slane %v1166, 2
  %v1168 = vmax.f32 %v1166, %v1167
  %v1169 = vrot.slane %v1168, 1
  %v1170 = vmax.f32 %v1168, %v1169
  %v1171 = vsub.f32 %v899, %v1170
  %v1172 = vsub.f32 %v904, %v1170
  %v1173 = vmul.f32 %v1171, 1.442695
  %v1174 = vpow.pop %v1173
  %v1175 = vmul.f32 %v1172, 1.442695
  %v1176 = vpow.pop %v1175
  %v1177 = vsel %vm685, %v1174, 0.0
  %v1178 = vsel %vm685, %v1176, 0.0
  %v1179 = vadd.f32 %v1177, %v1178
  %v1180 = vrot.slane %v1179, 4
  %v1181 = vadd.f32 %v1179, %v1180
  %v1182 = vrot.slane %v1181, 2
  %v1183 = vadd.f32 %v1181, %v1182
  %v1184 = vrot.slane %v1183, 1
  %v1185 = vadd.f32 %v1183, %v1184
  %v1186 = vrcp.pop %v1185
  %v1187 = vmul.f32 %v1174, %v1186
  %v1188 = vmul.f32 %v1176, %v1186
  %v1189 = vmul.f32 %v309, %v1187
  %v1190 = vmul.f32 %v314, %v1188
  %1191 = vst.msk [vmem:[#allocation2 + $0x50] sm:$0xff] %vm685, %v1189
  %1192 = vst.msk [vmem:[#allocation2 + $0x58] sm:$0xff] %vm685, %v1190
  %v1193 = vsel %vm685, %v909, -inf
  %v1194 = vsel %vm685, %v914, -inf
  %v1195 = vmax.f32 %v1193, %v1194
  %v1196 = vrot.slane %v1195, 4
  %v1197 = vmax.f32 %v1195, %v1196
  %v1198 = vrot.slane %v1197, 2
  %v1199 = vmax.f32 %v1197, %v1198
  %v1200 = vrot.slane %v1199, 1
  %v1201 = vmax.f32 %v1199, %v1200
  %v1202 = vsub.f32 %v909, %v1201
  %v1203 = vsub.f32 %v914, %v1201
  %v1204 = vmul.f32 %v1202, 1.442695
  %v1205 = vpow.pop %v1204
  %v1206 = vmul.f32 %v1203, 1.442695
  %v1207 = vpow.pop %v1206
  %v1208 = vsel %vm685, %v1205, 0.0
  %v1209 = vsel %vm685, %v1207, 0.0
  %v1210 = vadd.f32 %v1208, %v1209
  %v1211 = vrot.slane %v1210, 4
  %v1212 = vadd.f32 %v1210, %v1211
  %v1213 = vrot.slane %v1212, 2
  %v1214 = vadd.f32 %v1212, %v1213
  %v1215 = vrot.slane %v1214, 1
  %v1216 = vadd.f32 %v1214, %v1215
  %v1217 = vrcp.pop %v1216
  %v1218 = vmul.f32 %v1205, %v1217
  %v1219 = vmul.f32 %v1207, %v1217
  %v1220 = vmul.f32 %v319, %v1218
  %v1221 = vmul.f32 %v324, %v1219
  %1222 = vst.msk [vmem:[#allocation2 + $0x60] sm:$0xff] %vm685, %v1220
  %1223 = vst.msk [vmem:[#allocation2 + $0x68] sm:$0xff] %vm685, %v1221
  %v1224 = vsel %vm685, %v919, -inf
  %v1225 = vsel %vm685, %v924, -inf
  %v1226 = vmax.f32 %v1224, %v1225
  %v1227 = vrot.slane %v1226, 4
  %v1228 = vmax.f32 %v1226, %v1227
  %v1229 = vrot.slane %v1228, 2
  %v1230 = vmax.f32 %v1228, %v1229
  %v1231 = vrot.slane %v1230, 1
  %v1232 = vmax.f32 %v1230, %v1231
  %v1233 = vsub.f32 %v919, %v1232
  %v1234 = vsub.f32 %v924, %v1232
  %v1235 = vmul.f32 %v1233, 1.442695
  %v1236 = vpow.pop %v1235
  %v1237 = vmul.f32 %v1234, 1.442695
  %v1238 = vpow.pop %v1237
  %v1239 = vsel %vm685, %v1236, 0.0
  %v1240 = vsel %vm685, %v1238, 0.0
  %v1241 = vadd.f32 %v1239, %v1240
  %v1242 = vrot.slane %v1241, 4
  %v1243 = vadd.f32 %v1241, %v1242
  %v1244 = vrot.slane %v1243, 2
  %v1245 = vadd.f32 %v1243, %v1244
  %v1246 = vrot.slane %v1245, 1
  %v1247 = vadd.f32 %v1245, %v1246
  %v1248 = vrcp.pop %v1247
  %v1249 = vmul.f32 %v1236, %v1248
  %v1250 = vmul.f32 %v1238, %v1248
  %v1251 = vmul.f32 %v329, %v1249
  %v1252 = vmul.f32 %v334, %v1250
  %1253 = vst.msk [vmem:[#allocation2 + $0x70] sm:$0xff] %vm685, %v1251
  %1254 = vst.msk [vmem:[#allocation2 + $0x78] sm:$0xff] %vm685, %v1252
  %v1255 = vsel %vm685, %v929, -inf
  %v1256 = vsel %vm685, %v934, -inf
  %v1257 = vmax.f32 %v1255, %v1256
  %v1258 = vrot.slane %v1257, 4
  %v1259 = vmax.f32 %v1257, %v1258
  %v1260 = vrot.slane %v1259, 2
  %v1261 = vmax.f32 %v1259, %v1260
  %v1262 = vrot.slane %v1261, 1
  %v1263 = vmax.f32 %v1261, %v1262
  %v1264 = vsub.f32 %v929, %v1263
  %v1265 = vsub.f32 %v934, %v1263
  %v1266 = vmul.f32 %v1264, 1.442695
  %v1267 = vpow.pop %v1266
  %v1268 = vmul.f32 %v1265, 1.442695
  %v1269 = vpow.pop %v1268
  %v1270 = vsel %vm685, %v1267, 0.0
  %v1271 = vsel %vm685, %v1269, 0.0
  %v1272 = vadd.f32 %v1270, %v1271
  %v1273 = vrot.slane %v1272, 4
  %v1274 = vadd.f32 %v1272, %v1273
  %v1275 = vrot.slane %v1274, 2
  %v1276 = vadd.f32 %v1274, %v1275
  %v1277 = vrot.slane %v1276, 1
  %v1278 = vadd.f32 %v1276, %v1277
  %v1279 = vrcp.pop %v1278
  %v1280 = vmul.f32 %v1267, %v1279
  %v1281 = vmul.f32 %v1269, %v1279
  %v1282 = vmul.f32 %v339, %v1280
  %v1283 = vmul.f32 %v344, %v1281
  %1284 = vst.msk [vmem:[#allocation2 + $0x80] sm:$0xff] %vm685, %v1282
  %1285 = vst.msk [vmem:[#allocation2 + $0x88] sm:$0xff] %vm685, %v1283
  %v1286 = vsel %vm685, %v939, -inf
  %v1287 = vsel %vm685, %v944, -inf
  %v1288 = vmax.f32 %v1286, %v1287
  %v1289 = vrot.slane %v1288, 4
  %v1290 = vmax.f32 %v1288, %v1289
  %v1291 = vrot.slane %v1290, 2
  %v1292 = vmax.f32 %v1290, %v1291
  %v1293 = vrot.slane %v1292, 1
  %v1294 = vmax.f32 %v1292, %v1293
  %v1295 = vsub.f32 %v939, %v1294
  %v1296 = vsub.f32 %v944, %v1294
  %v1297 = vmul.f32 %v1295, 1.442695
  %v1298 = vpow.pop %v1297
  %v1299 = vmul.f32 %v1296, 1.442695
  %v1300 = vpow.pop %v1299
  %v1301 = vsel %vm685, %v1298, 0.0
  %v1302 = vsel %vm685, %v1300, 0.0
  %v1303 = vadd.f32 %v1301, %v1302
  %v1304 = vrot.slane %v1303, 4
  %v1305 = vadd.f32 %v1303, %v1304
  %v1306 = vrot.slane %v1305, 2
  %v1307 = vadd.f32 %v1305, %v1306
  %v1308 = vrot.slane %v1307, 1
  %v1309 = vadd.f32 %v1307, %v1308
  %v1310 = vrcp.pop %v1309
  %v1311 = vmul.f32 %v1298, %v1310
  %v1312 = vmul.f32 %v1300, %v1310
  %v1313 = vmul.f32 %v349, %v1311
  %v1314 = vmul.f32 %v354, %v1312
  %1315 = vst.msk [vmem:[#allocation2 + $0x90] sm:$0xff] %vm685, %v1313
  %1316 = vst.msk [vmem:[#allocation2 + $0x98] sm:$0xff] %vm685, %v1314
  %v1317 = vsel %vm685, %v949, -inf
  %v1318 = vsel %vm685, %v954, -inf
  %v1319 = vmax.f32 %v1317, %v1318
  %v1320 = vrot.slane %v1319, 4
  %v1321 = vmax.f32 %v1319, %v1320
  %v1322 = vrot.slane %v1321, 2
  %v1323 = vmax.f32 %v1321, %v1322
  %v1324 = vrot.slane %v1323, 1
  %v1325 = vmax.f32 %v1323, %v1324
  %v1326 = vsub.f32 %v949, %v1325
  %v1327 = vsub.f32 %v954, %v1325
  %v1328 = vmul.f32 %v1326, 1.442695
  %v1329 = vpow.pop %v1328
  %v1330 = vmul.f32 %v1327, 1.442695
  %v1331 = vpow.pop %v1330
  %v1332 = vsel %vm685, %v1329, 0.0
  %v1333 = vsel %vm685, %v1331, 0.0
  %v1334 = vadd.f32 %v1332, %v1333
  %v1335 = vrot.slane %v1334, 4
  %v1336 = vadd.f32 %v1334, %v1335
  %v1337 = vrot.slane %v1336, 2
  %v1338 = vadd.f32 %v1336, %v1337
  %v1339 = vrot.slane %v1338, 1
  %v1340 = vadd.f32 %v1338, %v1339
  %v1341 = vrcp.pop %v1340
  %v1342 = vmul.f32 %v1329, %v1341
  %v1343 = vmul.f32 %v1331, %v1341
  %v1344 = vmul.f32 %v359, %v1342
  %v1345 = vmul.f32 %v364, %v1343
  %1346 = vst.msk [vmem:[#allocation2 + $0xa0] sm:$0xff] %vm685, %v1344
  %1347 = vst.msk [vmem:[#allocation2 + $0xa8] sm:$0xff] %vm685, %v1345
  %v1348 = vsel %vm685, %v959, -inf
  %v1349 = vsel %vm685, %v964, -inf
  %v1350 = vmax.f32 %v1348, %v1349
  %v1351 = vrot.slane %v1350, 4
  %v1352 = vmax.f32 %v1350, %v1351
  %v1353 = vrot.slane %v1352, 2
  %v1354 = vmax.f32 %v1352, %v1353
  %v1355 = vrot.slane %v1354, 1
  %v1356 = vmax.f32 %v1354, %v1355
  %v1357 = vsub.f32 %v959, %v1356
  %v1358 = vsub.f32 %v964, %v1356
  %v1359 = vmul.f32 %v1357, 1.442695
  %v1360 = vpow.pop %v1359
  %v1361 = vmul.f32 %v1358, 1.442695
  %v1362 = vpow.pop %v1361
  %v1363 = vsel %vm685, %v1360, 0.0
  %v1364 = vsel %vm685, %v1362, 0.0
  %v1365 = vadd.f32 %v1363, %v1364
  %v1366 = vrot.slane %v1365, 4
  %v1367 = vadd.f32 %v1365, %v1366
  %v1368 = vrot.slane %v1367, 2
  %v1369 = vadd.f32 %v1367, %v1368
  %v1370 = vrot.slane %v1369, 1
  %v1371 = vadd.f32 %v1369, %v1370
  %v1372 = vrcp.pop %v1371
  %v1373 = vmul.f32 %v1360, %v1372
  %v1374 = vmul.f32 %v1362, %v1372
  %v1375 = vmul.f32 %v369, %v1373
  %v1376 = vmul.f32 %v374, %v1374
  %1377 = vst.msk [vmem:[#allocation2 + $0xb0] sm:$0xff] %vm685, %v1375
  %1378 = vst.msk [vmem:[#allocation2 + $0xb8] sm:$0xff] %vm685, %v1376
  %v1379 = vsel %vm685, %v969, -inf
  %v1380 = vsel %vm685, %v974, -inf
  %v1381 = vmax.f32 %v1379, %v1380
  %v1382 = vrot.slane %v1381, 4
  %v1383 = vmax.f32 %v1381, %v1382
  %v1384 = vrot.slane %v1383, 2
  %v1385 = vmax.f32 %v1383, %v1384
  %v1386 = vrot.slane %v1385, 1
  %v1387 = vmax.f32 %v1385, %v1386
  %v1388 = vsub.f32 %v969, %v1387
  %v1389 = vsub.f32 %v974, %v1387
  %v1390 = vmul.f32 %v1388, 1.442695
  %v1391 = vpow.pop %v1390
  %v1392 = vmul.f32 %v1389, 1.442695
  %v1393 = vpow.pop %v1392
  %v1394 = vsel %vm685, %v1391, 0.0
  %v1395 = vsel %vm685, %v1393, 0.0
  %v1396 = vadd.f32 %v1394, %v1395
  %v1397 = vrot.slane %v1396, 4
  %v1398 = vadd.f32 %v1396, %v1397
  %v1399 = vrot.slane %v1398, 2
  %v1400 = vadd.f32 %v1398, %v1399
  %v1401 = vrot.slane %v1400, 1
  %v1402 = vadd.f32 %v1400, %v1401
  %v1403 = vrcp.pop %v1402
  %v1404 = vmul.f32 %v1391, %v1403
  %v1405 = vmul.f32 %v1393, %v1403
  %v1406 = vmul.f32 %v379, %v1404
  %v1407 = vmul.f32 %v384, %v1405
  %1408 = vst.msk [vmem:[#allocation2 + $0xc0] sm:$0xff] %vm685, %v1406
  %1409 = vst.msk [vmem:[#allocation2 + $0xc8] sm:$0xff] %vm685, %v1407
  %v1410 = vsel %vm685, %v979, -inf
  %v1411 = vsel %vm685, %v984, -inf
  %v1412 = vmax.f32 %v1410, %v1411
  %v1413 = vrot.slane %v1412, 4
  %v1414 = vmax.f32 %v1412, %v1413
  %v1415 = vrot.slane %v1414, 2
  %v1416 = vmax.f32 %v1414, %v1415
  %v1417 = vrot.slane %v1416, 1
  %v1418 = vmax.f32 %v1416, %v1417
  %v1419 = vsub.f32 %v979, %v1418
  %v1420 = vsub.f32 %v984, %v1418
  %v1421 = vmul.f32 %v1419, 1.442695
  %v1422 = vpow.pop %v1421
  %v1423 = vmul.f32 %v1420, 1.442695
  %v1424 = vpow.pop %v1423
  %v1425 = vsel %vm685, %v1422, 0.0
  %v1426 = vsel %vm685, %v1424, 0.0
  %v1427 = vadd.f32 %v1425, %v1426
  %v1428 = vrot.slane %v1427, 4
  %v1429 = vadd.f32 %v1427, %v1428
  %v1430 = vrot.slane %v1429, 2
  %v1431 = vadd.f32 %v1429, %v1430
  %v1432 = vrot.slane %v1431, 1
  %v1433 = vadd.f32 %v1431, %v1432
  %v1434 = vrcp.pop %v1433
  %v1435 = vmul.f32 %v1422, %v1434
  %v1436 = vmul.f32 %v1424, %v1434
  %v1437 = vmul.f32 %v389, %v1435
  %v1438 = vmul.f32 %v394, %v1436
  %1439 = vst.msk [vmem:[#allocation2 + $0xd0] sm:$0xff] %vm685, %v1437
  %1440 = vst.msk [vmem:[#allocation2 + $0xd8] sm:$0xff] %vm685, %v1438
  %v1441 = vsel %vm685, %v989, -inf
  %v1442 = vsel %vm685, %v994, -inf
  %v1443 = vmax.f32 %v1441, %v1442
  %v1444 = vrot.slane %v1443, 4
  %v1445 = vmax.f32 %v1443, %v1444
  %v1446 = vrot.slane %v1445, 2
  %v1447 = vmax.f32 %v1445, %v1446
  %v1448 = vrot.slane %v1447, 1
  %v1449 = vmax.f32 %v1447, %v1448
  %v1450 = vsub.f32 %v989, %v1449
  %v1451 = vsub.f32 %v994, %v1449
  %v1452 = vmul.f32 %v1450, 1.442695
  %v1453 = vpow.pop %v1452
  %v1454 = vmul.f32 %v1451, 1.442695
  %v1455 = vpow.pop %v1454
  %v1456 = vsel %vm685, %v1453, 0.0
  %v1457 = vsel %vm685, %v1455, 0.0
  %v1458 = vadd.f32 %v1456, %v1457
  %v1459 = vrot.slane %v1458, 4
  %v1460 = vadd.f32 %v1458, %v1459
  %v1461 = vrot.slane %v1460, 2
  %v1462 = vadd.f32 %v1460, %v1461
  %v1463 = vrot.slane %v1462, 1
  %v1464 = vadd.f32 %v1462, %v1463
  %v1465 = vrcp.pop %v1464
  %v1466 = vmul.f32 %v1453, %v1465
  %v1467 = vmul.f32 %v1455, %v1465
  %v1468 = vmul.f32 %v399, %v1466
  %v1469 = vmul.f32 %v404, %v1467
  %1470 = vst.msk [vmem:[#allocation2 + $0xe0] sm:$0xff] %vm685, %v1468
  %1471 = vst.msk [vmem:[#allocation2 + $0xe8] sm:$0xff] %vm685, %v1469
  %v1472 = vsel %vm685, %v999, -inf
  %v1473 = vsel %vm685, %v1004, -inf
  %v1474 = vmax.f32 %v1472, %v1473
  %v1475 = vrot.slane %v1474, 4
  %v1476 = vmax.f32 %v1474, %v1475
  %v1477 = vrot.slane %v1476, 2
  %v1478 = vmax.f32 %v1476, %v1477
  %v1479 = vrot.slane %v1478, 1
  %v1480 = vmax.f32 %v1478, %v1479
  %v1481 = vsub.f32 %v999, %v1480
  %v1482 = vsub.f32 %v1004, %v1480
  %v1483 = vmul.f32 %v1481, 1.442695
  %v1484 = vpow.pop %v1483
  %v1485 = vmul.f32 %v1482, 1.442695
  %v1486 = vpow.pop %v1485
  %v1487 = vsel %vm685, %v1484, 0.0
  %v1488 = vsel %vm685, %v1486, 0.0
  %v1489 = vadd.f32 %v1487, %v1488
  %v1490 = vrot.slane %v1489, 4
  %v1491 = vadd.f32 %v1489, %v1490
  %v1492 = vrot.slane %v1491, 2
  %v1493 = vadd.f32 %v1491, %v1492
  %v1494 = vrot.slane %v1493, 1
  %v1495 = vadd.f32 %v1493, %v1494
  %v1496 = vrcp.pop %v1495
  %v1497 = vmul.f32 %v1484, %v1496
  %v1498 = vmul.f32 %v1486, %v1496
  %v1499 = vmul.f32 %v409, %v1497
  %v1500 = vmul.f32 %v414, %v1498
  %1501 = vst.msk [vmem:[#allocation2 + $0xf0] sm:$0xff] %vm685, %v1499
  %1502 = vst.msk [vmem:[#allocation2 + $0xf8] sm:$0xff] %vm685, %v1500
  %v1503 = vld [vmem:[#allocation2] sm:$0xff]
  %v1504 = vld [vmem:[#allocation2 + $0x8] sm:$0xff]
  %v1505 = vld [vmem:[#allocation2 + $0x10] sm:$0xff]
  %v1506 = vld [vmem:[#allocation2 + $0x18] sm:$0xff]
  %v1507 = vld [vmem:[#allocation2 + $0x20] sm:$0xff]
  %v1508 = vld [vmem:[#allocation2 + $0x28] sm:$0xff]
  %v1509 = vld [vmem:[#allocation2 + $0x30] sm:$0xff]
  %v1510 = vld [vmem:[#allocation2 + $0x38] sm:$0xff]
  %v1511 = vld [vmem:[#allocation2 + $0x40] sm:$0xff]
  %v1512 = vld [vmem:[#allocation2 + $0x48] sm:$0xff]
  %v1513 = vld [vmem:[#allocation2 + $0x50] sm:$0xff]
  %v1514 = vld [vmem:[#allocation2 + $0x58] sm:$0xff]
  %v1515 = vld [vmem:[#allocation2 + $0x60] sm:$0xff]
  %v1516 = vld [vmem:[#allocation2 + $0x68] sm:$0xff]
  %v1517 = vld [vmem:[#allocation2 + $0x70] sm:$0xff]
  %v1518 = vld [vmem:[#allocation2 + $0x78] sm:$0xff]
  %v1519 = vld [vmem:[#allocation2 + $0x80] sm:$0xff]
  %v1520 = vld [vmem:[#allocation2 + $0x88] sm:$0xff]
  %v1521 = vld [vmem:[#allocation2 + $0x90] sm:$0xff]
  %v1522 = vld [vmem:[#allocation2 + $0x98] sm:$0xff]
  %v1523 = vld [vmem:[#allocation2 + $0xa0] sm:$0xff]
  %v1524 = vld [vmem:[#allocation2 + $0xa8] sm:$0xff]
  %v1525 = vld [vmem:[#allocation2 + $0xb0] sm:$0xff]
  %v1526 = vld [vmem:[#allocation2 + $0xb8] sm:$0xff]
  %v1527 = vld [vmem:[#allocation2 + $0xc0] sm:$0xff]
  %v1528 = vld [vmem:[#allocation2 + $0xc8] sm:$0xff]
  %v1529 = vld [vmem:[#allocation2 + $0xd0] sm:$0xff]
  %v1530 = vld [vmem:[#allocation2 + $0xd8] sm:$0xff]
  %v1531 = vld [vmem:[#allocation2 + $0xe0] sm:$0xff]
  %v1532 = vld [vmem:[#allocation2 + $0xe8] sm:$0xff]
  %v1533 = vld [vmem:[#allocation2 + $0xf0] sm:$0xff]
  %v1534 = vld [vmem:[#allocation2 + $0xf8] sm:$0xff]
  %v1535 = vlaneseq
  %v1536 = vshrl.u32 %v1535, 7
  %v1537 = vsub.s32 0, %v1536
  %v1538 = vrot.slane %v48, %v1537
  %v1540 = vsel %vm685, %v1503, 0
  %v1543 = vsel %vm685, %v1504, 0
  %v1546 = vsel %vm685, %v1505, 0
  %v1549 = vsel %vm685, %v1506, 0
  %v1552 = vsel %vm685, %v1507, 0
  %v1555 = vsel %vm685, %v1508, 0
  %v1558 = vsel %vm685, %v1509, 0
  %v1561 = vsel %vm685, %v1510, 0
  %v1564 = vsel %vm685, %v1511, 0
  %v1567 = vsel %vm685, %v1512, 0
  %v1570 = vsel %vm685, %v1513, 0
  %v1573 = vsel %vm685, %v1514, 0
  %v1576 = vsel %vm685, %v1515, 0
  %v1579 = vsel %vm685, %v1516, 0
  %v1582 = vsel %vm685, %v1517, 0
  %v1585 = vsel %vm685, %v1518, 0
  %v1588 = vsel %vm685, %v1519, 0
  %v1591 = vsel %vm685, %v1520, 0
  %v1594 = vsel %vm685, %v1521, 0
  %v1597 = vsel %vm685, %v1522, 0
  %v1600 = vsel %vm685, %v1523, 0
  %v1603 = vsel %vm685, %v1524, 0
  %v1606 = vsel %vm685, %v1525, 0
  %v1609 = vsel %vm685, %v1526, 0
  %v1612 = vsel %vm685, %v1527, 0
  %v1615 = vsel %vm685, %v1528, 0
  %v1618 = vsel %vm685, %v1529, 0
  %v1621 = vsel %vm685, %v1530, 0
  %v1624 = vsel %vm685, %v1531, 0
  %v1627 = vsel %vm685, %v1532, 0
  %v1630 = vsel %vm685, %v1533, 0
  %v1633 = vsel %vm685, %v1534, 0
  %1635 = vmatprep.subr.mxu0 0.0
  %1636 = vmatpush1.msra.mxu0 0.0
  %1637 = vmatprep.subr.mxu0 0.0
  %1638 = vmatpush1.msra.mxu0 0.0
  %1639 = vmatprep.subr.mxu0 0.0
  %1640 = vmatpush1.msra.mxu0 0.0
  %1641 = vmatprep.subr.mxu0 0.0
  %1642 = vmatpush1.msra.mxu0 0.0
  %1643 = vmatprep.subr.mxu0 0.0
  %1644 = vmatpush1.msra.mxu0 0.0
  %1645 = vmatprep.subr.mxu0 0.0
  %1646 = vmatpush1.msra.mxu0 0.0
  %1647 = vmatprep.subr.mxu0 0.0
  %1648 = vmatpush1.msra.mxu0 0.0
  %1649 = vmatprep.subr.mxu0 0.0
  %1650 = vmatpush1.msra.mxu0 0.0
  %1651 = vmatprep.subr.mxu0 0.0
  %1652 = vmatpush1.msra.mxu0 0.0
  %1653 = vmatprep.subr.mxu0 0.0
  %1654 = vmatpush1.msra.mxu0 0.0
  %1655 = vmatprep.subr.mxu0 0.0
  %1656 = vmatpush1.msra.mxu0 0.0
  %1657 = vmatprep.subr.mxu0 0.0
  %1658 = vmatpush1.msra.mxu0 0.0
  %1659 = vmatprep.subr.mxu0 0.0
  %1660 = vmatpush1.msra.mxu0 %v23
  %1661 = vmatprep.subr.mxu0 0.0
  %1662 = vmatpush1.msra.mxu0 %v22
  %1663 = vmatprep.subr.mxu0 0.0
  %1664 = vmatpush1.msra.mxu0 %v21
  %1665 = vmatprep.subr.mxu0 0.0
  %1666 = vmatpush1.msra.mxu0 %v20
  %1667 = vmatprep.subr.mxu0 0.0
  %1668 = vmatpush2.msra.mxu0 0.0
  %1669 = vmatprep.subr.mxu0 0.0
  %1670 = vmatpush2.msra.mxu0 0.0
  %1671 = vmatprep.subr.mxu0 0.0
  %1672 = vmatpush2.msra.mxu0 0.0
  %1673 = vmatprep.subr.mxu0 0.0
  %1674 = vmatpush2.msra.mxu0 0.0
  %1675 = vmatprep.subr.mxu0 0.0
  %1676 = vmatpush2.msra.mxu0 0.0
  %1677 = vmatprep.subr.mxu0 0.0
  %1678 = vmatpush2.msra.mxu0 0.0
  %1679 = vmatprep.subr.mxu0 0.0
  %1680 = vmatpush2.msra.mxu0 0.0
  %1681 = vmatprep.subr.mxu0 0.0
  %1682 = vmatpush2.msra.mxu0 0.0
  %1683 = vmatprep.subr.mxu0 0.0
  %1684 = vmatpush2.msra.mxu0 0.0
  %1685 = vmatprep.subr.mxu0 0.0
  %1686 = vmatpush2.msra.mxu0 0.0
  %1687 = vmatprep.subr.mxu0 0.0
  %1688 = vmatpush2.msra.mxu0 0.0
  %1689 = vmatprep.subr.mxu0 0.0
  %1690 = vmatpush2.msra.mxu0 0.0
  %1691 = vmatprep.subr.mxu0 0.0
  %1692 = vmatpush2.msra.mxu0 0.0
  %1693 = vmatprep.subr.mxu0 0.0
  %1694 = vmatpush2.msra.mxu0 0.0
  %1695 = vmatprep.subr.mxu0 0.0
  %1696 = vmatpush2.msra.mxu0 0.0
  %1697 = vmatprep.subr.mxu0 0.0
  %1698 = vmatpush2.msra.mxu0 0.0
  %1699 = vmatprep.mubr.f32.mxu0 0.0
  %1700 = vmatmul.mubr.f32.gmra.mxu0 %v1540
  %v1701 = vpop.f32.mrf.mxu0
  %v1702 = vadd.f32 %v1538, %v1701
  %v1703 = vpop.f32.mrf.mxu0
  %1704 = vmatprep.mubr.f32.mxu0 0.0
  %1705 = vmatmul.mubr.f32.gmra.mxu0 %v1543
  %v1706 = vpop.f32.mrf.mxu0
  %v1707 = vadd.f32 %v1538, %v1706
  %v1708 = vpop.f32.mrf.mxu0
  %1709 = vmatprep.mubr.f32.mxu0 0.0
  %1710 = vmatmul.mubr.f32.gmra.mxu0 %v1546
  %v1711 = vpop.f32.mrf.mxu0
  %v1712 = vadd.f32 %v1538, %v1711
  %v1713 = vpop.f32.mrf.mxu0
  %1714 = vmatprep.mubr.f32.mxu0 0.0
  %1715 = vmatmul.mubr.f32.gmra.mxu0 %v1549
  %v1716 = vpop.f32.mrf.mxu0
  %v1717 = vadd.f32 %v1538, %v1716
  %v1718 = vpop.f32.mrf.mxu0
  %1719 = vmatprep.mubr.f32.mxu0 0.0
  %1720 = vmatmul.mubr.f32.gmra.mxu0 %v1552
  %v1721 = vpop.f32.mrf.mxu0
  %v1722 = vadd.f32 %v1538, %v1721
  %v1723 = vpop.f32.mrf.mxu0
  %1724 = vmatprep.mubr.f32.mxu0 0.0
  %1725 = vmatmul.mubr.f32.gmra.mxu0 %v1555
  %v1726 = vpop.f32.mrf.mxu0
  %v1727 = vadd.f32 %v1538, %v1726
  %v1728 = vpop.f32.mrf.mxu0
  %1729 = vmatprep.mubr.f32.mxu0 0.0
  %1730 = vmatmul.mubr.f32.gmra.mxu0 %v1558
  %v1731 = vpop.f32.mrf.mxu0
  %v1732 = vadd.f32 %v1538, %v1731
  %v1733 = vpop.f32.mrf.mxu0
  %1734 = vmatprep.mubr.f32.mxu0 0.0
  %1735 = vmatmul.mubr.f32.gmra.mxu0 %v1561
  %v1736 = vpop.f32.mrf.mxu0
  %v1737 = vadd.f32 %v1538, %v1736
  %v1738 = vpop.f32.mrf.mxu0
  %1739 = vmatprep.mubr.f32.mxu0 0.0
  %1740 = vmatmul.mubr.f32.gmra.mxu0 %v1564
  %v1741 = vpop.f32.mrf.mxu0
  %v1742 = vadd.f32 %v1538, %v1741
  %v1743 = vpop.f32.mrf.mxu0
  %1744 = vmatprep.mubr.f32.mxu0 0.0
  %1745 = vmatmul.mubr.f32.gmra.mxu0 %v1567
  %v1746 = vpop.f32.mrf.mxu0
  %v1747 = vadd.f32 %v1538, %v1746
  %v1748 = vpop.f32.mrf.mxu0
  %1749 = vmatprep.mubr.f32.mxu0 0.0
  %1750 = vmatmul.mubr.f32.gmra.mxu0 %v1570
  %v1751 = vpop.f32.mrf.mxu0
  %v1752 = vadd.f32 %v1538, %v1751
  %v1753 = vpop.f32.mrf.mxu0
  %1754 = vmatprep.mubr.f32.mxu0 0.0
  %1755 = vmatmul.mubr.f32.gmra.mxu0 %v1573
  %v1756 = vpop.f32.mrf.mxu0
  %v1757 = vadd.f32 %v1538, %v1756
  %v1758 = vpop.f32.mrf.mxu0
  %1759 = vmatprep.mubr.f32.mxu0 0.0
  %1760 = vmatmul.mubr.f32.gmra.mxu0 %v1576
  %v1761 = vpop.f32.mrf.mxu0
  %v1762 = vadd.f32 %v1538, %v1761
  %v1763 = vpop.f32.mrf.mxu0
  %1764 = vmatprep.mubr.f32.mxu0 0.0
  %1765 = vmatmul.mubr.f32.gmra.mxu0 %v1579
  %v1766 = vpop.f32.mrf.mxu0
  %v1767 = vadd.f32 %v1538, %v1766
  %v1768 = vpop.f32.mrf.mxu0
  %1769 = vmatprep.mubr.f32.mxu0 0.0
  %1770 = vmatmul.mubr.f32.gmra.mxu0 %v1582
  %v1771 = vpop.f32.mrf.mxu0
  %v1772 = vadd.f32 %v1538, %v1771
  %v1773 = vpop.f32.mrf.mxu0
  %1774 = vmatprep.mubr.f32.mxu0 0.0
  %1775 = vmatmul.mubr.f32.gmra.mxu0 %v1585
  %v1776 = vpop.f32.mrf.mxu0
  %v1777 = vadd.f32 %v1538, %v1776
  %v1778 = vpop.f32.mrf.mxu0
  %1779 = vmatprep.mubr.f32.mxu0 0.0
  %1780 = vmatmul.mubr.f32.gmra.mxu0 %v1588
  %v1781 = vpop.f32.mrf.mxu0
  %v1782 = vadd.f32 %v1538, %v1781
  %v1783 = vpop.f32.mrf.mxu0
  %1784 = vmatprep.mubr.f32.mxu0 0.0
  %1785 = vmatmul.mubr.f32.gmra.mxu0 %v1591
  %v1786 = vpop.f32.mrf.mxu0
  %v1787 = vadd.f32 %v1538, %v1786
  %v1788 = vpop.f32.mrf.mxu0
  %1789 = vmatprep.mubr.f32.mxu0 0.0
  %1790 = vmatmul.mubr.f32.gmra.mxu0 %v1594
  %v1791 = vpop.f32.mrf.mxu0
  %v1792 = vadd.f32 %v1538, %v1791
  %v1793 = vpop.f32.mrf.mxu0
  %1794 = vmatprep.mubr.f32.mxu0 0.0
  %1795 = vmatmul.mubr.f32.gmra.mxu0 %v1597
  %v1796 = vpop.f32.mrf.mxu0
  %v1797 = vadd.f32 %v1538, %v1796
  %v1798 = vpop.f32.mrf.mxu0
  %1799 = vmatprep.mubr.f32.mxu0 0.0
  %1800 = vmatmul.mubr.f32.gmra.mxu0 %v1600
  %v1801 = vpop.f32.mrf.mxu0
  %v1802 = vadd.f32 %v1538, %v1801
  %v1803 = vpop.f32.mrf.mxu0
  %1804 = vmatprep.mubr.f32.mxu0 0.0
  %1805 = vmatmul.mubr.f32.gmra.mxu0 %v1603
  %v1806 = vpop.f32.mrf.mxu0
  %v1807 = vadd.f32 %v1538, %v1806
  %v1808 = vpop.f32.mrf.mxu0
  %1809 = vmatprep.mubr.f32.mxu0 0.0
  %1810 = vmatmul.mubr.f32.gmra.mxu0 %v1606
  %v1811 = vpop.f32.mrf.mxu0
  %v1812 = vadd.f32 %v1538, %v1811
  %v1813 = vpop.f32.mrf.mxu0
  %1814 = vmatprep.mubr.f32.mxu0 0.0
  %1815 = vmatmul.mubr.f32.gmra.mxu0 %v1609
  %v1816 = vpop.f32.mrf.mxu0
  %v1817 = vadd.f32 %v1538, %v1816
  %v1818 = vpop.f32.mrf.mxu0
  %1819 = vmatprep.mubr.f32.mxu0 0.0
  %1820 = vmatmul.mubr.f32.gmra.mxu0 %v1612
  %v1821 = vpop.f32.mrf.mxu0
  %v1822 = vadd.f32 %v1538, %v1821
  %v1823 = vpop.f32.mrf.mxu0
  %1824 = vmatprep.mubr.f32.mxu0 0.0
  %1825 = vmatmul.mubr.f32.gmra.mxu0 %v1615
  %v1826 = vpop.f32.mrf.mxu0
  %v1827 = vadd.f32 %v1538, %v1826
  %v1828 = vpop.f32.mrf.mxu0
  %1829 = vmatprep.mubr.f32.mxu0 0.0
  %1830 = vmatmul.mubr.f32.gmra.mxu0 %v1618
  %v1831 = vpop.f32.mrf.mxu0
  %v1832 = vadd.f32 %v1538, %v1831
  %v1833 = vpop.f32.mrf.mxu0
  %1834 = vmatprep.mubr.f32.mxu0 0.0
  %1835 = vmatmul.mubr.f32.gmra.mxu0 %v1621
  %v1836 = vpop.f32.mrf.mxu0
  %v1837 = vadd.f32 %v1538, %v1836
  %v1838 = vpop.f32.mrf.mxu0
  %1839 = vmatprep.mubr.f32.mxu0 0.0
  %1840 = vmatmul.mubr.f32.gmra.mxu0 %v1624
  %v1841 = vpop.f32.mrf.mxu0
  %v1842 = vadd.f32 %v1538, %v1841
  %v1843 = vpop.f32.mrf.mxu0
  %1844 = vmatprep.mubr.f32.mxu0 0.0
  %1845 = vmatmul.mubr.f32.gmra.mxu0 %v1627
  %v1846 = vpop.f32.mrf.mxu0
  %v1847 = vadd.f32 %v1538, %v1846
  %v1848 = vpop.f32.mrf.mxu0
  %1849 = vmatprep.mubr.f32.mxu0 0.0
  %1850 = vmatmul.mubr.f32.gmra.mxu0 %v1630
  %v1851 = vpop.f32.mrf.mxu0
  %v1852 = vadd.f32 %v1538, %v1851
  %v1853 = vpop.f32.mrf.mxu0
  %1854 = vmatprep.mubr.f32.mxu0 0.0
  %1855 = vmatmul.mubr.f32.gmra.mxu0 %v1633
  %v1856 = vpop.f32.mrf.mxu0
  %v1857 = vadd.f32 %v1538, %v1856
  %v1858 = vpop.f32.mrf.mxu0
  %1859 = vdwg.mxu0
  %1862 = vrot.lane.b32.xlu0 %v1772, 32
  %v1863 = vpop.permute.xlu0 %1862
  %1864 = vrot.lane.b32.xlu0 %v1777, 32
  %v1865 = vpop.permute.xlu0 %1864
  %v1868 = vmul.f32 %v1702, %v1863
  %v1869 = vmul.f32 %v1707, %v1865
  %v1870 = vmul.f32 %v1712, %v1863
  %v1871 = vmul.f32 %v1717, %v1865
  %v1872 = vmul.f32 %v1722, %v1863
  %v1873 = vmul.f32 %v1727, %v1865
  %v1874 = vmul.f32 %v1732, %v1863
  %v1875 = vmul.f32 %v1737, %v1865
  %v1876 = vmul.f32 %v1742, %v1863
  %v1877 = vmul.f32 %v1747, %v1865
  %v1878 = vmul.f32 %v1752, %v1863
  %v1879 = vmul.f32 %v1757, %v1865
  %v1880 = vmul.f32 %v1762, %v1863
  %v1881 = vmul.f32 %v1767, %v1865
  %v1882 = vmul.f32 %v1772, %v1863
  %v1883 = vmul.f32 %v1777, %v1865
  %1900 = vrot.lane.b32.xlu0 %v1868, 96
  %v1901 = vpop.permute.xlu0 %1900
  %1902 = vrot.lane.b32.xlu0 %v1869, 96
  %v1903 = vpop.permute.xlu0 %1902
  %1904 = vrot.lane.b32.xlu0 %v1870, 96
  %v1905 = vpop.permute.xlu0 %1904
  %1906 = vrot.lane.b32.xlu0 %v1871, 96
  %v1907 = vpop.permute.xlu0 %1906
  %1908 = vrot.lane.b32.xlu0 %v1872, 96
  %v1909 = vpop.permute.xlu0 %1908
  %1910 = vrot.lane.b32.xlu0 %v1873, 96
  %v1911 = vpop.permute.xlu0 %1910
  %1912 = vrot.lane.b32.xlu0 %v1874, 96
  %v1913 = vpop.permute.xlu0 %1912
  %1914 = vrot.lane.b32.xlu0 %v1875, 96
  %v1915 = vpop.permute.xlu0 %1914
  %1916 = vrot.lane.b32.xlu0 %v1876, 96
  %v1917 = vpop.permute.xlu0 %1916
  %1918 = vrot.lane.b32.xlu0 %v1877, 96
  %v1919 = vpop.permute.xlu0 %1918
  %1920 = vrot.lane.b32.xlu0 %v1878, 96
  %v1921 = vpop.permute.xlu0 %1920
  %1922 = vrot.lane.b32.xlu0 %v1879, 96
  %v1923 = vpop.permute.xlu0 %1922
  %1924 = vrot.lane.b32.xlu0 %v1880, 96
  %v1925 = vpop.permute.xlu0 %1924
  %1926 = vrot.lane.b32.xlu0 %v1881, 96
  %v1927 = vpop.permute.xlu0 %1926
  %1928 = vrot.lane.b32.xlu0 %v1882, 96
  %v1929 = vpop.permute.xlu0 %1928
  %1930 = vrot.lane.b32.xlu0 %v1883, 96
  %v1931 = vpop.permute.xlu0 %1930
  %v1932 = vsel %vm685, %v1901, 0
  %v1934 = vsel %vm685, %v1903, 0
  %v1936 = vsel %vm685, %v1905, 0
  %v1938 = vsel %vm685, %v1907, 0
  %v1940 = vsel %vm685, %v1909, 0
  %v1942 = vsel %vm685, %v1911, 0
  %v1944 = vsel %vm685, %v1913, 0
  %v1946 = vsel %vm685, %v1915, 0
  %v1948 = vsel %vm685, %v1917, 0
  %v1950 = vsel %vm685, %v1919, 0
  %v1952 = vsel %vm685, %v1921, 0
  %v1954 = vsel %vm685, %v1923, 0
  %v1956 = vsel %vm685, %v1925, 0
  %v1958 = vsel %vm685, %v1927, 0
  %v1960 = vsel %vm685, %v1929, 0
  %v1962 = vsel %vm685, %v1931, 0
  %1964 = vmatprep.subr.mxu0 0.0
  %1965 = vmatpush1.msra.mxu0 0.0
  %1966 = vmatprep.subr.mxu0 0.0
  %1967 = vmatpush1.msra.mxu0 0.0
  %1968 = vmatprep.subr.mxu0 0.0
  %1969 = vmatpush1.msra.mxu0 0.0
  %1970 = vmatprep.subr.mxu0 0.0
  %1971 = vmatpush1.msra.mxu0 0.0
  %1972 = vmatprep.subr.mxu0 0.0
  %1973 = vmatpush1.msra.mxu0 0.0
  %1974 = vmatprep.subr.mxu0 0.0
  %1975 = vmatpush1.msra.mxu0 0.0
  %1976 = vmatprep.subr.mxu0 0.0
  %1977 = vmatpush1.msra.mxu0 0.0
  %1978 = vmatprep.subr.mxu0 0.0
  %1979 = vmatpush1.msra.mxu0 0.0
  %1980 = vmatprep.subr.mxu0 0.0
  %1981 = vmatpush1.msra.mxu0 0.0
  %1982 = vmatprep.subr.mxu0 0.0
  %1983 = vmatpush1.msra.mxu0 0.0
  %1984 = vmatprep.subr.mxu0 0.0
  %1985 = vmatpush1.msra.mxu0 0.0
  %1986 = vmatprep.subr.mxu0 0.0
  %1987 = vmatpush1.msra.mxu0 0.0
  %1988 = vmatprep.subr.mxu0 0.0
  %1989 = vmatpush1.msra.mxu0 %v43
  %1990 = vmatprep.subr.mxu0 0.0
  %1991 = vmatpush1.msra.mxu0 %v42
  %1992 = vmatprep.subr.mxu0 0.0
  %1993 = vmatpush1.msra.mxu0 %v41
  %1994 = vmatprep.subr.mxu0 0.0
  %1995 = vmatpush1.msra.mxu0 %v40
  %1996 = vmatprep.subr.mxu0 0.0
  %1997 = vmatpush2.msra.mxu0 0.0
  %1998 = vmatprep.subr.mxu0 0.0
  %1999 = vmatpush2.msra.mxu0 0.0
  %2000 = vmatprep.subr.mxu0 0.0
  %2001 = vmatpush2.msra.mxu0 0.0
  %2002 = vmatprep.subr.mxu0 0.0
  %2003 = vmatpush2.msra.mxu0 0.0
  %2004 = vmatprep.subr.mxu0 0.0
  %2005 = vmatpush2.msra.mxu0 0.0
  %2006 = vmatprep.subr.mxu0 0.0
  %2007 = vmatpush2.msra.mxu0 0.0
  %2008 = vmatprep.subr.mxu0 0.0
  %2009 = vmatpush2.msra.mxu0 0.0
  %2010 = vmatprep.subr.mxu0 0.0
  %2011 = vmatpush2.msra.mxu0 0.0
  %2012 = vmatprep.subr.mxu0 0.0
  %2013 = vmatpush2.msra.mxu0 0.0
  %2014 = vmatprep.subr.mxu0 0.0
  %2015 = vmatpush2.msra.mxu0 0.0
  %2016 = vmatprep.subr.mxu0 0.0
  %2017 = vmatpush2.msra.mxu0 0.0
  %2018 = vmatprep.subr.mxu0 0.0
  %2019 = vmatpush2.msra.mxu0 0.0
  %2020 = vmatprep.subr.mxu0 0.0
  %2021 = vmatpush2.msra.mxu0 0.0
  %2022 = vmatprep.subr.mxu0 0.0
  %2023 = vmatpush2.msra.mxu0 0.0
  %2024 = vmatprep.subr.mxu0 0.0
  %2025 = vmatpush2.msra.mxu0 0.0
  %2026 = vmatprep.subr.mxu0 0.0
  %2027 = vmatpush2.msra.mxu0 0.0
  %2028 = vmatprep.mubr.f32.mxu0 0.0
  %2029 = vmatmul.mubr.f32.gmra.mxu0 %v1932
  %v2030 = vpop.f32.mrf.mxu0
  %v2031 = vadd.f32 0.0, %v2030
  %v2032 = vpop.f32.mrf.mxu0
  %2033 = vmatprep.mubr.f32.mxu0 0.0
  %2034 = vmatmul.mubr.f32.gmra.mxu0 %v1934
  %v2035 = vpop.f32.mrf.mxu0
  %v2036 = vadd.f32 0.0, %v2035
  %v2037 = vpop.f32.mrf.mxu0
  %2038 = vmatprep.mubr.f32.mxu0 0.0
  %2039 = vmatmul.mubr.f32.gmra.mxu0 %v1936
  %v2040 = vpop.f32.mrf.mxu0
  %v2041 = vadd.f32 0.0, %v2040
  %v2042 = vpop.f32.mrf.mxu0
  %2043 = vmatprep.mubr.f32.mxu0 0.0
  %2044 = vmatmul.mubr.f32.gmra.mxu0 %v1938
  %v2045 = vpop.f32.mrf.mxu0
  %v2046 = vadd.f32 0.0, %v2045
  %v2047 = vpop.f32.mrf.mxu0
  %2048 = vmatprep.mubr.f32.mxu0 0.0
  %2049 = vmatmul.mubr.f32.gmra.mxu0 %v1940
  %v2050 = vpop.f32.mrf.mxu0
  %v2051 = vadd.f32 0.0, %v2050
  %v2052 = vpop.f32.mrf.mxu0
  %2053 = vmatprep.mubr.f32.mxu0 0.0
  %2054 = vmatmul.mubr.f32.gmra.mxu0 %v1942
  %v2055 = vpop.f32.mrf.mxu0
  %v2056 = vadd.f32 0.0, %v2055
  %v2057 = vpop.f32.mrf.mxu0
  %2058 = vmatprep.mubr.f32.mxu0 0.0
  %2059 = vmatmul.mubr.f32.gmra.mxu0 %v1944
  %v2060 = vpop.f32.mrf.mxu0
  %v2061 = vadd.f32 0.0, %v2060
  %v2062 = vpop.f32.mrf.mxu0
  %2063 = vmatprep.mubr.f32.mxu0 0.0
  %2064 = vmatmul.mubr.f32.gmra.mxu0 %v1946
  %v2065 = vpop.f32.mrf.mxu0
  %v2066 = vadd.f32 0.0, %v2065
  %v2067 = vpop.f32.mrf.mxu0
  %2068 = vmatprep.mubr.f32.mxu0 0.0
  %2069 = vmatmul.mubr.f32.gmra.mxu0 %v1948
  %v2070 = vpop.f32.mrf.mxu0
  %v2071 = vadd.f32 0.0, %v2070
  %v2072 = vpop.f32.mrf.mxu0
  %2073 = vmatprep.mubr.f32.mxu0 0.0
  %2074 = vmatmul.mubr.f32.gmra.mxu0 %v1950
  %v2075 = vpop.f32.mrf.mxu0
  %v2076 = vadd.f32 0.0, %v2075
  %v2077 = vpop.f32.mrf.mxu0
  %2078 = vmatprep.mubr.f32.mxu0 0.0
  %2079 = vmatmul.mubr.f32.gmra.mxu0 %v1952
  %v2080 = vpop.f32.mrf.mxu0
  %v2081 = vadd.f32 0.0, %v2080
  %v2082 = vpop.f32.mrf.mxu0
  %2083 = vmatprep.mubr.f32.mxu0 0.0
  %2084 = vmatmul.mubr.f32.gmra.mxu0 %v1954
  %v2085 = vpop.f32.mrf.mxu0
  %v2086 = vadd.f32 0.0, %v2085
  %v2087 = vpop.f32.mrf.mxu0
  %2088 = vmatprep.mubr.f32.mxu0 0.0
  %2089 = vmatmul.mubr.f32.gmra.mxu0 %v1956
  %v2090 = vpop.f32.mrf.mxu0
  %v2091 = vadd.f32 0.0, %v2090
  %v2092 = vpop.f32.mrf.mxu0
  %2093 = vmatprep.mubr.f32.mxu0 0.0
  %2094 = vmatmul.mubr.f32.gmra.mxu0 %v1958
  %v2095 = vpop.f32.mrf.mxu0
  %v2096 = vadd.f32 0.0, %v2095
  %v2097 = vpop.f32.mrf.mxu0
  %2098 = vmatprep.mubr.f32.mxu0 0.0
  %2099 = vmatmul.mubr.f32.gmra.mxu0 %v1960
  %v2100 = vpop.f32.mrf.mxu0
  %v2101 = vadd.f32 0.0, %v2100
  %v2102 = vpop.f32.mrf.mxu0
  %2103 = vmatprep.mubr.f32.mxu0 0.0
  %2104 = vmatmul.mubr.f32.gmra.mxu0 %v1962
  %v2105 = vpop.f32.mrf.mxu0
  %v2106 = vadd.f32 0.0, %v2105
  %v2107 = vpop.f32.mrf.mxu0
  %2108 = vdwg.mxu0
  %v2109 = vmax.f32 %v2031, %v2041
  %v2110 = vmax.f32 %v2036, %v2046
  %v2111 = vmax.f32 %v2109, %v2051
  %v2112 = vmax.f32 %v2110, %v2056
  %v2113 = vmax.f32 %v2111, %v2061
  %v2114 = vmax.f32 %v2112, %v2066
  %v2115 = vmax.f32 %v2113, %v2071
  %v2116 = vmax.f32 %v2114, %v2076
  %v2117 = vmax.f32 %v2115, %v2081
  %v2118 = vmax.f32 %v2116, %v2086
  %v2119 = vmax.f32 %v2117, %v2091
  %v2120 = vmax.f32 %v2118, %v2096
  %v2121 = vmax.f32 %v2119, %v2101
  %v2122 = vmax.f32 %v2120, %v2106
  %v2123 = vsub.f32 %v2031, %v2121
  %v2124 = vsub.f32 %v2036, %v2122
  %v2125 = vmul.f32 %v2123, 1.442695
  %v2126 = vpow.pop %v2125
  %v2127 = vmul.f32 %v2124, 1.442695
  %v2128 = vpow.pop %v2127
  %v2129 = vadd.f32 %v2126, 0.0
  %v2130 = vadd.f32 %v2128, 0.0
  %vm2131 = vcmask 64512
  %v2133 = vsel %vm2131, %v2126, 0
  %v2136 = vsel %vm2131, %v2128, 0
  %2138 = vmatprep.subr.mxu0 0.0
  %2139 = vmatpush1.msra.mxu0 0.0
  %2140 = vmatprep.subr.mxu0 0.0
  %2141 = vmatpush1.msra.mxu0 0.0
  %2142 = vmatprep.subr.mxu0 0.0
  %2143 = vmatpush1.msra.mxu0 0.0
  %2144 = vmatprep.subr.mxu0 0.0
  %2145 = vmatpush1.msra.mxu0 0.0
  %2146 = vmatprep.subr.mxu0 0.0
  %2147 = vmatpush1.msra.mxu0 0.0
  %2148 = vmatprep.subr.mxu0 0.0
  %2149 = vmatpush1.msra.mxu0 0.0
  %2150 = vmatprep.subr.mxu0 0.0
  %2151 = vmatpush1.msra.mxu0 0.0
  %2152 = vmatprep.subr.mxu0 0.0
  %2153 = vmatpush1.msra.mxu0 0.0
  %2154 = vmatprep.subr.mxu0 0.0
  %2155 = vmatpush1.msra.mxu0 0.0
  %2156 = vmatprep.subr.mxu0 0.0
  %2157 = vmatpush1.msra.mxu0 0.0
  %2158 = vmatprep.subr.mxu0 0.0
  %2159 = vmatpush1.msra.mxu0 0.0
  %2160 = vmatprep.subr.mxu0 0.0
  %2161 = vmatpush1.msra.mxu0 0.0
  %2162 = vmatprep.subr.mxu0 0.0
  %2163 = vmatpush1.msra.mxu0 0.0
  %2164 = vmatprep.subr.mxu0 0.0
  %2165 = vmatpush1.msra.mxu0 0.0
  %2166 = vmatprep.subr.mxu0 0.0
  %2167 = vmatpush1.msra.mxu0 0.0
  %2168 = vmatprep.subr.mxu0 0.0
  %2169 = vmatpush1.msra.mxu0 %v44
  %2170 = vmatprep.subr.mxu0 0.0
  %2171 = vmatpush2.msra.mxu0 0.0
  %2172 = vmatprep.subr.mxu0 0.0
  %2173 = vmatpush2.msra.mxu0 0.0
  %2174 = vmatprep.subr.mxu0 0.0
  %2175 = vmatpush2.msra.mxu0 0.0
  %2176 = vmatprep.subr.mxu0 0.0
  %2177 = vmatpush2.msra.mxu0 0.0
  %2178 = vmatprep.subr.mxu0 0.0
  %2179 = vmatpush2.msra.mxu0 0.0
  %2180 = vmatprep.subr.mxu0 0.0
  %2181 = vmatpush2.msra.mxu0 0.0
  %2182 = vmatprep.subr.mxu0 0.0
  %2183 = vmatpush2.msra.mxu0 0.0
  %2184 = vmatprep.subr.mxu0 0.0
  %2185 = vmatpush2.msra.mxu0 0.0
  %2186 = vmatprep.subr.mxu0 0.0
  %2187 = vmatpush2.msra.mxu0 0.0
  %2188 = vmatprep.subr.mxu0 0.0
  %2189 = vmatpush2.msra.mxu0 0.0
  %2190 = vmatprep.subr.mxu0 0.0
  %2191 = vmatpush2.msra.mxu0 0.0
  %2192 = vmatprep.subr.mxu0 0.0
  %2193 = vmatpush2.msra.mxu0 0.0
  %2194 = vmatprep.subr.mxu0 0.0
  %2195 = vmatpush2.msra.mxu0 0.0
  %2196 = vmatprep.subr.mxu0 0.0
  %2197 = vmatpush2.msra.mxu0 0.0
  %2198 = vmatprep.subr.mxu0 0.0
  %2199 = vmatpush2.msra.mxu0 0.0
  %2200 = vmatprep.subr.mxu0 0.0
  %2201 = vmatpush2.msra.mxu0 0.0
  %2202 = vmatprep.mubr.f32.mxu0 0.0
  %2203 = vmatmul.mubr.f32.gmra.mxu0 %v2133
  %v2204 = vpop.f32.mrf.mxu0
  %v2205 = vadd.f32 0.0, %v2204
  %v2206 = vpop.f32.mrf.mxu0
  %2207 = vmatprep.mubr.f32.mxu0 0.0
  %2208 = vmatmul.mubr.f32.gmra.mxu0 %v2136
  %v2209 = vpop.f32.mrf.mxu0
  %v2210 = vadd.f32 0.0, %v2209
  %v2211 = vpop.f32.mrf.mxu0
  %2212 = vdwg.mxu0
  %2215 = vrot.lane.b32.xlu0 %v1702, 64
  %v2216 = vpop.permute.xlu0 %2215
  %2217 = vrot.lane.b32.xlu0 %v1707, 64
  %v2218 = vpop.permute.xlu0 %2217
  %v2221 = vmul.f32 %v2205, %v2216
  %v2222 = vmul.f32 %v2210, %v2218
  %v2223 = vadd.f32 %v2221, 0.0
  %v2224 = vadd.f32 %v2222, 0.0
  %v2225 = vsub.f32 %v2041, %v2121
  %v2226 = vsub.f32 %v2046, %v2122
  %v2227 = vmul.f32 %v2225, 1.442695
  %v2228 = vpow.pop %v2227
  %v2229 = vmul.f32 %v2226, 1.442695
  %v2230 = vpow.pop %v2229
  %v2231 = vadd.f32 %v2129, %v2228
  %v2232 = vadd.f32 %v2130, %v2230
  %v2234 = vsel %vm2131, %v2228, 0
  %v2237 = vsel %vm2131, %v2230, 0
  %2239 = vmatprep.subr.mxu0 0.0
  %2240 = vmatpush1.msra.mxu0 0.0
  %2241 = vmatprep.subr.mxu0 0.0
  %2242 = vmatpush1.msra.mxu0 0.0
  %2243 = vmatprep.subr.mxu0 0.0
  %2244 = vmatpush1.msra.mxu0 0.0
  %2245 = vmatprep.subr.mxu0 0.0
  %2246 = vmatpush1.msra.mxu0 0.0
  %2247 = vmatprep.subr.mxu0 0.0
  %2248 = vmatpush1.msra.mxu0 0.0
  %2249 = vmatprep.subr.mxu0 0.0
  %2250 = vmatpush1.msra.mxu0 0.0
  %2251 = vmatprep.subr.mxu0 0.0
  %2252 = vmatpush1.msra.mxu0 0.0
  %2253 = vmatprep.subr.mxu0 0.0
  %2254 = vmatpush1.msra.mxu0 0.0
  %2255 = vmatprep.subr.mxu0 0.0
  %2256 = vmatpush1.msra.mxu0 0.0
  %2257 = vmatprep.subr.mxu0 0.0
  %2258 = vmatpush1.msra.mxu0 0.0
  %2259 = vmatprep.subr.mxu0 0.0
  %2260 = vmatpush1.msra.mxu0 0.0
  %2261 = vmatprep.subr.mxu0 0.0
  %2262 = vmatpush1.msra.mxu0 0.0
  %2263 = vmatprep.subr.mxu0 0.0
  %2264 = vmatpush1.msra.mxu0 0.0
  %2265 = vmatprep.subr.mxu0 0.0
  %2266 = vmatpush1.msra.mxu0 0.0
  %2267 = vmatprep.subr.mxu0 0.0
  %2268 = vmatpush1.msra.mxu0 0.0
  %2269 = vmatprep.subr.mxu0 0.0
  %2270 = vmatpush1.msra.mxu0 %v44
  %2271 = vmatprep.subr.mxu0 0.0
  %2272 = vmatpush2.msra.mxu0 0.0
  %2273 = vmatprep.subr.mxu0 0.0
  %2274 = vmatpush2.msra.mxu0 0.0
  %2275 = vmatprep.subr.mxu0 0.0
  %2276 = vmatpush2.msra.mxu0 0.0
  %2277 = vmatprep.subr.mxu0 0.0
  %2278 = vmatpush2.msra.mxu0 0.0
  %2279 = vmatprep.subr.mxu0 0.0
  %2280 = vmatpush2.msra.mxu0 0.0
  %2281 = vmatprep.subr.mxu0 0.0
  %2282 = vmatpush2.msra.mxu0 0.0
  %2283 = vmatprep.subr.mxu0 0.0
  %2284 = vmatpush2.msra.mxu0 0.0
  %2285 = vmatprep.subr.mxu0 0.0
  %2286 = vmatpush2.msra.mxu0 0.0
  %2287 = vmatprep.subr.mxu0 0.0
  %2288 = vmatpush2.msra.mxu0 0.0
  %2289 = vmatprep.subr.mxu0 0.0
  %2290 = vmatpush2.msra.mxu0 0.0
  %2291 = vmatprep.subr.mxu0 0.0
  %2292 = vmatpush2.msra.mxu0 0.0
  %2293 = vmatprep.subr.mxu0 0.0
  %2294 = vmatpush2.msra.mxu0 0.0
  %2295 = vmatprep.subr.mxu0 0.0
  %2296 = vmatpush2.msra.mxu0 0.0
  %2297 = vmatprep.subr.mxu0 0.0
  %2298 = vmatpush2.msra.mxu0 0.0
  %2299 = vmatprep.subr.mxu0 0.0
  %2300 = vmatpush2.msra.mxu0 0.0
  %2301 = vmatprep.subr.mxu0 0.0
  %2302 = vmatpush2.msra.mxu0 0.0
  %2303 = vmatprep.mubr.f32.mxu0 0.0
  %2304 = vmatmul.mubr.f32.gmra.mxu0 %v2234
  %v2305 = vpop.f32.mrf.mxu0
  %v2306 = vadd.f32 0.0, %v2305
  %v2307 = vpop.f32.mrf.mxu0
  %2308 = vmatprep.mubr.f32.mxu0 0.0
  %2309 = vmatmul.mubr.f32.gmra.mxu0 %v2237
  %v2310 = vpop.f32.mrf.mxu0
  %v2311 = vadd.f32 0.0, %v2310
  %v2312 = vpop.f32.mrf.mxu0
  %2313 = vdwg.mxu0
  %2316 = vrot.lane.b32.xlu0 %v1712, 64
  %v2317 = vpop.permute.xlu0 %2316
  %2318 = vrot.lane.b32.xlu0 %v1717, 64
  %v2319 = vpop.permute.xlu0 %2318
  %v2322 = vmul.f32 %v2306, %v2317
  %v2323 = vmul.f32 %v2311, %v2319
  %v2324 = vadd.f32 %v2223, %v2322
  %v2325 = vadd.f32 %v2224, %v2323
  %v2326 = vsub.f32 %v2051, %v2121
  %v2327 = vsub.f32 %v2056, %v2122
  %v2328 = vmul.f32 %v2326, 1.442695
  %v2329 = vpow.pop %v2328
  %v2330 = vmul.f32 %v2327, 1.442695
  %v2331 = vpow.pop %v2330
  %v2332 = vadd.f32 %v2231, %v2329
  %v2333 = vadd.f32 %v2232, %v2331
  %v2335 = vsel %vm2131, %v2329, 0
  %v2338 = vsel %vm2131, %v2331, 0
  %2340 = vmatprep.subr.mxu0 0.0
  %2341 = vmatpush1.msra.mxu0 0.0
  %2342 = vmatprep.subr.mxu0 0.0
  %2343 = vmatpush1.msra.mxu0 0.0
  %2344 = vmatprep.subr.mxu0 0.0
  %2345 = vmatpush1.msra.mxu0 0.0
  %2346 = vmatprep.subr.mxu0 0.0
  %2347 = vmatpush1.msra.mxu0 0.0
  %2348 = vmatprep.subr.mxu0 0.0
  %2349 = vmatpush1.msra.mxu0 0.0
  %2350 = vmatprep.subr.mxu0 0.0
  %2351 = vmatpush1.msra.mxu0 0.0
  %2352 = vmatprep.subr.mxu0 0.0
  %2353 = vmatpush1.msra.mxu0 0.0
  %2354 = vmatprep.subr.mxu0 0.0
  %2355 = vmatpush1.msra.mxu0 0.0
  %2356 = vmatprep.subr.mxu0 0.0
  %2357 = vmatpush1.msra.mxu0 0.0
  %2358 = vmatprep.subr.mxu0 0.0
  %2359 = vmatpush1.msra.mxu0 0.0
  %2360 = vmatprep.subr.mxu0 0.0
  %2361 = vmatpush1.msra.mxu0 0.0
  %2362 = vmatprep.subr.mxu0 0.0
  %2363 = vmatpush1.msra.mxu0 0.0
  %2364 = vmatprep.subr.mxu0 0.0
  %2365 = vmatpush1.msra.mxu0 0.0
  %2366 = vmatprep.subr.mxu0 0.0
  %2367 = vmatpush1.msra.mxu0 0.0
  %2368 = vmatprep.subr.mxu0 0.0
  %2369 = vmatpush1.msra.mxu0 0.0
  %2370 = vmatprep.subr.mxu0 0.0
  %2371 = vmatpush1.msra.mxu0 %v44
  %2372 = vmatprep.subr.mxu0 0.0
  %2373 = vmatpush2.msra.mxu0 0.0
  %2374 = vmatprep.subr.mxu0 0.0
  %2375 = vmatpush2.msra.mxu0 0.0
  %2376 = vmatprep.subr.mxu0 0.0
  %2377 = vmatpush2.msra.mxu0 0.0
  %2378 = vmatprep.subr.mxu0 0.0
  %2379 = vmatpush2.msra.mxu0 0.0
  %2380 = vmatprep.subr.mxu0 0.0
  %2381 = vmatpush2.msra.mxu0 0.0
  %2382 = vmatprep.subr.mxu0 0.0
  %2383 = vmatpush2.msra.mxu0 0.0
  %2384 = vmatprep.subr.mxu0 0.0
  %2385 = vmatpush2.msra.mxu0 0.0
  %2386 = vmatprep.subr.mxu0 0.0
  %2387 = vmatpush2.msra.mxu0 0.0
  %2388 = vmatprep.subr.mxu0 0.0
  %2389 = vmatpush2.msra.mxu0 0.0
  %2390 = vmatprep.subr.mxu0 0.0
  %2391 = vmatpush2.msra.mxu0 0.0
  %2392 = vmatprep.subr.mxu0 0.0
  %2393 = vmatpush2.msra.mxu0 0.0
  %2394 = vmatprep.subr.mxu0 0.0
  %2395 = vmatpush2.msra.mxu0 0.0
  %2396 = vmatprep.subr.mxu0 0.0
  %2397 = vmatpush2.msra.mxu0 0.0
  %2398 = vmatprep.subr.mxu0 0.0
  %2399 = vmatpush2.msra.mxu0 0.0
  %2400 = vmatprep.subr.mxu0 0.0
  %2401 = vmatpush2.msra.mxu0 0.0
  %2402 = vmatprep.subr.mxu0 0.0
  %2403 = vmatpush2.msra.mxu0 0.0
  %2404 = vmatprep.mubr.f32.mxu0 0.0
  %2405 = vmatmul.mubr.f32.gmra.mxu0 %v2335
  %v2406 = vpop.f32.mrf.mxu0
  %v2407 = vadd.f32 0.0, %v2406
  %v2408 = vpop.f32.mrf.mxu0
  %2409 = vmatprep.mubr.f32.mxu0 0.0
  %2410 = vmatmul.mubr.f32.gmra.mxu0 %v2338
  %v2411 = vpop.f32.mrf.mxu0
  %v2412 = vadd.f32 0.0, %v2411
  %v2413 = vpop.f32.mrf.mxu0
  %2414 = vdwg.mxu0
  %2417 = vrot.lane.b32.xlu0 %v1722, 64
  %v2418 = vpop.permute.xlu0 %2417
  %2419 = vrot.lane.b32.xlu0 %v1727, 64
  %v2420 = vpop.permute.xlu0 %2419
  %v2423 = vmul.f32 %v2407, %v2418
  %v2424 = vmul.f32 %v2412, %v2420
  %v2425 = vadd.f32 %v2324, %v2423
  %v2426 = vadd.f32 %v2325, %v2424
  %v2427 = vsub.f32 %v2061, %v2121
  %v2428 = vsub.f32 %v2066, %v2122
  %v2429 = vmul.f32 %v2427, 1.442695
  %v2430 = vpow.pop %v2429
  %v2431 = vmul.f32 %v2428, 1.442695
  %v2432 = vpow.pop %v2431
  %v2433 = vadd.f32 %v2332, %v2430
  %v2434 = vadd.f32 %v2333, %v2432
  %v2436 = vsel %vm2131, %v2430, 0
  %v2439 = vsel %vm2131, %v2432, 0
  %2441 = vmatprep.subr.mxu0 0.0
  %2442 = vmatpush1.msra.mxu0 0.0
  %2443 = vmatprep.subr.mxu0 0.0
  %2444 = vmatpush1.msra.mxu0 0.0
  %2445 = vmatprep.subr.mxu0 0.0
  %2446 = vmatpush1.msra.mxu0 0.0
  %2447 = vmatprep.subr.mxu0 0.0
  %2448 = vmatpush1.msra.mxu0 0.0
  %2449 = vmatprep.subr.mxu0 0.0
  %2450 = vmatpush1.msra.mxu0 0.0
  %2451 = vmatprep.subr.mxu0 0.0
  %2452 = vmatpush1.msra.mxu0 0.0
  %2453 = vmatprep.subr.mxu0 0.0
  %2454 = vmatpush1.msra.mxu0 0.0
  %2455 = vmatprep.subr.mxu0 0.0
  %2456 = vmatpush1.msra.mxu0 0.0
  %2457 = vmatprep.subr.mxu0 0.0
  %2458 = vmatpush1.msra.mxu0 0.0
  %2459 = vmatprep.subr.mxu0 0.0
  %2460 = vmatpush1.msra.mxu0 0.0
  %2461 = vmatprep.subr.mxu0 0.0
  %2462 = vmatpush1.msra.mxu0 0.0
  %2463 = vmatprep.subr.mxu0 0.0
  %2464 = vmatpush1.msra.mxu0 0.0
  %2465 = vmatprep.subr.mxu0 0.0
  %2466 = vmatpush1.msra.mxu0 0.0
  %2467 = vmatprep.subr.mxu0 0.0
  %2468 = vmatpush1.msra.mxu0 0.0
  %2469 = vmatprep.subr.mxu0 0.0
  %2470 = vmatpush1.msra.mxu0 0.0
  %2471 = vmatprep.subr.mxu0 0.0
  %2472 = vmatpush1.msra.mxu0 %v44
  %2473 = vmatprep.subr.mxu0 0.0
  %2474 = vmatpush2.msra.mxu0 0.0
  %2475 = vmatprep.subr.mxu0 0.0
  %2476 = vmatpush2.msra.mxu0 0.0
  %2477 = vmatprep.subr.mxu0 0.0
  %2478 = vmatpush2.msra.mxu0 0.0
  %2479 = vmatprep.subr.mxu0 0.0
  %2480 = vmatpush2.msra.mxu0 0.0
  %2481 = vmatprep.subr.mxu0 0.0
  %2482 = vmatpush2.msra.mxu0 0.0
  %2483 = vmatprep.subr.mxu0 0.0
  %2484 = vmatpush2.msra.mxu0 0.0
  %2485 = vmatprep.subr.mxu0 0.0
  %2486 = vmatpush2.msra.mxu0 0.0
  %2487 = vmatprep.subr.mxu0 0.0
  %2488 = vmatpush2.msra.mxu0 0.0
  %2489 = vmatprep.subr.mxu0 0.0
  %2490 = vmatpush2.msra.mxu0 0.0
  %2491 = vmatprep.subr.mxu0 0.0
  %2492 = vmatpush2.msra.mxu0 0.0
  %2493 = vmatprep.subr.mxu0 0.0
  %2494 = vmatpush2.msra.mxu0 0.0
  %2495 = vmatprep.subr.mxu0 0.0
  %2496 = vmatpush2.msra.mxu0 0.0
  %2497 = vmatprep.subr.mxu0 0.0
  %2498 = vmatpush2.msra.mxu0 0.0
  %2499 = vmatprep.subr.mxu0 0.0
  %2500 = vmatpush2.msra.mxu0 0.0
  %2501 = vmatprep.subr.mxu0 0.0
  %2502 = vmatpush2.msra.mxu0 0.0
  %2503 = vmatprep.subr.mxu0 0.0
  %2504 = vmatpush2.msra.mxu0 0.0
  %2505 = vmatprep.mubr.f32.mxu0 0.0
  %2506 = vmatmul.mubr.f32.gmra.mxu0 %v2436
  %v2507 = vpop.f32.mrf.mxu0
  %v2508 = vadd.f32 0.0, %v2507
  %v2509 = vpop.f32.mrf.mxu0
  %2510 = vmatprep.mubr.f32.mxu0 0.0
  %2511 = vmatmul.mubr.f32.gmra.mxu0 %v2439
  %v2512 = vpop.f32.mrf.mxu0
  %v2513 = vadd.f32 0.0, %v2512
  %v2514 = vpop.f32.mrf.mxu0
  %2515 = vdwg.mxu0
  %2518 = vrot.lane.b32.xlu0 %v1732, 64
  %v2519 = vpop.permute.xlu0 %2518
  %2520 = vrot.lane.b32.xlu0 %v1737, 64
  %v2521 = vpop.permute.xlu0 %2520
  %v2524 = vmul.f32 %v2508, %v2519
  %v2525 = vmul.f32 %v2513, %v2521
  %v2526 = vadd.f32 %v2425, %v2524
  %v2527 = vadd.f32 %v2426, %v2525
  %v2528 = vsub.f32 %v2071, %v2121
  %v2529 = vsub.f32 %v2076, %v2122
  %v2530 = vmul.f32 %v2528, 1.442695
  %v2531 = vpow.pop %v2530
  %v2532 = vmul.f32 %v2529, 1.442695
  %v2533 = vpow.pop %v2532
  %v2534 = vadd.f32 %v2433, %v2531
  %v2535 = vadd.f32 %v2434, %v2533
  %v2537 = vsel %vm2131, %v2531, 0
  %v2540 = vsel %vm2131, %v2533, 0
  %2542 = vmatprep.subr.mxu0 0.0
  %2543 = vmatpush1.msra.mxu0 0.0
  %2544 = vmatprep.subr.mxu0 0.0
  %2545 = vmatpush1.msra.mxu0 0.0
  %2546 = vmatprep.subr.mxu0 0.0
  %2547 = vmatpush1.msra.mxu0 0.0
  %2548 = vmatprep.subr.mxu0 0.0
  %2549 = vmatpush1.msra.mxu0 0.0
  %2550 = vmatprep.subr.mxu0 0.0
  %2551 = vmatpush1.msra.mxu0 0.0
  %2552 = vmatprep.subr.mxu0 0.0
  %2553 = vmatpush1.msra.mxu0 0.0
  %2554 = vmatprep.subr.mxu0 0.0
  %2555 = vmatpush1.msra.mxu0 0.0
  %2556 = vmatprep.subr.mxu0 0.0
  %2557 = vmatpush1.msra.mxu0 0.0
  %2558 = vmatprep.subr.mxu0 0.0
  %2559 = vmatpush1.msra.mxu0 0.0
  %2560 = vmatprep.subr.mxu0 0.0
  %2561 = vmatpush1.msra.mxu0 0.0
  %2562 = vmatprep.subr.mxu0 0.0
  %2563 = vmatpush1.msra.mxu0 0.0
  %2564 = vmatprep.subr.mxu0 0.0
  %2565 = vmatpush1.msra.mxu0 0.0
  %2566 = vmatprep.subr.mxu0 0.0
  %2567 = vmatpush1.msra.mxu0 0.0
  %2568 = vmatprep.subr.mxu0 0.0
  %2569 = vmatpush1.msra.mxu0 0.0
  %2570 = vmatprep.subr.mxu0 0.0
  %2571 = vmatpush1.msra.mxu0 0.0
  %2572 = vmatprep.subr.mxu0 0.0
  %2573 = vmatpush1.msra.mxu0 %v44
  %2574 = vmatprep.subr.mxu0 0.0
  %2575 = vmatpush2.msra.mxu0 0.0
  %2576 = vmatprep.subr.mxu0 0.0
  %2577 = vmatpush2.msra.mxu0 0.0
  %2578 = vmatprep.subr.mxu0 0.0
  %2579 = vmatpush2.msra.mxu0 0.0
  %2580 = vmatprep.subr.mxu0 0.0
  %2581 = vmatpush2.msra.mxu0 0.0
  %2582 = vmatprep.subr.mxu0 0.0
  %2583 = vmatpush2.msra.mxu0 0.0
  %2584 = vmatprep.subr.mxu0 0.0
  %2585 = vmatpush2.msra.mxu0 0.0
  %2586 = vmatprep.subr.mxu0 0.0
  %2587 = vmatpush2.msra.mxu0 0.0
  %2588 = vmatprep.subr.mxu0 0.0
  %2589 = vmatpush2.msra.mxu0 0.0
  %2590 = vmatprep.subr.mxu0 0.0
  %2591 = vmatpush2.msra.mxu0 0.0
  %2592 = vmatprep.subr.mxu0 0.0
  %2593 = vmatpush2.msra.mxu0 0.0
  %2594 = vmatprep.subr.mxu0 0.0
  %2595 = vmatpush2.msra.mxu0 0.0
  %2596 = vmatprep.subr.mxu0 0.0
  %2597 = vmatpush2.msra.mxu0 0.0
  %2598 = vmatprep.subr.mxu0 0.0
  %2599 = vmatpush2.msra.mxu0 0.0
  %2600 = vmatprep.subr.mxu0 0.0
  %2601 = vmatpush2.msra.mxu0 0.0
  %2602 = vmatprep.subr.mxu0 0.0
  %2603 = vmatpush2.msra.mxu0 0.0
  %2604 = vmatprep.subr.mxu0 0.0
  %2605 = vmatpush2.msra.mxu0 0.0
  %2606 = vmatprep.mubr.f32.mxu0 0.0
  %2607 = vmatmul.mubr.f32.gmra.mxu0 %v2537
  %v2608 = vpop.f32.mrf.mxu0
  %v2609 = vadd.f32 0.0, %v2608
  %v2610 = vpop.f32.mrf.mxu0
  %2611 = vmatprep.mubr.f32.mxu0 0.0
  %2612 = vmatmul.mubr.f32.gmra.mxu0 %v2540
  %v2613 = vpop.f32.mrf.mxu0
  %v2614 = vadd.f32 0.0, %v2613
  %v2615 = vpop.f32.mrf.mxu0
  %2616 = vdwg.mxu0
  %2619 = vrot.lane.b32.xlu0 %v1742, 64
  %v2620 = vpop.permute.xlu0 %2619
  %2621 = vrot.lane.b32.xlu0 %v1747, 64
  %v2622 = vpop.permute.xlu0 %2621
  %v2625 = vmul.f32 %v2609, %v2620
  %v2626 = vmul.f32 %v2614, %v2622
  %v2627 = vadd.f32 %v2526, %v2625
  %v2628 = vadd.f32 %v2527, %v2626
  %v2629 = vsub.f32 %v2081, %v2121
  %v2630 = vsub.f32 %v2086, %v2122
  %v2631 = vmul.f32 %v2629, 1.442695
  %v2632 = vpow.pop %v2631
  %v2633 = vmul.f32 %v2630, 1.442695
  %v2634 = vpow.pop %v2633
  %v2635 = vadd.f32 %v2534, %v2632
  %v2636 = vadd.f32 %v2535, %v2634
  %v2638 = vsel %vm2131, %v2632, 0
  %v2641 = vsel %vm2131, %v2634, 0
  %2643 = vmatprep.subr.mxu0 0.0
  %2644 = vmatpush1.msra.mxu0 0.0
  %2645 = vmatprep.subr.mxu0 0.0
  %2646 = vmatpush1.msra.mxu0 0.0
  %2647 = vmatprep.subr.mxu0 0.0
  %2648 = vmatpush1.msra.mxu0 0.0
  %2649 = vmatprep.subr.mxu0 0.0
  %2650 = vmatpush1.msra.mxu0 0.0
  %2651 = vmatprep.subr.mxu0 0.0
  %2652 = vmatpush1.msra.mxu0 0.0
  %2653 = vmatprep.subr.mxu0 0.0
  %2654 = vmatpush1.msra.mxu0 0.0
  %2655 = vmatprep.subr.mxu0 0.0
  %2656 = vmatpush1.msra.mxu0 0.0
  %2657 = vmatprep.subr.mxu0 0.0
  %2658 = vmatpush1.msra.mxu0 0.0
  %2659 = vmatprep.subr.mxu0 0.0
  %2660 = vmatpush1.msra.mxu0 0.0
  %2661 = vmatprep.subr.mxu0 0.0
  %2662 = vmatpush1.msra.mxu0 0.0
  %2663 = vmatprep.subr.mxu0 0.0
  %2664 = vmatpush1.msra.mxu0 0.0
  %2665 = vmatprep.subr.mxu0 0.0
  %2666 = vmatpush1.msra.mxu0 0.0
  %2667 = vmatprep.subr.mxu0 0.0
  %2668 = vmatpush1.msra.mxu0 0.0
  %2669 = vmatprep.subr.mxu0 0.0
  %2670 = vmatpush1.msra.mxu0 0.0
  %2671 = vmatprep.subr.mxu0 0.0
  %2672 = vmatpush1.msra.mxu0 0.0
  %2673 = vmatprep.subr.mxu0 0.0
  %2674 = vmatpush1.msra.mxu0 %v44
  %2675 = vmatprep.subr.mxu0 0.0
  %2676 = vmatpush2.msra.mxu0 0.0
  %2677 = vmatprep.subr.mxu0 0.0
  %2678 = vmatpush2.msra.mxu0 0.0
  %2679 = vmatprep.subr.mxu0 0.0
  %2680 = vmatpush2.msra.mxu0 0.0
  %2681 = vmatprep.subr.mxu0 0.0
  %2682 = vmatpush2.msra.mxu0 0.0
  %2683 = vmatprep.subr.mxu0 0.0
  %2684 = vmatpush2.msra.mxu0 0.0
  %2685 = vmatprep.subr.mxu0 0.0
  %2686 = vmatpush2.msra.mxu0 0.0
  %2687 = vmatprep.subr.mxu0 0.0
  %2688 = vmatpush2.msra.mxu0 0.0
  %2689 = vmatprep.subr.mxu0 0.0
  %2690 = vmatpush2.msra.mxu0 0.0
  %2691 = vmatprep.subr.mxu0 0.0
  %2692 = vmatpush2.msra.mxu0 0.0
  %2693 = vmatprep.subr.mxu0 0.0
  %2694 = vmatpush2.msra.mxu0 0.0
  %2695 = vmatprep.subr.mxu0 0.0
  %2696 = vmatpush2.msra.mxu0 0.0
  %2697 = vmatprep.subr.mxu0 0.0
  %2698 = vmatpush2.msra.mxu0 0.0
  %2699 = vmatprep.subr.mxu0 0.0
  %2700 = vmatpush2.msra.mxu0 0.0
  %2701 = vmatprep.subr.mxu0 0.0
  %2702 = vmatpush2.msra.mxu0 0.0
  %2703 = vmatprep.subr.mxu0 0.0
  %2704 = vmatpush2.msra.mxu0 0.0
  %2705 = vmatprep.subr.mxu0 0.0
  %2706 = vmatpush2.msra.mxu0 0.0
  %2707 = vmatprep.mubr.f32.mxu0 0.0
  %2708 = vmatmul.mubr.f32.gmra.mxu0 %v2638
  %v2709 = vpop.f32.mrf.mxu0
  %v2710 = vadd.f32 0.0, %v2709
  %v2711 = vpop.f32.mrf.mxu0
  %2712 = vmatprep.mubr.f32.mxu0 0.0
  %2713 = vmatmul.mubr.f32.gmra.mxu0 %v2641
  %v2714 = vpop.f32.mrf.mxu0
  %v2715 = vadd.f32 0.0, %v2714
  %v2716 = vpop.f32.mrf.mxu0
  %2717 = vdwg.mxu0
  %2720 = vrot.lane.b32.xlu0 %v1752, 64
  %v2721 = vpop.permute.xlu0 %2720
  %2722 = vrot.lane.b32.xlu0 %v1757, 64
  %v2723 = vpop.permute.xlu0 %2722
  %v2726 = vmul.f32 %v2710, %v2721
  %v2727 = vmul.f32 %v2715, %v2723
  %v2728 = vadd.f32 %v2627, %v2726
  %v2729 = vadd.f32 %v2628, %v2727
  %v2730 = vsub.f32 %v2091, %v2121
  %v2731 = vsub.f32 %v2096, %v2122
  %v2732 = vmul.f32 %v2730, 1.442695
  %v2733 = vpow.pop %v2732
  %v2734 = vmul.f32 %v2731, 1.442695
  %v2735 = vpow.pop %v2734
  %v2736 = vadd.f32 %v2635, %v2733
  %v2737 = vadd.f32 %v2636, %v2735
  %v2739 = vsel %vm2131, %v2733, 0
  %v2742 = vsel %vm2131, %v2735, 0
  %2744 = vmatprep.subr.mxu0 0.0
  %2745 = vmatpush1.msra.mxu0 0.0
  %2746 = vmatprep.subr.mxu0 0.0
  %2747 = vmatpush1.msra.mxu0 0.0
  %2748 = vmatprep.subr.mxu0 0.0
  %2749 = vmatpush1.msra.mxu0 0.0
  %2750 = vmatprep.subr.mxu0 0.0
  %2751 = vmatpush1.msra.mxu0 0.0
  %2752 = vmatprep.subr.mxu0 0.0
  %2753 = vmatpush1.msra.mxu0 0.0
  %2754 = vmatprep.subr.mxu0 0.0
  %2755 = vmatpush1.msra.mxu0 0.0
  %2756 = vmatprep.subr.mxu0 0.0
  %2757 = vmatpush1.msra.mxu0 0.0
  %2758 = vmatprep.subr.mxu0 0.0
  %2759 = vmatpush1.msra.mxu0 0.0
  %2760 = vmatprep.subr.mxu0 0.0
  %2761 = vmatpush1.msra.mxu0 0.0
  %2762 = vmatprep.subr.mxu0 0.0
  %2763 = vmatpush1.msra.mxu0 0.0
  %2764 = vmatprep.subr.mxu0 0.0
  %2765 = vmatpush1.msra.mxu0 0.0
  %2766 = vmatprep.subr.mxu0 0.0
  %2767 = vmatpush1.msra.mxu0 0.0
  %2768 = vmatprep.subr.mxu0 0.0
  %2769 = vmatpush1.msra.mxu0 0.0
  %2770 = vmatprep.subr.mxu0 0.0
  %2771 = vmatpush1.msra.mxu0 0.0
  %2772 = vmatprep.subr.mxu0 0.0
  %2773 = vmatpush1.msra.mxu0 0.0
  %2774 = vmatprep.subr.mxu0 0.0
  %2775 = vmatpush1.msra.mxu0 %v44
  %2776 = vmatprep.subr.mxu0 0.0
  %2777 = vmatpush2.msra.mxu0 0.0
  %2778 = vmatprep.subr.mxu0 0.0
  %2779 = vmatpush2.msra.mxu0 0.0
  %2780 = vmatprep.subr.mxu0 0.0
  %2781 = vmatpush2.msra.mxu0 0.0
  %2782 = vmatprep.subr.mxu0 0.0
  %2783 = vmatpush2.msra.mxu0 0.0
  %2784 = vmatprep.subr.mxu0 0.0
  %2785 = vmatpush2.msra.mxu0 0.0
  %2786 = vmatprep.subr.mxu0 0.0
  %2787 = vmatpush2.msra.mxu0 0.0
  %2788 = vmatprep.subr.mxu0 0.0
  %2789 = vmatpush2.msra.mxu0 0.0
  %2790 = vmatprep.subr.mxu0 0.0
  %2791 = vmatpush2.msra.mxu0 0.0
  %2792 = vmatprep.subr.mxu0 0.0
  %2793 = vmatpush2.msra.mxu0 0.0
  %2794 = vmatprep.subr.mxu0 0.0
  %2795 = vmatpush2.msra.mxu0 0.0
  %2796 = vmatprep.subr.mxu0 0.0
  %2797 = vmatpush2.msra.mxu0 0.0
  %2798 = vmatprep.subr.mxu0 0.0
  %2799 = vmatpush2.msra.mxu0 0.0
  %2800 = vmatprep.subr.mxu0 0.0
  %2801 = vmatpush2.msra.mxu0 0.0
  %2802 = vmatprep.subr.mxu0 0.0
  %2803 = vmatpush2.msra.mxu0 0.0
  %2804 = vmatprep.subr.mxu0 0.0
  %2805 = vmatpush2.msra.mxu0 0.0
  %2806 = vmatprep.subr.mxu0 0.0
  %2807 = vmatpush2.msra.mxu0 0.0
  %2808 = vmatprep.mubr.f32.mxu0 0.0
  %2809 = vmatmul.mubr.f32.gmra.mxu0 %v2739
  %v2810 = vpop.f32.mrf.mxu0
  %v2811 = vadd.f32 0.0, %v2810
  %v2812 = vpop.f32.mrf.mxu0
  %2813 = vmatprep.mubr.f32.mxu0 0.0
  %2814 = vmatmul.mubr.f32.gmra.mxu0 %v2742
  %v2815 = vpop.f32.mrf.mxu0
  %v2816 = vadd.f32 0.0, %v2815
  %v2817 = vpop.f32.mrf.mxu0
  %2818 = vdwg.mxu0
  %2821 = vrot.lane.b32.xlu0 %v1762, 64
  %v2822 = vpop.permute.xlu0 %2821
  %2823 = vrot.lane.b32.xlu0 %v1767, 64
  %v2824 = vpop.permute.xlu0 %2823
  %v2827 = vmul.f32 %v2811, %v2822
  %v2828 = vmul.f32 %v2816, %v2824
  %v2829 = vadd.f32 %v2728, %v2827
  %v2830 = vadd.f32 %v2729, %v2828
  %v2831 = vsub.f32 %v2101, %v2121
  %v2832 = vsub.f32 %v2106, %v2122
  %v2833 = vmul.f32 %v2831, 1.442695
  %v2834 = vpow.pop %v2833
  %v2835 = vmul.f32 %v2832, 1.442695
  %v2836 = vpow.pop %v2835
  %v2837 = vadd.f32 %v2736, %v2834
  %v2838 = vadd.f32 %v2737, %v2836
  %v2840 = vsel %vm2131, %v2834, 0
  %v2843 = vsel %vm2131, %v2836, 0
  %2845 = vmatprep.subr.mxu0 0.0
  %2846 = vmatpush1.msra.mxu0 0.0
  %2847 = vmatprep.subr.mxu0 0.0
  %2848 = vmatpush1.msra.mxu0 0.0
  %2849 = vmatprep.subr.mxu0 0.0
  %2850 = vmatpush1.msra.mxu0 0.0
  %2851 = vmatprep.subr.mxu0 0.0
  %2852 = vmatpush1.msra.mxu0 0.0
  %2853 = vmatprep.subr.mxu0 0.0
  %2854 = vmatpush1.msra.mxu0 0.0
  %2855 = vmatprep.subr.mxu0 0.0
  %2856 = vmatpush1.msra.mxu0 0.0
  %2857 = vmatprep.subr.mxu0 0.0
  %2858 = vmatpush1.msra.mxu0 0.0
  %2859 = vmatprep.subr.mxu0 0.0
  %2860 = vmatpush1.msra.mxu0 0.0
  %2861 = vmatprep.subr.mxu0 0.0
  %2862 = vmatpush1.msra.mxu0 0.0
  %2863 = vmatprep.subr.mxu0 0.0
  %2864 = vmatpush1.msra.mxu0 0.0
  %2865 = vmatprep.subr.mxu0 0.0
  %2866 = vmatpush1.msra.mxu0 0.0
  %2867 = vmatprep.subr.mxu0 0.0
  %2868 = vmatpush1.msra.mxu0 0.0
  %2869 = vmatprep.subr.mxu0 0.0
  %2870 = vmatpush1.msra.mxu0 0.0
  %2871 = vmatprep.subr.mxu0 0.0
  %2872 = vmatpush1.msra.mxu0 0.0
  %2873 = vmatprep.subr.mxu0 0.0
  %2874 = vmatpush1.msra.mxu0 0.0
  %2875 = vmatprep.subr.mxu0 0.0
  %2876 = vmatpush1.msra.mxu0 %v44
  %2877 = vmatprep.subr.mxu0 0.0
  %2878 = vmatpush2.msra.mxu0 0.0
  %2879 = vmatprep.subr.mxu0 0.0
  %2880 = vmatpush2.msra.mxu0 0.0
  %2881 = vmatprep.subr.mxu0 0.0
  %2882 = vmatpush2.msra.mxu0 0.0
  %2883 = vmatprep.subr.mxu0 0.0
  %2884 = vmatpush2.msra.mxu0 0.0
  %2885 = vmatprep.subr.mxu0 0.0
  %2886 = vmatpush2.msra.mxu0 0.0
  %2887 = vmatprep.subr.mxu0 0.0
  %2888 = vmatpush2.msra.mxu0 0.0
  %2889 = vmatprep.subr.mxu0 0.0
  %2890 = vmatpush2.msra.mxu0 0.0
  %2891 = vmatprep.subr.mxu0 0.0
  %2892 = vmatpush2.msra.mxu0 0.0
  %2893 = vmatprep.subr.mxu0 0.0
  %2894 = vmatpush2.msra.mxu0 0.0
  %2895 = vmatprep.subr.mxu0 0.0
  %2896 = vmatpush2.msra.mxu0 0.0
  %2897 = vmatprep.subr.mxu0 0.0
  %2898 = vmatpush2.msra.mxu0 0.0
  %2899 = vmatprep.subr.mxu0 0.0
  %2900 = vmatpush2.msra.mxu0 0.0
  %2901 = vmatprep.subr.mxu0 0.0
  %2902 = vmatpush2.msra.mxu0 0.0
  %2903 = vmatprep.subr.mxu0 0.0
  %2904 = vmatpush2.msra.mxu0 0.0
  %2905 = vmatprep.subr.mxu0 0.0
  %2906 = vmatpush2.msra.mxu0 0.0
  %2907 = vmatprep.subr.mxu0 0.0
  %2908 = vmatpush2.msra.mxu0 0.0
  %2909 = vmatprep.mubr.f32.mxu0 0.0
  %2910 = vmatmul.mubr.f32.gmra.mxu0 %v2840
  %v2911 = vpop.f32.mrf.mxu0
  %v2912 = vadd.f32 0.0, %v2911
  %v2913 = vpop.f32.mrf.mxu0
  %2914 = vmatprep.mubr.f32.mxu0 0.0
  %2915 = vmatmul.mubr.f32.gmra.mxu0 %v2843
  %v2916 = vpop.f32.mrf.mxu0
  %v2917 = vadd.f32 0.0, %v2916
  %v2918 = vpop.f32.mrf.mxu0
  %2919 = vdwg.mxu0
  %2920 = vrot.lane.b32.xlu0 %v1772, 64
  %v2921 = vpop.permute.xlu0 %2920
  %2922 = vrot.lane.b32.xlu0 %v1777, 64
  %v2923 = vpop.permute.xlu0 %2922
  %v2926 = vmul.f32 %v2912, %v2921
  %v2927 = vmul.f32 %v2917, %v2923
  %v2928 = vadd.f32 %v2829, %v2926
  %v2929 = vadd.f32 %v2830, %v2927
  %v2930 = vrcp.pop %v2837
  %v2931 = vrcp.pop %v2838
  %v2933 = vsel %vm2131, %v2930, 0
  %v2936 = vsel %vm2131, %v2931, 0
  %2938 = vmatprep.subr.mxu0 0.0
  %2939 = vmatpush1.msra.mxu0 0.0
  %2940 = vmatprep.subr.mxu0 0.0
  %2941 = vmatpush1.msra.mxu0 0.0
  %2942 = vmatprep.subr.mxu0 0.0
  %2943 = vmatpush1.msra.mxu0 0.0
  %2944 = vmatprep.subr.mxu0 0.0
  %2945 = vmatpush1.msra.mxu0 0.0
  %2946 = vmatprep.subr.mxu0 0.0
  %2947 = vmatpush1.msra.mxu0 0.0
  %2948 = vmatprep.subr.mxu0 0.0
  %2949 = vmatpush1.msra.mxu0 0.0
  %2950 = vmatprep.subr.mxu0 0.0
  %2951 = vmatpush1.msra.mxu0 0.0
  %2952 = vmatprep.subr.mxu0 0.0
  %2953 = vmatpush1.msra.mxu0 0.0
  %2954 = vmatprep.subr.mxu0 0.0
  %2955 = vmatpush1.msra.mxu0 0.0
  %2956 = vmatprep.subr.mxu0 0.0
  %2957 = vmatpush1.msra.mxu0 0.0
  %2958 = vmatprep.subr.mxu0 0.0
  %2959 = vmatpush1.msra.mxu0 0.0
  %2960 = vmatprep.subr.mxu0 0.0
  %2961 = vmatpush1.msra.mxu0 0.0
  %2962 = vmatprep.subr.mxu0 0.0
  %2963 = vmatpush1.msra.mxu0 0.0
  %2964 = vmatprep.subr.mxu0 0.0
  %2965 = vmatpush1.msra.mxu0 0.0
  %2966 = vmatprep.subr.mxu0 0.0
  %2967 = vmatpush1.msra.mxu0 0.0
  %2968 = vmatprep.subr.mxu0 0.0
  %2969 = vmatpush1.msra.mxu0 %v44
  %2970 = vmatprep.subr.mxu0 0.0
  %2971 = vmatpush2.msra.mxu0 0.0
  %2972 = vmatprep.subr.mxu0 0.0
  %2973 = vmatpush2.msra.mxu0 0.0
  %2974 = vmatprep.subr.mxu0 0.0
  %2975 = vmatpush2.msra.mxu0 0.0
  %2976 = vmatprep.subr.mxu0 0.0
  %2977 = vmatpush2.msra.mxu0 0.0
  %2978 = vmatprep.subr.mxu0 0.0
  %2979 = vmatpush2.msra.mxu0 0.0
  %2980 = vmatprep.subr.mxu0 0.0
  %2981 = vmatpush2.msra.mxu0 0.0
  %2982 = vmatprep.subr.mxu0 0.0
  %2983 = vmatpush2.msra.mxu0 0.0
  %2984 = vmatprep.subr.mxu0 0.0
  %2985 = vmatpush2.msra.mxu0 0.0
  %2986 = vmatprep.subr.mxu0 0.0
  %2987 = vmatpush2.msra.mxu0 0.0
  %2988 = vmatprep.subr.mxu0 0.0
  %2989 = vmatpush2.msra.mxu0 0.0
  %2990 = vmatprep.subr.mxu0 0.0
  %2991 = vmatpush2.msra.mxu0 0.0
  %2992 = vmatprep.subr.mxu0 0.0
  %2993 = vmatpush2.msra.mxu0 0.0
  %2994 = vmatprep.subr.mxu0 0.0
  %2995 = vmatpush2.msra.mxu0 0.0
  %2996 = vmatprep.subr.mxu0 0.0
  %2997 = vmatpush2.msra.mxu0 0.0
  %2998 = vmatprep.subr.mxu0 0.0
  %2999 = vmatpush2.msra.mxu0 0.0
  %3000 = vmatprep.subr.mxu0 0.0
  %3001 = vmatpush2.msra.mxu0 0.0
  %3002 = vmatprep.mubr.f32.mxu0 0.0
  %3003 = vmatmul.mubr.f32.gmra.mxu0 %v2933
  %v3004 = vpop.f32.mrf.mxu0
  %v3005 = vadd.f32 0.0, %v3004
  %v3006 = vpop.f32.mrf.mxu0
  %3007 = vmatprep.mubr.f32.mxu0 0.0
  %3008 = vmatmul.mubr.f32.gmra.mxu0 %v2936
  %v3009 = vpop.f32.mrf.mxu0
  %v3010 = vadd.f32 0.0, %v3009
  %v3011 = vpop.f32.mrf.mxu0
  %3012 = vdwg.mxu0
  %v3013 = vmul.f32 %v2928, %v3005
  %v3014 = vmul.f32 %v2929, %v3010
  %v3015 = vlaneseq
  %v3016 = vshrl.u32 %v3015, 7
  %v3017 = vsub.s32 0, %v3016
  %v3018 = vrot.slane %v49, %v3017
  %v3020 = vsel %vm685, %v3013, 0
  %v3023 = vsel %vm685, %v3014, 0
  %3025 = vmatprep.subr.mxu0 0.0
  %3026 = vmatpush1.msra.mxu0 0.0
  %3027 = vmatprep.subr.mxu0 0.0
  %3028 = vmatpush1.msra.mxu0 0.0
  %3029 = vmatprep.subr.mxu0 0.0
  %3030 = vmatpush1.msra.mxu0 0.0
  %3031 = vmatprep.subr.mxu0 0.0
  %3032 = vmatpush1.msra.mxu0 0.0
  %3033 = vmatprep.subr.mxu0 0.0
  %3034 = vmatpush1.msra.mxu0 0.0
  %3035 = vmatprep.subr.mxu0 0.0
  %3036 = vmatpush1.msra.mxu0 0.0
  %3037 = vmatprep.subr.mxu0 0.0
  %3038 = vmatpush1.msra.mxu0 0.0
  %3039 = vmatprep.subr.mxu0 0.0
  %3040 = vmatpush1.msra.mxu0 0.0
  %3041 = vmatprep.subr.mxu0 0.0
  %3042 = vmatpush1.msra.mxu0 0.0
  %3043 = vmatprep.subr.mxu0 0.0
  %3044 = vmatpush1.msra.mxu0 0.0
  %3045 = vmatprep.subr.mxu0 0.0
  %3046 = vmatpush1.msra.mxu0 0.0
  %3047 = vmatprep.subr.mxu0 0.0
  %3048 = vmatpush1.msra.mxu0 0.0
  %3049 = vmatprep.subr.mxu0 0.0
  %3050 = vmatpush1.msra.mxu0 %v27
  %3051 = vmatprep.subr.mxu0 0.0
  %3052 = vmatpush1.msra.mxu0 %v26
  %3053 = vmatprep.subr.mxu0 0.0
  %3054 = vmatpush1.msra.mxu0 %v25
  %3055 = vmatprep.subr.mxu0 0.0
  %3056 = vmatpush1.msra.mxu0 %v24
  %3057 = vmatprep.subr.mxu0 0.0
  %3058 = vmatpush2.msra.mxu0 0.0
  %3059 = vmatprep.subr.mxu0 0.0
  %3060 = vmatpush2.msra.mxu0 0.0
  %3061 = vmatprep.subr.mxu0 0.0
  %3062 = vmatpush2.msra.mxu0 0.0
  %3063 = vmatprep.subr.mxu0 0.0
  %3064 = vmatpush2.msra.mxu0 0.0
  %3065 = vmatprep.subr.mxu0 0.0
  %3066 = vmatpush2.msra.mxu0 0.0
  %3067 = vmatprep.subr.mxu0 0.0
  %3068 = vmatpush2.msra.mxu0 0.0
  %3069 = vmatprep.subr.mxu0 0.0
  %3070 = vmatpush2.msra.mxu0 0.0
  %3071 = vmatprep.subr.mxu0 0.0
  %3072 = vmatpush2.msra.mxu0 0.0
  %3073 = vmatprep.subr.mxu0 0.0
  %3074 = vmatpush2.msra.mxu0 0.0
  %3075 = vmatprep.subr.mxu0 0.0
  %3076 = vmatpush2.msra.mxu0 0.0
  %3077 = vmatprep.subr.mxu0 0.0
  %3078 = vmatpush2.msra.mxu0 0.0
  %3079 = vmatprep.subr.mxu0 0.0
  %3080 = vmatpush2.msra.mxu0 0.0
  %3081 = vmatprep.subr.mxu0 0.0
  %3082 = vmatpush2.msra.mxu0 0.0
  %3083 = vmatprep.subr.mxu0 0.0
  %3084 = vmatpush2.msra.mxu0 0.0
  %3085 = vmatprep.subr.mxu0 0.0
  %3086 = vmatpush2.msra.mxu0 0.0
  %3087 = vmatprep.subr.mxu0 0.0
  %3088 = vmatpush2.msra.mxu0 0.0
  %3089 = vmatprep.mubr.f32.mxu0 0.0
  %3090 = vmatmul.mubr.f32.gmra.mxu0 %v3020
  %v3091 = vpop.f32.mrf.mxu0
  %v3092 = vadd.f32 %v3018, %v3091
  %v3093 = vpop.f32.mrf.mxu0
  %3094 = vmatprep.mubr.f32.mxu0 0.0
  %3095 = vmatmul.mubr.f32.gmra.mxu0 %v3023
  %v3096 = vpop.f32.mrf.mxu0
  %v3097 = vadd.f32 %v3018, %v3096
  %v3098 = vpop.f32.mrf.mxu0
  %3099 = vdwg.mxu0
  %vm3100 = vcmask 130048
  %v3102 = vsel %vm3100, %v53, 0
  %v3105 = vsel %vm3100, %v54, 0
  %3107 = vmatprep.subr.mxu0 0.0
  %3108 = vmatpush1.msra.mxu0 0.0
  %3109 = vmatprep.subr.mxu0 0.0
  %3110 = vmatpush1.msra.mxu0 0.0
  %3111 = vmatprep.subr.mxu0 0.0
  %3112 = vmatpush1.msra.mxu0 0.0
  %3113 = vmatprep.subr.mxu0 0.0
  %3114 = vmatpush1.msra.mxu0 0.0
  %3115 = vmatprep.subr.mxu0 0.0
  %3116 = vmatpush1.msra.mxu0 0.0
  %3117 = vmatprep.subr.mxu0 0.0
  %3118 = vmatpush1.msra.mxu0 0.0
  %3119 = vmatprep.subr.mxu0 0.0
  %3120 = vmatpush1.msra.mxu0 0.0
  %3121 = vmatprep.subr.mxu0 0.0
  %3122 = vmatpush1.msra.mxu0 0.0
  %3123 = vmatprep.subr.mxu0 0.0
  %3124 = vmatpush1.msra.mxu0 0.0
  %3125 = vmatprep.subr.mxu0 0.0
  %3126 = vmatpush1.msra.mxu0 0.0
  %3127 = vmatprep.subr.mxu0 0.0
  %3128 = vmatpush1.msra.mxu0 0.0
  %3129 = vmatprep.subr.mxu0 0.0
  %3130 = vmatpush1.msra.mxu0 0.0
  %3131 = vmatprep.subr.mxu0 0.0
  %3132 = vmatpush1.msra.mxu0 0.0
  %3133 = vmatprep.subr.mxu0 0.0
  %3134 = vmatpush1.msra.mxu0 0.0
  %3135 = vmatprep.subr.mxu0 0.0
  %3136 = vmatpush1.msra.mxu0 %v3097
  %3137 = vmatprep.subr.mxu0 0.0
  %3138 = vmatpush1.msra.mxu0 %v3092
  %3139 = vmatprep.subr.mxu0 0.0
  %3140 = vmatpush2.msra.mxu0 0.0
  %3141 = vmatprep.subr.mxu0 0.0
  %3142 = vmatpush2.msra.mxu0 0.0
  %3143 = vmatprep.subr.mxu0 0.0
  %3144 = vmatpush2.msra.mxu0 0.0
  %3145 = vmatprep.subr.mxu0 0.0
  %3146 = vmatpush2.msra.mxu0 0.0
  %3147 = vmatprep.subr.mxu0 0.0
  %3148 = vmatpush2.msra.mxu0 0.0
  %3149 = vmatprep.subr.mxu0 0.0
  %3150 = vmatpush2.msra.mxu0 0.0
  %3151 = vmatprep.subr.mxu0 0.0
  %3152 = vmatpush2.msra.mxu0 0.0
  %3153 = vmatprep.subr.mxu0 0.0
  %3154 = vmatpush2.msra.mxu0 0.0
  %3155 = vmatprep.subr.mxu0 0.0
  %3156 = vmatpush2.msra.mxu0 0.0
  %3157 = vmatprep.subr.mxu0 0.0
  %3158 = vmatpush2.msra.mxu0 0.0
  %3159 = vmatprep.subr.mxu0 0.0
  %3160 = vmatpush2.msra.mxu0 0.0
  %3161 = vmatprep.subr.mxu0 0.0
  %3162 = vmatpush2.msra.mxu0 0.0
  %3163 = vmatprep.subr.mxu0 0.0
  %3164 = vmatpush2.msra.mxu0 0.0
  %3165 = vmatprep.subr.mxu0 0.0
  %3166 = vmatpush2.msra.mxu0 0.0
  %3167 = vmatprep.subr.mxu0 0.0
  %3168 = vmatpush2.msra.mxu0 0.0
  %3169 = vmatprep.subr.mxu0 0.0
  %3170 = vmatpush2.msra.mxu0 0.0
  %3171 = vmatprep.mubr.f32.mxu0 0.0
  %3172 = vmatmul.mubr.f32.gmra.mxu0 %v3102
  %v3173 = vpop.f32.mrf.mxu0
  %v3174 = vadd.f32 0.0, %v3173
  %v3175 = vpop.f32.mrf.mxu0
  %3176 = vmatprep.mubr.f32.mxu0 0.0
  %3177 = vmatmul.mubr.f32.gmra.mxu0 %v3105
  %v3178 = vpop.f32.mrf.mxu0
  %v3179 = vadd.f32 0.0, %v3178
  %v3180 = vpop.f32.mrf.mxu0
  %3181 = vdwg.mxu0
  %v3182 = vlaneseq
  %v3183 = vshrl.u32 %v3182, 7
  %v3184 = vsub.s32 0, %v3183
  %v3185 = vrot.slane %v50, %v3184
  %v3187 = vsel %vm685, %v3174, 0
  %v3190 = vsel %vm685, %v3179, 0
  %3192 = vmatprep.subr.mxu0 0.0
  %3193 = vmatpush1.msra.mxu0 0.0
  %3194 = vmatprep.subr.mxu0 0.0
  %3195 = vmatpush1.msra.mxu0 0.0
  %3196 = vmatprep.subr.mxu0 0.0
  %3197 = vmatpush1.msra.mxu0 0.0
  %3198 = vmatprep.subr.mxu0 0.0
  %3199 = vmatpush1.msra.mxu0 0.0
  %3200 = vmatprep.subr.mxu0 0.0
  %3201 = vmatpush1.msra.mxu0 0.0
  %3202 = vmatprep.subr.mxu0 0.0
  %3203 = vmatpush1.msra.mxu0 0.0
  %3204 = vmatprep.subr.mxu0 0.0
  %3205 = vmatpush1.msra.mxu0 0.0
  %3206 = vmatprep.subr.mxu0 0.0
  %3207 = vmatpush1.msra.mxu0 0.0
  %3208 = vmatprep.subr.mxu0 0.0
  %3209 = vmatpush1.msra.mxu0 0.0
  %3210 = vmatprep.subr.mxu0 0.0
  %3211 = vmatpush1.msra.mxu0 0.0
  %3212 = vmatprep.subr.mxu0 0.0
  %3213 = vmatpush1.msra.mxu0 0.0
  %3214 = vmatprep.subr.mxu0 0.0
  %3215 = vmatpush1.msra.mxu0 0.0
  %3216 = vmatprep.subr.mxu0 0.0
  %3217 = vmatpush1.msra.mxu0 %v31
  %3218 = vmatprep.subr.mxu0 0.0
  %3219 = vmatpush1.msra.mxu0 %v30
  %3220 = vmatprep.subr.mxu0 0.0
  %3221 = vmatpush1.msra.mxu0 %v29
  %3222 = vmatprep.subr.mxu0 0.0
  %3223 = vmatpush1.msra.mxu0 %v28
  %3224 = vmatprep.subr.mxu0 0.0
  %3225 = vmatpush2.msra.mxu0 0.0
  %3226 = vmatprep.subr.mxu0 0.0
  %3227 = vmatpush2.msra.mxu0 0.0
  %3228 = vmatprep.subr.mxu0 0.0
  %3229 = vmatpush2.msra.mxu0 0.0
  %3230 = vmatprep.subr.mxu0 0.0
  %3231 = vmatpush2.msra.mxu0 0.0
  %3232 = vmatprep.subr.mxu0 0.0
  %3233 = vmatpush2.msra.mxu0 0.0
  %3234 = vmatprep.subr.mxu0 0.0
  %3235 = vmatpush2.msra.mxu0 0.0
  %3236 = vmatprep.subr.mxu0 0.0
  %3237 = vmatpush2.msra.mxu0 0.0
  %3238 = vmatprep.subr.mxu0 0.0
  %3239 = vmatpush2.msra.mxu0 0.0
  %3240 = vmatprep.subr.mxu0 0.0
  %3241 = vmatpush2.msra.mxu0 0.0
  %3242 = vmatprep.subr.mxu0 0.0
  %3243 = vmatpush2.msra.mxu0 0.0
  %3244 = vmatprep.subr.mxu0 0.0
  %3245 = vmatpush2.msra.mxu0 0.0
  %3246 = vmatprep.subr.mxu0 0.0
  %3247 = vmatpush2.msra.mxu0 0.0
  %3248 = vmatprep.subr.mxu0 0.0
  %3249 = vmatpush2.msra.mxu0 0.0
  %3250 = vmatprep.subr.mxu0 0.0
  %3251 = vmatpush2.msra.mxu0 0.0
  %3252 = vmatprep.subr.mxu0 0.0
  %3253 = vmatpush2.msra.mxu0 0.0
  %3254 = vmatprep.subr.mxu0 0.0
  %3255 = vmatpush2.msra.mxu0 0.0
  %3256 = vmatprep.mubr.f32.mxu0 0.0
  %3257 = vmatmul.mubr.f32.gmra.mxu0 %v3187
  %v3258 = vpop.f32.mrf.mxu0
  %v3259 = vadd.f32 %v3185, %v3258
  %v3260 = vpop.f32.mrf.mxu0
  %3261 = vmatprep.mubr.f32.mxu0 0.0
  %3262 = vmatmul.mubr.f32.gmra.mxu0 %v3190
  %v3263 = vpop.f32.mrf.mxu0
  %v3264 = vadd.f32 %v3185, %v3263
  %v3265 = vpop.f32.mrf.mxu0
  %3266 = vdwg.mxu0
  %v3267 = vmax.f32 %v3259, 0.0
  %v3268 = vmax.f32 %v3264, 0.0
  %3269 = vmatprep.subr.mxu0 0.0
  %3270 = vmatpush1.msra.mxu0 0.0
  %3271 = vmatprep.subr.mxu0 0.0
  %3272 = vmatpush1.msra.mxu0 0.0
  %3273 = vmatprep.subr.mxu0 0.0
  %3274 = vmatpush1.msra.mxu0 0.0
  %3275 = vmatprep.subr.mxu0 0.0
  %3276 = vmatpush1.msra.mxu0 0.0
  %3277 = vmatprep.subr.mxu0 0.0
  %3278 = vmatpush1.msra.mxu0 0.0
  %3279 = vmatprep.subr.mxu0 0.0
  %3280 = vmatpush1.msra.mxu0 0.0
  %3281 = vmatprep.subr.mxu0 0.0
  %3282 = vmatpush1.msra.mxu0 0.0
  %3283 = vmatprep.subr.mxu0 0.0
  %3284 = vmatpush1.msra.mxu0 0.0
  %3285 = vmatprep.subr.mxu0 0.0
  %3286 = vmatpush1.msra.mxu0 0.0
  %3287 = vmatprep.subr.mxu0 0.0
  %3288 = vmatpush1.msra.mxu0 0.0
  %3289 = vmatprep.subr.mxu0 0.0
  %3290 = vmatpush1.msra.mxu0 0.0
  %3291 = vmatprep.subr.mxu0 0.0
  %3292 = vmatpush1.msra.mxu0 0.0
  %3293 = vmatprep.subr.mxu0 0.0
  %3294 = vmatpush1.msra.mxu0 0.0
  %3295 = vmatprep.subr.mxu0 0.0
  %3296 = vmatpush1.msra.mxu0 0.0
  %3297 = vmatprep.subr.mxu0 0.0
  %3298 = vmatpush1.msra.mxu0 %v3268
  %3299 = vmatprep.subr.mxu0 0.0
  %3300 = vmatpush1.msra.mxu0 %v3267
  %3301 = vmatprep.subr.mxu0 0.0
  %3302 = vmatpush2.msra.mxu0 0.0
  %3303 = vmatprep.subr.mxu0 0.0
  %3304 = vmatpush2.msra.mxu0 0.0
  %3305 = vmatprep.subr.mxu0 0.0
  %3306 = vmatpush2.msra.mxu0 0.0
  %3307 = vmatprep.subr.mxu0 0.0
  %3308 = vmatpush2.msra.mxu0 0.0
  %3309 = vmatprep.subr.mxu0 0.0
  %3310 = vmatpush2.msra.mxu0 0.0
  %3311 = vmatprep.subr.mxu0 0.0
  %3312 = vmatpush2.msra.mxu0 0.0
  %3313 = vmatprep.subr.mxu0 0.0
  %3314 = vmatpush2.msra.mxu0 0.0
  %3315 = vmatprep.subr.mxu0 0.0
  %3316 = vmatpush2.msra.mxu0 0.0
  %3317 = vmatprep.subr.mxu0 0.0
  %3318 = vmatpush2.msra.mxu0 0.0
  %3319 = vmatprep.subr.mxu0 0.0
  %3320 = vmatpush2.msra.mxu0 0.0
  %3321 = vmatprep.subr.mxu0 0.0
  %3322 = vmatpush2.msra.mxu0 0.0
  %3323 = vmatprep.subr.mxu0 0.0
  %3324 = vmatpush2.msra.mxu0 0.0
  %3325 = vmatprep.subr.mxu0 0.0
  %3326 = vmatpush2.msra.mxu0 0.0
  %3327 = vmatprep.subr.mxu0 0.0
  %3328 = vmatpush2.msra.mxu0 0.0
  %3329 = vmatprep.subr.mxu0 0.0
  %3330 = vmatpush2.msra.mxu0 0.0
  %3331 = vmatprep.subr.mxu0 0.0
  %3332 = vmatpush2.msra.mxu0 0.0
  %3333 = vmatprep.mubr.f32.mxu0 0.0
  %3334 = vmatmul.mubr.f32.gmra.mxu0 %v3102
  %v3335 = vpop.f32.mrf.mxu0
  %v3336 = vadd.f32 0.0, %v3335
  %v3337 = vpop.f32.mrf.mxu0
  %3338 = vmatprep.mubr.f32.mxu0 0.0
  %3339 = vmatmul.mubr.f32.gmra.mxu0 %v3105
  %v3340 = vpop.f32.mrf.mxu0
  %v3341 = vadd.f32 0.0, %v3340
  %v3342 = vpop.f32.mrf.mxu0
  %3343 = vdwg.mxu0
  %v3344 = vlaneseq
  %v3345 = vshrl.u32 %v3344, 7
  %v3346 = vsub.s32 0, %v3345
  %v3347 = vrot.slane %v51, %v3346
  %v3349 = vsel %vm685, %v3336, 0
  %v3352 = vsel %vm685, %v3341, 0
  %3354 = vmatprep.subr.mxu0 0.0
  %3355 = vmatpush1.msra.mxu0 0.0
  %3356 = vmatprep.subr.mxu0 0.0
  %3357 = vmatpush1.msra.mxu0 0.0
  %3358 = vmatprep.subr.mxu0 0.0
  %3359 = vmatpush1.msra.mxu0 0.0
  %3360 = vmatprep.subr.mxu0 0.0
  %3361 = vmatpush1.msra.mxu0 0.0
  %3362 = vmatprep.subr.mxu0 0.0
  %3363 = vmatpush1.msra.mxu0 0.0
  %3364 = vmatprep.subr.mxu0 0.0
  %3365 = vmatpush1.msra.mxu0 0.0
  %3366 = vmatprep.subr.mxu0 0.0
  %3367 = vmatpush1.msra.mxu0 0.0
  %3368 = vmatprep.subr.mxu0 0.0
  %3369 = vmatpush1.msra.mxu0 0.0
  %3370 = vmatprep.subr.mxu0 0.0
  %3371 = vmatpush1.msra.mxu0 0.0
  %3372 = vmatprep.subr.mxu0 0.0
  %3373 = vmatpush1.msra.mxu0 0.0
  %3374 = vmatprep.subr.mxu0 0.0
  %3375 = vmatpush1.msra.mxu0 0.0
  %3376 = vmatprep.subr.mxu0 0.0
  %3377 = vmatpush1.msra.mxu0 0.0
  %3378 = vmatprep.subr.mxu0 0.0
  %3379 = vmatpush1.msra.mxu0 %v35
  %3380 = vmatprep.subr.mxu0 0.0
  %3381 = vmatpush1.msra.mxu0 %v34
  %3382 = vmatprep.subr.mxu0 0.0
  %3383 = vmatpush1.msra.mxu0 %v33
  %3384 = vmatprep.subr.mxu0 0.0
  %3385 = vmatpush1.msra.mxu0 %v32
  %3386 = vmatprep.subr.mxu0 0.0
  %3387 = vmatpush2.msra.mxu0 0.0
  %3388 = vmatprep.subr.mxu0 0.0
  %3389 = vmatpush2.msra.mxu0 0.0
  %3390 = vmatprep.subr.mxu0 0.0
  %3391 = vmatpush2.msra.mxu0 0.0
  %3392 = vmatprep.subr.mxu0 0.0
  %3393 = vmatpush2.msra.mxu0 0.0
  %3394 = vmatprep.subr.mxu0 0.0
  %3395 = vmatpush2.msra.mxu0 0.0
  %3396 = vmatprep.subr.mxu0 0.0
  %3397 = vmatpush2.msra.mxu0 0.0
  %3398 = vmatprep.subr.mxu0 0.0
  %3399 = vmatpush2.msra.mxu0 0.0
  %3400 = vmatprep.subr.mxu0 0.0
  %3401 = vmatpush2.msra.mxu0 0.0
  %3402 = vmatprep.subr.mxu0 0.0
  %3403 = vmatpush2.msra.mxu0 0.0
  %3404 = vmatprep.subr.mxu0 0.0
  %3405 = vmatpush2.msra.mxu0 0.0
  %3406 = vmatprep.subr.mxu0 0.0
  %3407 = vmatpush2.msra.mxu0 0.0
  %3408 = vmatprep.subr.mxu0 0.0
  %3409 = vmatpush2.msra.mxu0 0.0
  %3410 = vmatprep.subr.mxu0 0.0
  %3411 = vmatpush2.msra.mxu0 0.0
  %3412 = vmatprep.subr.mxu0 0.0
  %3413 = vmatpush2.msra.mxu0 0.0
  %3414 = vmatprep.subr.mxu0 0.0
  %3415 = vmatpush2.msra.mxu0 0.0
  %3416 = vmatprep.subr.mxu0 0.0
  %3417 = vmatpush2.msra.mxu0 0.0
  %3418 = vmatprep.mubr.f32.mxu0 0.0
  %3419 = vmatmul.mubr.f32.gmra.mxu0 %v3349
  %v3420 = vpop.f32.mrf.mxu0
  %v3421 = vadd.f32 %v3347, %v3420
  %v3422 = vpop.f32.mrf.mxu0
  %3423 = vmatprep.mubr.f32.mxu0 0.0
  %3424 = vmatmul.mubr.f32.gmra.mxu0 %v3352
  %v3425 = vpop.f32.mrf.mxu0
  %v3426 = vadd.f32 %v3347, %v3425
  %v3427 = vpop.f32.mrf.mxu0
  %3428 = vdwg.mxu0
  %v3429 = vmax.f32 %v3421, 0.0
  %v3430 = vmax.f32 %v3426, 0.0
  %v3431 = vlaneseq
  %v3432 = vshrl.u32 %v3431, 7
  %v3433 = vsub.s32 0, %v3432
  %v3434 = vrot.slane %v52, %v3433
  %v3436 = vsel %vm685, %v3429, 0
  %v3439 = vsel %vm685, %v3430, 0
  %3441 = vmatprep.subr.mxu0 0.0
  %3442 = vmatpush1.msra.mxu0 0.0
  %3443 = vmatprep.subr.mxu0 0.0
  %3444 = vmatpush1.msra.mxu0 0.0
  %3445 = vmatprep.subr.mxu0 0.0
  %3446 = vmatpush1.msra.mxu0 0.0
  %3447 = vmatprep.subr.mxu0 0.0
  %3448 = vmatpush1.msra.mxu0 0.0
  %3449 = vmatprep.subr.mxu0 0.0
  %3450 = vmatpush1.msra.mxu0 0.0
  %3451 = vmatprep.subr.mxu0 0.0
  %3452 = vmatpush1.msra.mxu0 0.0
  %3453 = vmatprep.subr.mxu0 0.0
  %3454 = vmatpush1.msra.mxu0 0.0
  %3455 = vmatprep.subr.mxu0 0.0
  %3456 = vmatpush1.msra.mxu0 0.0
  %3457 = vmatprep.subr.mxu0 0.0
  %3458 = vmatpush1.msra.mxu0 0.0
  %3459 = vmatprep.subr.mxu0 0.0
  %3460 = vmatpush1.msra.mxu0 0.0
  %3461 = vmatprep.subr.mxu0 0.0
  %3462 = vmatpush1.msra.mxu0 0.0
  %3463 = vmatprep.subr.mxu0 0.0
  %3464 = vmatpush1.msra.mxu0 0.0
  %3465 = vmatprep.subr.mxu0 0.0
  %3466 = vmatpush1.msra.mxu0 %v39
  %3467 = vmatprep.subr.mxu0 0.0
  %3468 = vmatpush1.msra.mxu0 %v38
  %3469 = vmatprep.subr.mxu0 0.0
  %3470 = vmatpush1.msra.mxu0 %v37
  %3471 = vmatprep.subr.mxu0 0.0
  %3472 = vmatpush1.msra.mxu0 %v36
  %3473 = vmatprep.subr.mxu0 0.0
  %3474 = vmatpush2.msra.mxu0 0.0
  %3475 = vmatprep.subr.mxu0 0.0
  %3476 = vmatpush2.msra.mxu0 0.0
  %3477 = vmatprep.subr.mxu0 0.0
  %3478 = vmatpush2.msra.mxu0 0.0
  %3479 = vmatprep.subr.mxu0 0.0
  %3480 = vmatpush2.msra.mxu0 0.0
  %3481 = vmatprep.subr.mxu0 0.0
  %3482 = vmatpush2.msra.mxu0 0.0
  %3483 = vmatprep.subr.mxu0 0.0
  %3484 = vmatpush2.msra.mxu0 0.0
  %3485 = vmatprep.subr.mxu0 0.0
  %3486 = vmatpush2.msra.mxu0 0.0
  %3487 = vmatprep.subr.mxu0 0.0
  %3488 = vmatpush2.msra.mxu0 0.0
  %3489 = vmatprep.subr.mxu0 0.0
  %3490 = vmatpush2.msra.mxu0 0.0
  %3491 = vmatprep.subr.mxu0 0.0
  %3492 = vmatpush2.msra.mxu0 0.0
  %3493 = vmatprep.subr.mxu0 0.0
  %3494 = vmatpush2.msra.mxu0 0.0
  %3495 = vmatprep.subr.mxu0 0.0
  %3496 = vmatpush2.msra.mxu0 0.0
  %3497 = vmatprep.subr.mxu0 0.0
  %3498 = vmatpush2.msra.mxu0 0.0
  %3499 = vmatprep.subr.mxu0 0.0
  %3500 = vmatpush2.msra.mxu0 0.0
  %3501 = vmatprep.subr.mxu0 0.0
  %3502 = vmatpush2.msra.mxu0 0.0
  %3503 = vmatprep.subr.mxu0 0.0
  %3504 = vmatpush2.msra.mxu0 0.0
  %3505 = vmatprep.mubr.f32.mxu0 0.0
  %3506 = vmatmul.mubr.f32.gmra.mxu0 %v3436
  %v3507 = vpop.f32.mrf.mxu0
  %v3508 = vadd.f32 %v3434, %v3507
  %v3509 = vpop.f32.mrf.mxu0
  %3510 = vmatprep.mubr.f32.mxu0 0.0
  %3511 = vmatmul.mubr.f32.gmra.mxu0 %v3439
  %v3512 = vpop.f32.mrf.mxu0
  %v3513 = vadd.f32 %v3434, %v3512
  %v3514 = vpop.f32.mrf.mxu0
  %3515 = vdwg.mxu0
  %3516 = vst [vmem:[%s3] sm:$0xff] %v3508
  %3517 = vst [vmem:[%s3 + $0x8] sm:$0xff] %v3513
  %3520 = vrot.lane.b32.xlu0 %v1852, 32
  %v3521 = vpop.permute.xlu0 %3520
  %3522 = vrot.lane.b32.xlu0 %v1857, 32
  %v3523 = vpop.permute.xlu0 %3522
  %v3526 = vmul.f32 %v1782, %v3521
  %v3527 = vmul.f32 %v1787, %v3523
  %v3528 = vmul.f32 %v1792, %v3521
  %v3529 = vmul.f32 %v1797, %v3523
  %v3530 = vmul.f32 %v1802, %v3521
  %v3531 = vmul.f32 %v1807, %v3523
  %v3532 = vmul.f32 %v1812, %v3521
  %v3533 = vmul.f32 %v1817, %v3523
  %v3534 = vmul.f32 %v1822, %v3521
  %v3535 = vmul.f32 %v1827, %v3523
  %v3536 = vmul.f32 %v1832, %v3521
  %v3537 = vmul.f32 %v1837, %v3523
  %v3538 = vmul.f32 %v1842, %v3521
  %v3539 = vmul.f32 %v1847, %v3523
  %v3540 = vmul.f32 %v1852, %v3521
  %v3541 = vmul.f32 %v1857, %v3523
  %3558 = vrot.lane.b32.xlu0 %v3526, 96
  %v3559 = vpop.permute.xlu0 %3558
  %3560 = vrot.lane.b32.xlu0 %v3527, 96
  %v3561 = vpop.permute.xlu0 %3560
  %3562 = vrot.lane.b32.xlu0 %v3528, 96
  %v3563 = vpop.permute.xlu0 %3562
  %3564 = vrot.lane.b32.xlu0 %v3529, 96
  %v3565 = vpop.permute.xlu0 %3564
  %3566 = vrot.lane.b32.xlu0 %v3530, 96
  %v3567 = vpop.permute.xlu0 %3566
  %3568 = vrot.lane.b32.xlu0 %v3531, 96
  %v3569 = vpop.permute.xlu0 %3568
  %3570 = vrot.lane.b32.xlu0 %v3532, 96
  %v3571 = vpop.permute.xlu0 %3570
  %3572 = vrot.lane.b32.xlu0 %v3533, 96
  %v3573 = vpop.permute.xlu0 %3572
  %3574 = vrot.lane.b32.xlu0 %v3534, 96
  %v3575 = vpop.permute.xlu0 %3574
  %3576 = vrot.lane.b32.xlu0 %v3535, 96
  %v3577 = vpop.permute.xlu0 %3576
  %3578 = vrot.lane.b32.xlu0 %v3536, 96
  %v3579 = vpop.permute.xlu0 %3578
  %3580 = vrot.lane.b32.xlu0 %v3537, 96
  %v3581 = vpop.permute.xlu0 %3580
  %3582 = vrot.lane.b32.xlu0 %v3538, 96
  %v3583 = vpop.permute.xlu0 %3582
  %3584 = vrot.lane.b32.xlu0 %v3539, 96
  %v3585 = vpop.permute.xlu0 %3584
  %3586 = vrot.lane.b32.xlu0 %v3540, 96
  %v3587 = vpop.permute.xlu0 %3586
  %3588 = vrot.lane.b32.xlu0 %v3541, 96
  %v3589 = vpop.permute.xlu0 %3588
  %v3590 = vsel %vm685, %v3559, 0
  %v3592 = vsel %vm685, %v3561, 0
  %v3594 = vsel %vm685, %v3563, 0
  %v3596 = vsel %vm685, %v3565, 0
  %v3598 = vsel %vm685, %v3567, 0
  %v3600 = vsel %vm685, %v3569, 0
  %v3602 = vsel %vm685, %v3571, 0
  %v3604 = vsel %vm685, %v3573, 0
  %v3606 = vsel %vm685, %v3575, 0
  %v3608 = vsel %vm685, %v3577, 0
  %v3610 = vsel %vm685, %v3579, 0
  %v3612 = vsel %vm685, %v3581, 0
  %v3614 = vsel %vm685, %v3583, 0
  %v3616 = vsel %vm685, %v3585, 0
  %v3618 = vsel %vm685, %v3587, 0
  %v3620 = vsel %vm685, %v3589, 0
  %3622 = vmatprep.subr.mxu0 0.0
  %3623 = vmatpush1.msra.mxu0 0.0
  %3624 = vmatprep.subr.mxu0 0.0
  %3625 = vmatpush1.msra.mxu0 0.0
  %3626 = vmatprep.subr.mxu0 0.0
  %3627 = vmatpush1.msra.mxu0 0.0
  %3628 = vmatprep.subr.mxu0 0.0
  %3629 = vmatpush1.msra.mxu0 0.0
  %3630 = vmatprep.subr.mxu0 0.0
  %3631 = vmatpush1.msra.mxu0 0.0
  %3632 = vmatprep.subr.mxu0 0.0
  %3633 = vmatpush1.msra.mxu0 0.0
  %3634 = vmatprep.subr.mxu0 0.0
  %3635 = vmatpush1.msra.mxu0 0.0
  %3636 = vmatprep.subr.mxu0 0.0
  %3637 = vmatpush1.msra.mxu0 0.0
  %3638 = vmatprep.subr.mxu0 0.0
  %3639 = vmatpush1.msra.mxu0 0.0
  %3640 = vmatprep.subr.mxu0 0.0
  %3641 = vmatpush1.msra.mxu0 0.0
  %3642 = vmatprep.subr.mxu0 0.0
  %3643 = vmatpush1.msra.mxu0 0.0
  %3644 = vmatprep.subr.mxu0 0.0
  %3645 = vmatpush1.msra.mxu0 0.0
  %3646 = vmatprep.subr.mxu0 0.0
  %3647 = vmatpush1.msra.mxu0 %v43
  %3648 = vmatprep.subr.mxu0 0.0
  %3649 = vmatpush1.msra.mxu0 %v42
  %3650 = vmatprep.subr.mxu0 0.0
  %3651 = vmatpush1.msra.mxu0 %v41
  %3652 = vmatprep.subr.mxu0 0.0
  %3653 = vmatpush1.msra.mxu0 %v40
  %3654 = vmatprep.subr.mxu0 0.0
  %3655 = vmatpush2.msra.mxu0 0.0
  %3656 = vmatprep.subr.mxu0 0.0
  %3657 = vmatpush2.msra.mxu0 0.0
  %3658 = vmatprep.subr.mxu0 0.0
  %3659 = vmatpush2.msra.mxu0 0.0
  %3660 = vmatprep.subr.mxu0 0.0
  %3661 = vmatpush2.msra.mxu0 0.0
  %3662 = vmatprep.subr.mxu0 0.0
  %3663 = vmatpush2.msra.mxu0 0.0
  %3664 = vmatprep.subr.mxu0 0.0
  %3665 = vmatpush2.msra.mxu0 0.0
  %3666 = vmatprep.subr.mxu0 0.0
  %3667 = vmatpush2.msra.mxu0 0.0
  %3668 = vmatprep.subr.mxu0 0.0
  %3669 = vmatpush2.msra.mxu0 0.0
  %3670 = vmatprep.subr.mxu0 0.0
  %3671 = vmatpush2.msra.mxu0 0.0
  %3672 = vmatprep.subr.mxu0 0.0
  %3673 = vmatpush2.msra.mxu0 0.0
  %3674 = vmatprep.subr.mxu0 0.0
  %3675 = vmatpush2.msra.mxu0 0.0
  %3676 = vmatprep.subr.mxu0 0.0
  %3677 = vmatpush2.msra.mxu0 0.0
  %3678 = vmatprep.subr.mxu0 0.0
  %3679 = vmatpush2.msra.mxu0 0.0
  %3680 = vmatprep.subr.mxu0 0.0
  %3681 = vmatpush2.msra.mxu0 0.0
  %3682 = vmatprep.subr.mxu0 0.0
  %3683 = vmatpush2.msra.mxu0 0.0
  %3684 = vmatprep.subr.mxu0 0.0
  %3685 = vmatpush2.msra.mxu0 0.0
  %3686 = vmatprep.mubr.f32.mxu0 0.0
  %3687 = vmatmul.mubr.f32.gmra.mxu0 %v3590
  %v3688 = vpop.f32.mrf.mxu0
  %v3689 = vadd.f32 0.0, %v3688
  %v3690 = vpop.f32.mrf.mxu0
  %3691 = vmatprep.mubr.f32.mxu0 0.0
  %3692 = vmatmul.mubr.f32.gmra.mxu0 %v3592
  %v3693 = vpop.f32.mrf.mxu0
  %v3694 = vadd.f32 0.0, %v3693
  %v3695 = vpop.f32.mrf.mxu0
  %3696 = vmatprep.mubr.f32.mxu0 0.0
  %3697 = vmatmul.mubr.f32.gmra.mxu0 %v3594
  %v3698 = vpop.f32.mrf.mxu0
  %v3699 = vadd.f32 0.0, %v3698
  %v3700 = vpop.f32.mrf.mxu0
  %3701 = vmatprep.mubr.f32.mxu0 0.0
  %3702 = vmatmul.mubr.f32.gmra.mxu0 %v3596
  %v3703 = vpop.f32.mrf.mxu0
  %v3704 = vadd.f32 0.0, %v3703
  %v3705 = vpop.f32.mrf.mxu0
  %3706 = vmatprep.mubr.f32.mxu0 0.0
  %3707 = vmatmul.mubr.f32.gmra.mxu0 %v3598
  %v3708 = vpop.f32.mrf.mxu0
  %v3709 = vadd.f32 0.0, %v3708
  %v3710 = vpop.f32.mrf.mxu0
  %3711 = vmatprep.mubr.f32.mxu0 0.0
  %3712 = vmatmul.mubr.f32.gmra.mxu0 %v3600
  %v3713 = vpop.f32.mrf.mxu0
  %v3714 = vadd.f32 0.0, %v3713
  %v3715 = vpop.f32.mrf.mxu0
  %3716 = vmatprep.mubr.f32.mxu0 0.0
  %3717 = vmatmul.mubr.f32.gmra.mxu0 %v3602
  %v3718 = vpop.f32.mrf.mxu0
  %v3719 = vadd.f32 0.0, %v3718
  %v3720 = vpop.f32.mrf.mxu0
  %3721 = vmatprep.mubr.f32.mxu0 0.0
  %3722 = vmatmul.mubr.f32.gmra.mxu0 %v3604
  %v3723 = vpop.f32.mrf.mxu0
  %v3724 = vadd.f32 0.0, %v3723
  %v3725 = vpop.f32.mrf.mxu0
  %3726 = vmatprep.mubr.f32.mxu0 0.0
  %3727 = vmatmul.mubr.f32.gmra.mxu0 %v3606
  %v3728 = vpop.f32.mrf.mxu0
  %v3729 = vadd.f32 0.0, %v3728
  %v3730 = vpop.f32.mrf.mxu0
  %3731 = vmatprep.mubr.f32.mxu0 0.0
  %3732 = vmatmul.mubr.f32.gmra.mxu0 %v3608
  %v3733 = vpop.f32.mrf.mxu0
  %v3734 = vadd.f32 0.0, %v3733
  %v3735 = vpop.f32.mrf.mxu0
  %3736 = vmatprep.mubr.f32.mxu0 0.0
  %3737 = vmatmul.mubr.f32.gmra.mxu0 %v3610
  %v3738 = vpop.f32.mrf.mxu0
  %v3739 = vadd.f32 0.0, %v3738
  %v3740 = vpop.f32.mrf.mxu0
  %3741 = vmatprep.mubr.f32.mxu0 0.0
  %3742 = vmatmul.mubr.f32.gmra.mxu0 %v3612
  %v3743 = vpop.f32.mrf.mxu0
  %v3744 = vadd.f32 0.0, %v3743
  %v3745 = vpop.f32.mrf.mxu0
  %3746 = vmatprep.mubr.f32.mxu0 0.0
  %3747 = vmatmul.mubr.f32.gmra.mxu0 %v3614
  %v3748 = vpop.f32.mrf.mxu0
  %v3749 = vadd.f32 0.0, %v3748
  %v3750 = vpop.f32.mrf.mxu0
  %3751 = vmatprep.mubr.f32.mxu0 0.0
  %3752 = vmatmul.mubr.f32.gmra.mxu0 %v3616
  %v3753 = vpop.f32.mrf.mxu0
  %v3754 = vadd.f32 0.0, %v3753
  %v3755 = vpop.f32.mrf.mxu0
  %3756 = vmatprep.mubr.f32.mxu0 0.0
  %3757 = vmatmul.mubr.f32.gmra.mxu0 %v3618
  %v3758 = vpop.f32.mrf.mxu0
  %v3759 = vadd.f32 0.0, %v3758
  %v3760 = vpop.f32.mrf.mxu0
  %3761 = vmatprep.mubr.f32.mxu0 0.0
  %3762 = vmatmul.mubr.f32.gmra.mxu0 %v3620
  %v3763 = vpop.f32.mrf.mxu0
  %v3764 = vadd.f32 0.0, %v3763
  %v3765 = vpop.f32.mrf.mxu0
  %3766 = vdwg.mxu0
  %v3767 = vmax.f32 %v3689, %v3699
  %v3768 = vmax.f32 %v3694, %v3704
  %v3769 = vmax.f32 %v3767, %v3709
  %v3770 = vmax.f32 %v3768, %v3714
  %v3771 = vmax.f32 %v3769, %v3719
  %v3772 = vmax.f32 %v3770, %v3724
  %v3773 = vmax.f32 %v3771, %v3729
  %v3774 = vmax.f32 %v3772, %v3734
  %v3775 = vmax.f32 %v3773, %v3739
  %v3776 = vmax.f32 %v3774, %v3744
  %v3777 = vmax.f32 %v3775, %v3749
  %v3778 = vmax.f32 %v3776, %v3754
  %v3779 = vmax.f32 %v3777, %v3759
  %v3780 = vmax.f32 %v3778, %v3764
  %v3781 = vsub.f32 %v3689, %v3779
  %v3782 = vsub.f32 %v3694, %v3780
  %v3783 = vmul.f32 %v3781, 1.442695
  %v3784 = vpow.pop %v3783
  %v3785 = vmul.f32 %v3782, 1.442695
  %v3786 = vpow.pop %v3785
  %v3787 = vadd.f32 %v3784, 0.0
  %v3788 = vadd.f32 %v3786, 0.0
  %v3790 = vsel %vm2131, %v3784, 0
  %v3793 = vsel %vm2131, %v3786, 0
  %3795 = vmatprep.subr.mxu0 0.0
  %3796 = vmatpush1.msra.mxu0 0.0
  %3797 = vmatprep.subr.mxu0 0.0
  %3798 = vmatpush1.msra.mxu0 0.0
  %3799 = vmatprep.subr.mxu0 0.0
  %3800 = vmatpush1.msra.mxu0 0.0
  %3801 = vmatprep.subr.mxu0 0.0
  %3802 = vmatpush1.msra.mxu0 0.0
  %3803 = vmatprep.subr.mxu0 0.0
  %3804 = vmatpush1.msra.mxu0 0.0
  %3805 = vmatprep.subr.mxu0 0.0
  %3806 = vmatpush1.msra.mxu0 0.0
  %3807 = vmatprep.subr.mxu0 0.0
  %3808 = vmatpush1.msra.mxu0 0.0
  %3809 = vmatprep.subr.mxu0 0.0
  %3810 = vmatpush1.msra.mxu0 0.0
  %3811 = vmatprep.subr.mxu0 0.0
  %3812 = vmatpush1.msra.mxu0 0.0
  %3813 = vmatprep.subr.mxu0 0.0
  %3814 = vmatpush1.msra.mxu0 0.0
  %3815 = vmatprep.subr.mxu0 0.0
  %3816 = vmatpush1.msra.mxu0 0.0
  %3817 = vmatprep.subr.mxu0 0.0
  %3818 = vmatpush1.msra.mxu0 0.0
  %3819 = vmatprep.subr.mxu0 0.0
  %3820 = vmatpush1.msra.mxu0 0.0
  %3821 = vmatprep.subr.mxu0 0.0
  %3822 = vmatpush1.msra.mxu0 0.0
  %3823 = vmatprep.subr.mxu0 0.0
  %3824 = vmatpush1.msra.mxu0 0.0
  %3825 = vmatprep.subr.mxu0 0.0
  %3826 = vmatpush1.msra.mxu0 %v44
  %3827 = vmatprep.subr.mxu0 0.0
  %3828 = vmatpush2.msra.mxu0 0.0
  %3829 = vmatprep.subr.mxu0 0.0
  %3830 = vmatpush2.msra.mxu0 0.0
  %3831 = vmatprep.subr.mxu0 0.0
  %3832 = vmatpush2.msra.mxu0 0.0
  %3833 = vmatprep.subr.mxu0 0.0
  %3834 = vmatpush2.msra.mxu0 0.0
  %3835 = vmatprep.subr.mxu0 0.0
  %3836 = vmatpush2.msra.mxu0 0.0
  %3837 = vmatprep.subr.mxu0 0.0
  %3838 = vmatpush2.msra.mxu0 0.0
  %3839 = vmatprep.subr.mxu0 0.0
  %3840 = vmatpush2.msra.mxu0 0.0
  %3841 = vmatprep.subr.mxu0 0.0
  %3842 = vmatpush2.msra.mxu0 0.0
  %3843 = vmatprep.subr.mxu0 0.0
  %3844 = vmatpush2.msra.mxu0 0.0
  %3845 = vmatprep.subr.mxu0 0.0
  %3846 = vmatpush2.msra.mxu0 0.0
  %3847 = vmatprep.subr.mxu0 0.0
  %3848 = vmatpush2.msra.mxu0 0.0
  %3849 = vmatprep.subr.mxu0 0.0
  %3850 = vmatpush2.msra.mxu0 0.0
  %3851 = vmatprep.subr.mxu0 0.0
  %3852 = vmatpush2.msra.mxu0 0.0
  %3853 = vmatprep.subr.mxu0 0.0
  %3854 = vmatpush2.msra.mxu0 0.0
  %3855 = vmatprep.subr.mxu0 0.0
  %3856 = vmatpush2.msra.mxu0 0.0
  %3857 = vmatprep.subr.mxu0 0.0
  %3858 = vmatpush2.msra.mxu0 0.0
  %3859 = vmatprep.mubr.f32.mxu0 0.0
  %3860 = vmatmul.mubr.f32.gmra.mxu0 %v3790
  %v3861 = vpop.f32.mrf.mxu0
  %v3862 = vadd.f32 0.0, %v3861
  %v3863 = vpop.f32.mrf.mxu0
  %3864 = vmatprep.mubr.f32.mxu0 0.0
  %3865 = vmatmul.mubr.f32.gmra.mxu0 %v3793
  %v3866 = vpop.f32.mrf.mxu0
  %v3867 = vadd.f32 0.0, %v3866
  %v3868 = vpop.f32.mrf.mxu0
  %3869 = vdwg.mxu0
  %3872 = vrot.lane.b32.xlu0 %v1782, 64
  %v3873 = vpop.permute.xlu0 %3872
  %3874 = vrot.lane.b32.xlu0 %v1787, 64
  %v3875 = vpop.permute.xlu0 %3874
  %v3878 = vmul.f32 %v3862, %v3873
  %v3879 = vmul.f32 %v3867, %v3875
  %v3880 = vadd.f32 %v3878, 0.0
  %v3881 = vadd.f32 %v3879, 0.0
  %v3882 = vsub.f32 %v3699, %v3779
  %v3883 = vsub.f32 %v3704, %v3780
  %v3884 = vmul.f32 %v3882, 1.442695
  %v3885 = vpow.pop %v3884
  %v3886 = vmul.f32 %v3883, 1.442695
  %v3887 = vpow.pop %v3886
  %v3888 = vadd.f32 %v3787, %v3885
  %v3889 = vadd.f32 %v3788, %v3887
  %v3891 = vsel %vm2131, %v3885, 0
  %v3894 = vsel %vm2131, %v3887, 0
  %3896 = vmatprep.subr.mxu0 0.0
  %3897 = vmatpush1.msra.mxu0 0.0
  %3898 = vmatprep.subr.mxu0 0.0
  %3899 = vmatpush1.msra.mxu0 0.0
  %3900 = vmatprep.subr.mxu0 0.0
  %3901 = vmatpush1.msra.mxu0 0.0
  %3902 = vmatprep.subr.mxu0 0.0
  %3903 = vmatpush1.msra.mxu0 0.0
  %3904 = vmatprep.subr.mxu0 0.0
  %3905 = vmatpush1.msra.mxu0 0.0
  %3906 = vmatprep.subr.mxu0 0.0
  %3907 = vmatpush1.msra.mxu0 0.0
  %3908 = vmatprep.subr.mxu0 0.0
  %3909 = vmatpush1.msra.mxu0 0.0
  %3910 = vmatprep.subr.mxu0 0.0
  %3911 = vmatpush1.msra.mxu0 0.0
  %3912 = vmatprep.subr.mxu0 0.0
  %3913 = vmatpush1.msra.mxu0 0.0
  %3914 = vmatprep.subr.mxu0 0.0
  %3915 = vmatpush1.msra.mxu0 0.0
  %3916 = vmatprep.subr.mxu0 0.0
  %3917 = vmatpush1.msra.mxu0 0.0
  %3918 = vmatprep.subr.mxu0 0.0
  %3919 = vmatpush1.msra.mxu0 0.0
  %3920 = vmatprep.subr.mxu0 0.0
  %3921 = vmatpush1.msra.mxu0 0.0
  %3922 = vmatprep.subr.mxu0 0.0
  %3923 = vmatpush1.msra.mxu0 0.0
  %3924 = vmatprep.subr.mxu0 0.0
  %3925 = vmatpush1.msra.mxu0 0.0
  %3926 = vmatprep.subr.mxu0 0.0
  %3927 = vmatpush1.msra.mxu0 %v44
  %3928 = vmatprep.subr.mxu0 0.0
  %3929 = vmatpush2.msra.mxu0 0.0
  %3930 = vmatprep.subr.mxu0 0.0
  %3931 = vmatpush2.msra.mxu0 0.0
  %3932 = vmatprep.subr.mxu0 0.0
  %3933 = vmatpush2.msra.mxu0 0.0
  %3934 = vmatprep.subr.mxu0 0.0
  %3935 = vmatpush2.msra.mxu0 0.0
  %3936 = vmatprep.subr.mxu0 0.0
  %3937 = vmatpush2.msra.mxu0 0.0
  %3938 = vmatprep.subr.mxu0 0.0
  %3939 = vmatpush2.msra.mxu0 0.0
  %3940 = vmatprep.subr.mxu0 0.0
  %3941 = vmatpush2.msra.mxu0 0.0
  %3942 = vmatprep.subr.mxu0 0.0
  %3943 = vmatpush2.msra.mxu0 0.0
  %3944 = vmatprep.subr.mxu0 0.0
  %3945 = vmatpush2.msra.mxu0 0.0
  %3946 = vmatprep.subr.mxu0 0.0
  %3947 = vmatpush2.msra.mxu0 0.0
  %3948 = vmatprep.subr.mxu0 0.0
  %3949 = vmatpush2.msra.mxu0 0.0
  %3950 = vmatprep.subr.mxu0 0.0
  %3951 = vmatpush2.msra.mxu0 0.0
  %3952 = vmatprep.subr.mxu0 0.0
  %3953 = vmatpush2.msra.mxu0 0.0
  %3954 = vmatprep.subr.mxu0 0.0
  %3955 = vmatpush2.msra.mxu0 0.0
  %3956 = vmatprep.subr.mxu0 0.0
  %3957 = vmatpush2.msra.mxu0 0.0
  %3958 = vmatprep.subr.mxu0 0.0
  %3959 = vmatpush2.msra.mxu0 0.0
  %3960 = vmatprep.mubr.f32.mxu0 0.0
  %3961 = vmatmul.mubr.f32.gmra.mxu0 %v3891
  %v3962 = vpop.f32.mrf.mxu0
  %v3963 = vadd.f32 0.0, %v3962
  %v3964 = vpop.f32.mrf.mxu0
  %3965 = vmatprep.mubr.f32.mxu0 0.0
  %3966 = vmatmul.mubr.f32.gmra.mxu0 %v3894
  %v3967 = vpop.f32.mrf.mxu0
  %v3968 = vadd.f32 0.0, %v3967
  %v3969 = vpop.f32.mrf.mxu0
  %3970 = vdwg.mxu0
  %3973 = vrot.lane.b32.xlu0 %v1792, 64
  %v3974 = vpop.permute.xlu0 %3973
  %3975 = vrot.lane.b32.xlu0 %v1797, 64
  %v3976 = vpop.permute.xlu0 %3975
  %v3979 = vmul.f32 %v3963, %v3974
  %v3980 = vmul.f32 %v3968, %v3976
  %v3981 = vadd.f32 %v3880, %v3979
  %v3982 = vadd.f32 %v3881, %v3980
  %v3983 = vsub.f32 %v3709, %v3779
  %v3984 = vsub.f32 %v3714, %v3780
  %v3985 = vmul.f32 %v3983, 1.442695
  %v3986 = vpow.pop %v3985
  %v3987 = vmul.f32 %v3984, 1.442695
  %v3988 = vpow.pop %v3987
  %v3989 = vadd.f32 %v3888, %v3986
  %v3990 = vadd.f32 %v3889, %v3988
  %v3992 = vsel %vm2131, %v3986, 0
  %v3995 = vsel %vm2131, %v3988, 0
  %3997 = vmatprep.subr.mxu0 0.0
  %3998 = vmatpush1.msra.mxu0 0.0
  %3999 = vmatprep.subr.mxu0 0.0
  %4000 = vmatpush1.msra.mxu0 0.0
  %4001 = vmatprep.subr.mxu0 0.0
  %4002 = vmatpush1.msra.mxu0 0.0
  %4003 = vmatprep.subr.mxu0 0.0
  %4004 = vmatpush1.msra.mxu0 0.0
  %4005 = vmatprep.subr.mxu0 0.0
  %4006 = vmatpush1.msra.mxu0 0.0
  %4007 = vmatprep.subr.mxu0 0.0
  %4008 = vmatpush1.msra.mxu0 0.0
  %4009 = vmatprep.subr.mxu0 0.0
  %4010 = vmatpush1.msra.mxu0 0.0
  %4011 = vmatprep.subr.mxu0 0.0
  %4012 = vmatpush1.msra.mxu0 0.0
  %4013 = vmatprep.subr.mxu0 0.0
  %4014 = vmatpush1.msra.mxu0 0.0
  %4015 = vmatprep.subr.mxu0 0.0
  %4016 = vmatpush1.msra.mxu0 0.0
  %4017 = vmatprep.subr.mxu0 0.0
  %4018 = vmatpush1.msra.mxu0 0.0
  %4019 = vmatprep.subr.mxu0 0.0
  %4020 = vmatpush1.msra.mxu0 0.0
  %4021 = vmatprep.subr.mxu0 0.0
  %4022 = vmatpush1.msra.mxu0 0.0
  %4023 = vmatprep.subr.mxu0 0.0
  %4024 = vmatpush1.msra.mxu0 0.0
  %4025 = vmatprep.subr.mxu0 0.0
  %4026 = vmatpush1.msra.mxu0 0.0
  %4027 = vmatprep.subr.mxu0 0.0
  %4028 = vmatpush1.msra.mxu0 %v44
  %4029 = vmatprep.subr.mxu0 0.0
  %4030 = vmatpush2.msra.mxu0 0.0
  %4031 = vmatprep.subr.mxu0 0.0
  %4032 = vmatpush2.msra.mxu0 0.0
  %4033 = vmatprep.subr.mxu0 0.0
  %4034 = vmatpush2.msra.mxu0 0.0
  %4035 = vmatprep.subr.mxu0 0.0
  %4036 = vmatpush2.msra.mxu0 0.0
  %4037 = vmatprep.subr.mxu0 0.0
  %4038 = vmatpush2.msra.mxu0 0.0
  %4039 = vmatprep.subr.mxu0 0.0
  %4040 = vmatpush2.msra.mxu0 0.0
  %4041 = vmatprep.subr.mxu0 0.0
  %4042 = vmatpush2.msra.mxu0 0.0
  %4043 = vmatprep.subr.mxu0 0.0
  %4044 = vmatpush2.msra.mxu0 0.0
  %4045 = vmatprep.subr.mxu0 0.0
  %4046 = vmatpush2.msra.mxu0 0.0
  %4047 = vmatprep.subr.mxu0 0.0
  %4048 = vmatpush2.msra.mxu0 0.0
  %4049 = vmatprep.subr.mxu0 0.0
  %4050 = vmatpush2.msra.mxu0 0.0
  %4051 = vmatprep.subr.mxu0 0.0
  %4052 = vmatpush2.msra.mxu0 0.0
  %4053 = vmatprep.subr.mxu0 0.0
  %4054 = vmatpush2.msra.mxu0 0.0
  %4055 = vmatprep.subr.mxu0 0.0
  %4056 = vmatpush2.msra.mxu0 0.0
  %4057 = vmatprep.subr.mxu0 0.0
  %4058 = vmatpush2.msra.mxu0 0.0
  %4059 = vmatprep.subr.mxu0 0.0
  %4060 = vmatpush2.msra.mxu0 0.0
  %4061 = vmatprep.mubr.f32.mxu0 0.0
  %4062 = vmatmul.mubr.f32.gmra.mxu0 %v3992
  %v4063 = vpop.f32.mrf.mxu0
  %v4064 = vadd.f32 0.0, %v4063
  %v4065 = vpop.f32.mrf.mxu0
  %4066 = vmatprep.mubr.f32.mxu0 0.0
  %4067 = vmatmul.mubr.f32.gmra.mxu0 %v3995
  %v4068 = vpop.f32.mrf.mxu0
  %v4069 = vadd.f32 0.0, %v4068
  %v4070 = vpop.f32.mrf.mxu0
  %4071 = vdwg.mxu0
  %4074 = vrot.lane.b32.xlu0 %v1802, 64
  %v4075 = vpop.permute.xlu0 %4074
  %4076 = vrot.lane.b32.xlu0 %v1807, 64
  %v4077 = vpop.permute.xlu0 %4076
  %v4080 = vmul.f32 %v4064, %v4075
  %v4081 = vmul.f32 %v4069, %v4077
  %v4082 = vadd.f32 %v3981, %v4080
  %v4083 = vadd.f32 %v3982, %v4081
  %v4084 = vsub.f32 %v3719, %v3779
  %v4085 = vsub.f32 %v3724, %v3780
  %v4086 = vmul.f32 %v4084, 1.442695
  %v4087 = vpow.pop %v4086
  %v4088 = vmul.f32 %v4085, 1.442695
  %v4089 = vpow.pop %v4088
  %v4090 = vadd.f32 %v3989, %v4087
  %v4091 = vadd.f32 %v3990, %v4089
  %v4093 = vsel %vm2131, %v4087, 0
  %v4096 = vsel %vm2131, %v4089, 0
  %4098 = vmatprep.subr.mxu0 0.0
  %4099 = vmatpush1.msra.mxu0 0.0
  %4100 = vmatprep.subr.mxu0 0.0
  %4101 = vmatpush1.msra.mxu0 0.0
  %4102 = vmatprep.subr.mxu0 0.0
  %4103 = vmatpush1.msra.mxu0 0.0
  %4104 = vmatprep.subr.mxu0 0.0
  %4105 = vmatpush1.msra.mxu0 0.0
  %4106 = vmatprep.subr.mxu0 0.0
  %4107 = vmatpush1.msra.mxu0 0.0
  %4108 = vmatprep.subr.mxu0 0.0
  %4109 = vmatpush1.msra.mxu0 0.0
  %4110 = vmatprep.subr.mxu0 0.0
  %4111 = vmatpush1.msra.mxu0 0.0
  %4112 = vmatprep.subr.mxu0 0.0
  %4113 = vmatpush1.msra.mxu0 0.0
  %4114 = vmatprep.subr.mxu0 0.0
  %4115 = vmatpush1.msra.mxu0 0.0
  %4116 = vmatprep.subr.mxu0 0.0
  %4117 = vmatpush1.msra.mxu0 0.0
  %4118 = vmatprep.subr.mxu0 0.0
  %4119 = vmatpush1.msra.mxu0 0.0
  %4120 = vmatprep.subr.mxu0 0.0
  %4121 = vmatpush1.msra.mxu0 0.0
  %4122 = vmatprep.subr.mxu0 0.0
  %4123 = vmatpush1.msra.mxu0 0.0
  %4124 = vmatprep.subr.mxu0 0.0
  %4125 = vmatpush1.msra.mxu0 0.0
  %4126 = vmatprep.subr.mxu0 0.0
  %4127 = vmatpush1.msra.mxu0 0.0
  %4128 = vmatprep.subr.mxu0 0.0
  %4129 = vmatpush1.msra.mxu0 %v44
  %4130 = vmatprep.subr.mxu0 0.0
  %4131 = vmatpush2.msra.mxu0 0.0
  %4132 = vmatprep.subr.mxu0 0.0
  %4133 = vmatpush2.msra.mxu0 0.0
  %4134 = vmatprep.subr.mxu0 0.0
  %4135 = vmatpush2.msra.mxu0 0.0
  %4136 = vmatprep.subr.mxu0 0.0
  %4137 = vmatpush2.msra.mxu0 0.0
  %4138 = vmatprep.subr.mxu0 0.0
  %4139 = vmatpush2.msra.mxu0 0.0
  %4140 = vmatprep.subr.mxu0 0.0
  %4141 = vmatpush2.msra.mxu0 0.0
  %4142 = vmatprep.subr.mxu0 0.0
  %4143 = vmatpush2.msra.mxu0 0.0
  %4144 = vmatprep.subr.mxu0 0.0
  %4145 = vmatpush2.msra.mxu0 0.0
  %4146 = vmatprep.subr.mxu0 0.0
  %4147 = vmatpush2.msra.mxu0 0.0
  %4148 = vmatprep.subr.mxu0 0.0
  %4149 = vmatpush2.msra.mxu0 0.0
  %4150 = vmatprep.subr.mxu0 0.0
  %4151 = vmatpush2.msra.mxu0 0.0
  %4152 = vmatprep.subr.mxu0 0.0
  %4153 = vmatpush2.msra.mxu0 0.0
  %4154 = vmatprep.subr.mxu0 0.0
  %4155 = vmatpush2.msra.mxu0 0.0
  %4156 = vmatprep.subr.mxu0 0.0
  %4157 = vmatpush2.msra.mxu0 0.0
  %4158 = vmatprep.subr.mxu0 0.0
  %4159 = vmatpush2.msra.mxu0 0.0
  %4160 = vmatprep.subr.mxu0 0.0
  %4161 = vmatpush2.msra.mxu0 0.0
  %4162 = vmatprep.mubr.f32.mxu0 0.0
  %4163 = vmatmul.mubr.f32.gmra.mxu0 %v4093
  %v4164 = vpop.f32.mrf.mxu0
  %v4165 = vadd.f32 0.0, %v4164
  %v4166 = vpop.f32.mrf.mxu0
  %4167 = vmatprep.mubr.f32.mxu0 0.0
  %4168 = vmatmul.mubr.f32.gmra.mxu0 %v4096
  %v4169 = vpop.f32.mrf.mxu0
  %v4170 = vadd.f32 0.0, %v4169
  %v4171 = vpop.f32.mrf.mxu0
  %4172 = vdwg.mxu0
  %4175 = vrot.lane.b32.xlu0 %v1812, 64
  %v4176 = vpop.permute.xlu0 %4175
  %4177 = vrot.lane.b32.xlu0 %v1817, 64
  %v4178 = vpop.permute.xlu0 %4177
  %v4181 = vmul.f32 %v4165, %v4176
  %v4182 = vmul.f32 %v4170, %v4178
  %v4183 = vadd.f32 %v4082, %v4181
  %v4184 = vadd.f32 %v4083, %v4182
  %v4185 = vsub.f32 %v3729, %v3779
  %v4186 = vsub.f32 %v3734, %v3780
  %v4187 = vmul.f32 %v4185, 1.442695
  %v4188 = vpow.pop %v4187
  %v4189 = vmul.f32 %v4186, 1.442695
  %v4190 = vpow.pop %v4189
  %v4191 = vadd.f32 %v4090, %v4188
  %v4192 = vadd.f32 %v4091, %v4190
  %v4194 = vsel %vm2131, %v4188, 0
  %v4197 = vsel %vm2131, %v4190, 0
  %4199 = vmatprep.subr.mxu0 0.0
  %4200 = vmatpush1.msra.mxu0 0.0
  %4201 = vmatprep.subr.mxu0 0.0
  %4202 = vmatpush1.msra.mxu0 0.0
  %4203 = vmatprep.subr.mxu0 0.0
  %4204 = vmatpush1.msra.mxu0 0.0
  %4205 = vmatprep.subr.mxu0 0.0
  %4206 = vmatpush1.msra.mxu0 0.0
  %4207 = vmatprep.subr.mxu0 0.0
  %4208 = vmatpush1.msra.mxu0 0.0
  %4209 = vmatprep.subr.mxu0 0.0
  %4210 = vmatpush1.msra.mxu0 0.0
  %4211 = vmatprep.subr.mxu0 0.0
  %4212 = vmatpush1.msra.mxu0 0.0
  %4213 = vmatprep.subr.mxu0 0.0
  %4214 = vmatpush1.msra.mxu0 0.0
  %4215 = vmatprep.subr.mxu0 0.0
  %4216 = vmatpush1.msra.mxu0 0.0
  %4217 = vmatprep.subr.mxu0 0.0
  %4218 = vmatpush1.msra.mxu0 0.0
  %4219 = vmatprep.subr.mxu0 0.0
  %4220 = vmatpush1.msra.mxu0 0.0
  %4221 = vmatprep.subr.mxu0 0.0
  %4222 = vmatpush1.msra.mxu0 0.0
  %4223 = vmatprep.subr.mxu0 0.0
  %4224 = vmatpush1.msra.mxu0 0.0
  %4225 = vmatprep.subr.mxu0 0.0
  %4226 = vmatpush1.msra.mxu0 0.0
  %4227 = vmatprep.subr.mxu0 0.0
  %4228 = vmatpush1.msra.mxu0 0.0
  %4229 = vmatprep.subr.mxu0 0.0
  %4230 = vmatpush1.msra.mxu0 %v44
  %4231 = vmatprep.subr.mxu0 0.0
  %4232 = vmatpush2.msra.mxu0 0.0
  %4233 = vmatprep.subr.mxu0 0.0
  %4234 = vmatpush2.msra.mxu0 0.0
  %4235 = vmatprep.subr.mxu0 0.0
  %4236 = vmatpush2.msra.mxu0 0.0
  %4237 = vmatprep.subr.mxu0 0.0
  %4238 = vmatpush2.msra.mxu0 0.0
  %4239 = vmatprep.subr.mxu0 0.0
  %4240 = vmatpush2.msra.mxu0 0.0
  %4241 = vmatprep.subr.mxu0 0.0
  %4242 = vmatpush2.msra.mxu0 0.0
  %4243 = vmatprep.subr.mxu0 0.0
  %4244 = vmatpush2.msra.mxu0 0.0
  %4245 = vmatprep.subr.mxu0 0.0
  %4246 = vmatpush2.msra.mxu0 0.0
  %4247 = vmatprep.subr.mxu0 0.0
  %4248 = vmatpush2.msra.mxu0 0.0
  %4249 = vmatprep.subr.mxu0 0.0
  %4250 = vmatpush2.msra.mxu0 0.0
  %4251 = vmatprep.subr.mxu0 0.0
  %4252 = vmatpush2.msra.mxu0 0.0
  %4253 = vmatprep.subr.mxu0 0.0
  %4254 = vmatpush2.msra.mxu0 0.0
  %4255 = vmatprep.subr.mxu0 0.0
  %4256 = vmatpush2.msra.mxu0 0.0
  %4257 = vmatprep.subr.mxu0 0.0
  %4258 = vmatpush2.msra.mxu0 0.0
  %4259 = vmatprep.subr.mxu0 0.0
  %4260 = vmatpush2.msra.mxu0 0.0
  %4261 = vmatprep.subr.mxu0 0.0
  %4262 = vmatpush2.msra.mxu0 0.0
  %4263 = vmatprep.mubr.f32.mxu0 0.0
  %4264 = vmatmul.mubr.f32.gmra.mxu0 %v4194
  %v4265 = vpop.f32.mrf.mxu0
  %v4266 = vadd.f32 0.0, %v4265
  %v4267 = vpop.f32.mrf.mxu0
  %4268 = vmatprep.mubr.f32.mxu0 0.0
  %4269 = vmatmul.mubr.f32.gmra.mxu0 %v4197
  %v4270 = vpop.f32.mrf.mxu0
  %v4271 = vadd.f32 0.0, %v4270
  %v4272 = vpop.f32.mrf.mxu0
  %4273 = vdwg.mxu0
  %4276 = vrot.lane.b32.xlu0 %v1822, 64
  %v4277 = vpop.permute.xlu0 %4276
  %4278 = vrot.lane.b32.xlu0 %v1827, 64
  %v4279 = vpop.permute.xlu0 %4278
  %v4282 = vmul.f32 %v4266, %v4277
  %v4283 = vmul.f32 %v4271, %v4279
  %v4284 = vadd.f32 %v4183, %v4282
  %v4285 = vadd.f32 %v4184, %v4283
  %v4286 = vsub.f32 %v3739, %v3779
  %v4287 = vsub.f32 %v3744, %v3780
  %v4288 = vmul.f32 %v4286, 1.442695
  %v4289 = vpow.pop %v4288
  %v4290 = vmul.f32 %v4287, 1.442695
  %v4291 = vpow.pop %v4290
  %v4292 = vadd.f32 %v4191, %v4289
  %v4293 = vadd.f32 %v4192, %v4291
  %v4295 = vsel %vm2131, %v4289, 0
  %v4298 = vsel %vm2131, %v4291, 0
  %4300 = vmatprep.subr.mxu0 0.0
  %4301 = vmatpush1.msra.mxu0 0.0
  %4302 = vmatprep.subr.mxu0 0.0
  %4303 = vmatpush1.msra.mxu0 0.0
  %4304 = vmatprep.subr.mxu0 0.0
  %4305 = vmatpush1.msra.mxu0 0.0
  %4306 = vmatprep.subr.mxu0 0.0
  %4307 = vmatpush1.msra.mxu0 0.0
  %4308 = vmatprep.subr.mxu0 0.0
  %4309 = vmatpush1.msra.mxu0 0.0
  %4310 = vmatprep.subr.mxu0 0.0
  %4311 = vmatpush1.msra.mxu0 0.0
  %4312 = vmatprep.subr.mxu0 0.0
  %4313 = vmatpush1.msra.mxu0 0.0
  %4314 = vmatprep.subr.mxu0 0.0
  %4315 = vmatpush1.msra.mxu0 0.0
  %4316 = vmatprep.subr.mxu0 0.0
  %4317 = vmatpush1.msra.mxu0 0.0
  %4318 = vmatprep.subr.mxu0 0.0
  %4319 = vmatpush1.msra.mxu0 0.0
  %4320 = vmatprep.subr.mxu0 0.0
  %4321 = vmatpush1.msra.mxu0 0.0
  %4322 = vmatprep.subr.mxu0 0.0
  %4323 = vmatpush1.msra.mxu0 0.0
  %4324 = vmatprep.subr.mxu0 0.0
  %4325 = vmatpush1.msra.mxu0 0.0
  %4326 = vmatprep.subr.mxu0 0.0
  %4327 = vmatpush1.msra.mxu0 0.0
  %4328 = vmatprep.subr.mxu0 0.0
  %4329 = vmatpush1.msra.mxu0 0.0
  %4330 = vmatprep.subr.mxu0 0.0
  %4331 = vmatpush1.msra.mxu0 %v44
  %4332 = vmatprep.subr.mxu0 0.0
  %4333 = vmatpush2.msra.mxu0 0.0
  %4334 = vmatprep.subr.mxu0 0.0
  %4335 = vmatpush2.msra.mxu0 0.0
  %4336 = vmatprep.subr.mxu0 0.0
  %4337 = vmatpush2.msra.mxu0 0.0
  %4338 = vmatprep.subr.mxu0 0.0
  %4339 = vmatpush2.msra.mxu0 0.0
  %4340 = vmatprep.subr.mxu0 0.0
  %4341 = vmatpush2.msra.mxu0 0.0
  %4342 = vmatprep.subr.mxu0 0.0
  %4343 = vmatpush2.msra.mxu0 0.0
  %4344 = vmatprep.subr.mxu0 0.0
  %4345 = vmatpush2.msra.mxu0 0.0
  %4346 = vmatprep.subr.mxu0 0.0
  %4347 = vmatpush2.msra.mxu0 0.0
  %4348 = vmatprep.subr.mxu0 0.0
  %4349 = vmatpush2.msra.mxu0 0.0
  %4350 = vmatprep.subr.mxu0 0.0
  %4351 = vmatpush2.msra.mxu0 0.0
  %4352 = vmatprep.subr.mxu0 0.0
  %4353 = vmatpush2.msra.mxu0 0.0
  %4354 = vmatprep.subr.mxu0 0.0
  %4355 = vmatpush2.msra.mxu0 0.0
  %4356 = vmatprep.subr.mxu0 0.0
  %4357 = vmatpush2.msra.mxu0 0.0
  %4358 = vmatprep.subr.mxu0 0.0
  %4359 = vmatpush2.msra.mxu0 0.0
  %4360 = vmatprep.subr.mxu0 0.0
  %4361 = vmatpush2.msra.mxu0 0.0
  %4362 = vmatprep.subr.mxu0 0.0
  %4363 = vmatpush2.msra.mxu0 0.0
  %4364 = vmatprep.mubr.f32.mxu0 0.0
  %4365 = vmatmul.mubr.f32.gmra.mxu0 %v4295
  %v4366 = vpop.f32.mrf.mxu0
  %v4367 = vadd.f32 0.0, %v4366
  %v4368 = vpop.f32.mrf.mxu0
  %4369 = vmatprep.mubr.f32.mxu0 0.0
  %4370 = vmatmul.mubr.f32.gmra.mxu0 %v4298
  %v4371 = vpop.f32.mrf.mxu0
  %v4372 = vadd.f32 0.0, %v4371
  %v4373 = vpop.f32.mrf.mxu0
  %4374 = vdwg.mxu0
  %4377 = vrot.lane.b32.xlu0 %v1832, 64
  %v4378 = vpop.permute.xlu0 %4377
  %4379 = vrot.lane.b32.xlu0 %v1837, 64
  %v4380 = vpop.permute.xlu0 %4379
  %v4383 = vmul.f32 %v4367, %v4378
  %v4384 = vmul.f32 %v4372, %v4380
  %v4385 = vadd.f32 %v4284, %v4383
  %v4386 = vadd.f32 %v4285, %v4384
  %v4387 = vsub.f32 %v3749, %v3779
  %v4388 = vsub.f32 %v3754, %v3780
  %v4389 = vmul.f32 %v4387, 1.442695
  %v4390 = vpow.pop %v4389
  %v4391 = vmul.f32 %v4388, 1.442695
  %v4392 = vpow.pop %v4391
  %v4393 = vadd.f32 %v4292, %v4390
  %v4394 = vadd.f32 %v4293, %v4392
  %v4396 = vsel %vm2131, %v4390, 0
  %v4399 = vsel %vm2131, %v4392, 0
  %4401 = vmatprep.subr.mxu0 0.0
  %4402 = vmatpush1.msra.mxu0 0.0
  %4403 = vmatprep.subr.mxu0 0.0
  %4404 = vmatpush1.msra.mxu0 0.0
  %4405 = vmatprep.subr.mxu0 0.0
  %4406 = vmatpush1.msra.mxu0 0.0
  %4407 = vmatprep.subr.mxu0 0.0
  %4408 = vmatpush1.msra.mxu0 0.0
  %4409 = vmatprep.subr.mxu0 0.0
  %4410 = vmatpush1.msra.mxu0 0.0
  %4411 = vmatprep.subr.mxu0 0.0
  %4412 = vmatpush1.msra.mxu0 0.0
  %4413 = vmatprep.subr.mxu0 0.0
  %4414 = vmatpush1.msra.mxu0 0.0
  %4415 = vmatprep.subr.mxu0 0.0
  %4416 = vmatpush1.msra.mxu0 0.0
  %4417 = vmatprep.subr.mxu0 0.0
  %4418 = vmatpush1.msra.mxu0 0.0
  %4419 = vmatprep.subr.mxu0 0.0
  %4420 = vmatpush1.msra.mxu0 0.0
  %4421 = vmatprep.subr.mxu0 0.0
  %4422 = vmatpush1.msra.mxu0 0.0
  %4423 = vmatprep.subr.mxu0 0.0
  %4424 = vmatpush1.msra.mxu0 0.0
  %4425 = vmatprep.subr.mxu0 0.0
  %4426 = vmatpush1.msra.mxu0 0.0
  %4427 = vmatprep.subr.mxu0 0.0
  %4428 = vmatpush1.msra.mxu0 0.0
  %4429 = vmatprep.subr.mxu0 0.0
  %4430 = vmatpush1.msra.mxu0 0.0
  %4431 = vmatprep.subr.mxu0 0.0
  %4432 = vmatpush1.msra.mxu0 %v44
  %4433 = vmatprep.subr.mxu0 0.0
  %4434 = vmatpush2.msra.mxu0 0.0
  %4435 = vmatprep.subr.mxu0 0.0
  %4436 = vmatpush2.msra.mxu0 0.0
  %4437 = vmatprep.subr.mxu0 0.0
  %4438 = vmatpush2.msra.mxu0 0.0
  %4439 = vmatprep.subr.mxu0 0.0
  %4440 = vmatpush2.msra.mxu0 0.0
  %4441 = vmatprep.subr.mxu0 0.0
  %4442 = vmatpush2.msra.mxu0 0.0
  %4443 = vmatprep.subr.mxu0 0.0
  %4444 = vmatpush2.msra.mxu0 0.0
  %4445 = vmatprep.subr.mxu0 0.0
  %4446 = vmatpush2.msra.mxu0 0.0
  %4447 = vmatprep.subr.mxu0 0.0
  %4448 = vmatpush2.msra.mxu0 0.0
  %4449 = vmatprep.subr.mxu0 0.0
  %4450 = vmatpush2.msra.mxu0 0.0
  %4451 = vmatprep.subr.mxu0 0.0
  %4452 = vmatpush2.msra.mxu0 0.0
  %4453 = vmatprep.subr.mxu0 0.0
  %4454 = vmatpush2.msra.mxu0 0.0
  %4455 = vmatprep.subr.mxu0 0.0
  %4456 = vmatpush2.msra.mxu0 0.0
  %4457 = vmatprep.subr.mxu0 0.0
  %4458 = vmatpush2.msra.mxu0 0.0
  %4459 = vmatprep.subr.mxu0 0.0
  %4460 = vmatpush2.msra.mxu0 0.0
  %4461 = vmatprep.subr.mxu0 0.0
  %4462 = vmatpush2.msra.mxu0 0.0
  %4463 = vmatprep.subr.mxu0 0.0
  %4464 = vmatpush2.msra.mxu0 0.0
  %4465 = vmatprep.mubr.f32.mxu0 0.0
  %4466 = vmatmul.mubr.f32.gmra.mxu0 %v4396
  %v4467 = vpop.f32.mrf.mxu0
  %v4468 = vadd.f32 0.0, %v4467
  %v4469 = vpop.f32.mrf.mxu0
  %4470 = vmatprep.mubr.f32.mxu0 0.0
  %4471 = vmatmul.mubr.f32.gmra.mxu0 %v4399
  %v4472 = vpop.f32.mrf.mxu0
  %v4473 = vadd.f32 0.0, %v4472
  %v4474 = vpop.f32.mrf.mxu0
  %4475 = vdwg.mxu0
  %4478 = vrot.lane.b32.xlu0 %v1842, 64
  %v4479 = vpop.permute.xlu0 %4478
  %4480 = vrot.lane.b32.xlu0 %v1847, 64
  %v4481 = vpop.permute.xlu0 %4480
  %v4484 = vmul.f32 %v4468, %v4479
  %v4485 = vmul.f32 %v4473, %v4481
  %v4486 = vadd.f32 %v4385, %v4484
  %v4487 = vadd.f32 %v4386, %v4485
  %v4488 = vsub.f32 %v3759, %v3779
  %v4489 = vsub.f32 %v3764, %v3780
  %v4490 = vmul.f32 %v4488, 1.442695
  %v4491 = vpow.pop %v4490
  %v4492 = vmul.f32 %v4489, 1.442695
  %v4493 = vpow.pop %v4492
  %v4494 = vadd.f32 %v4393, %v4491
  %v4495 = vadd.f32 %v4394, %v4493
  %v4497 = vsel %vm2131, %v4491, 0
  %v4500 = vsel %vm2131, %v4493, 0
  %4502 = vmatprep.subr.mxu0 0.0
  %4503 = vmatpush1.msra.mxu0 0.0
  %4504 = vmatprep.subr.mxu0 0.0
  %4505 = vmatpush1.msra.mxu0 0.0
  %4506 = vmatprep.subr.mxu0 0.0
  %4507 = vmatpush1.msra.mxu0 0.0
  %4508 = vmatprep.subr.mxu0 0.0
  %4509 = vmatpush1.msra.mxu0 0.0
  %4510 = vmatprep.subr.mxu0 0.0
  %4511 = vmatpush1.msra.mxu0 0.0
  %4512 = vmatprep.subr.mxu0 0.0
  %4513 = vmatpush1.msra.mxu0 0.0
  %4514 = vmatprep.subr.mxu0 0.0
  %4515 = vmatpush1.msra.mxu0 0.0
  %4516 = vmatprep.subr.mxu0 0.0
  %4517 = vmatpush1.msra.mxu0 0.0
  %4518 = vmatprep.subr.mxu0 0.0
  %4519 = vmatpush1.msra.mxu0 0.0
  %4520 = vmatprep.subr.mxu0 0.0
  %4521 = vmatpush1.msra.mxu0 0.0
  %4522 = vmatprep.subr.mxu0 0.0
  %4523 = vmatpush1.msra.mxu0 0.0
  %4524 = vmatprep.subr.mxu0 0.0
  %4525 = vmatpush1.msra.mxu0 0.0
  %4526 = vmatprep.subr.mxu0 0.0
  %4527 = vmatpush1.msra.mxu0 0.0
  %4528 = vmatprep.subr.mxu0 0.0
  %4529 = vmatpush1.msra.mxu0 0.0
  %4530 = vmatprep.subr.mxu0 0.0
  %4531 = vmatpush1.msra.mxu0 0.0
  %4532 = vmatprep.subr.mxu0 0.0
  %4533 = vmatpush1.msra.mxu0 %v44
  %4534 = vmatprep.subr.mxu0 0.0
  %4535 = vmatpush2.msra.mxu0 0.0
  %4536 = vmatprep.subr.mxu0 0.0
  %4537 = vmatpush2.msra.mxu0 0.0
  %4538 = vmatprep.subr.mxu0 0.0
  %4539 = vmatpush2.msra.mxu0 0.0
  %4540 = vmatprep.subr.mxu0 0.0
  %4541 = vmatpush2.msra.mxu0 0.0
  %4542 = vmatprep.subr.mxu0 0.0
  %4543 = vmatpush2.msra.mxu0 0.0
  %4544 = vmatprep.subr.mxu0 0.0
  %4545 = vmatpush2.msra.mxu0 0.0
  %4546 = vmatprep.subr.mxu0 0.0
  %4547 = vmatpush2.msra.mxu0 0.0
  %4548 = vmatprep.subr.mxu0 0.0
  %4549 = vmatpush2.msra.mxu0 0.0
  %4550 = vmatprep.subr.mxu0 0.0
  %4551 = vmatpush2.msra.mxu0 0.0
  %4552 = vmatprep.subr.mxu0 0.0
  %4553 = vmatpush2.msra.mxu0 0.0
  %4554 = vmatprep.subr.mxu0 0.0
  %4555 = vmatpush2.msra.mxu0 0.0
  %4556 = vmatprep.subr.mxu0 0.0
  %4557 = vmatpush2.msra.mxu0 0.0
  %4558 = vmatprep.subr.mxu0 0.0
  %4559 = vmatpush2.msra.mxu0 0.0
  %4560 = vmatprep.subr.mxu0 0.0
  %4561 = vmatpush2.msra.mxu0 0.0
  %4562 = vmatprep.subr.mxu0 0.0
  %4563 = vmatpush2.msra.mxu0 0.0
  %4564 = vmatprep.subr.mxu0 0.0
  %4565 = vmatpush2.msra.mxu0 0.0
  %4566 = vmatprep.mubr.f32.mxu0 0.0
  %4567 = vmatmul.mubr.f32.gmra.mxu0 %v4497
  %v4568 = vpop.f32.mrf.mxu0
  %v4569 = vadd.f32 0.0, %v4568
  %v4570 = vpop.f32.mrf.mxu0
  %4571 = vmatprep.mubr.f32.mxu0 0.0
  %4572 = vmatmul.mubr.f32.gmra.mxu0 %v4500
  %v4573 = vpop.f32.mrf.mxu0
  %v4574 = vadd.f32 0.0, %v4573
  %v4575 = vpop.f32.mrf.mxu0
  %4576 = vdwg.mxu0
  %4577 = vrot.lane.b32.xlu0 %v1852, 64
  %v4578 = vpop.permute.xlu0 %4577
  %4579 = vrot.lane.b32.xlu0 %v1857, 64
  %v4580 = vpop.permute.xlu0 %4579
  %v4583 = vmul.f32 %v4569, %v4578
  %v4584 = vmul.f32 %v4574, %v4580
  %v4585 = vadd.f32 %v4486, %v4583
  %v4586 = vadd.f32 %v4487, %v4584
  %v4587 = vrcp.pop %v4494
  %v4588 = vrcp.pop %v4495
  %v4590 = vsel %vm2131, %v4587, 0
  %v4593 = vsel %vm2131, %v4588, 0
  %4595 = vmatprep.subr.mxu0 0.0
  %4596 = vmatpush1.msra.mxu0 0.0
  %4597 = vmatprep.subr.mxu0 0.0
  %4598 = vmatpush1.msra.mxu0 0.0
  %4599 = vmatprep.subr.mxu0 0.0
  %4600 = vmatpush1.msra.mxu0 0.0
  %4601 = vmatprep.subr.mxu0 0.0
  %4602 = vmatpush1.msra.mxu0 0.0
  %4603 = vmatprep.subr.mxu0 0.0
  %4604 = vmatpush1.msra.mxu0 0.0
  %4605 = vmatprep.subr.mxu0 0.0
  %4606 = vmatpush1.msra.mxu0 0.0
  %4607 = vmatprep.subr.mxu0 0.0
  %4608 = vmatpush1.msra.mxu0 0.0
  %4609 = vmatprep.subr.mxu0 0.0
  %4610 = vmatpush1.msra.mxu0 0.0
  %4611 = vmatprep.subr.mxu0 0.0
  %4612 = vmatpush1.msra.mxu0 0.0
  %4613 = vmatprep.subr.mxu0 0.0
  %4614 = vmatpush1.msra.mxu0 0.0
  %4615 = vmatprep.subr.mxu0 0.0
  %4616 = vmatpush1.msra.mxu0 0.0
  %4617 = vmatprep.subr.mxu0 0.0
  %4618 = vmatpush1.msra.mxu0 0.0
  %4619 = vmatprep.subr.mxu0 0.0
  %4620 = vmatpush1.msra.mxu0 0.0
  %4621 = vmatprep.subr.mxu0 0.0
  %4622 = vmatpush1.msra.mxu0 0.0
  %4623 = vmatprep.subr.mxu0 0.0
  %4624 = vmatpush1.msra.mxu0 0.0
  %4625 = vmatprep.subr.mxu0 0.0
  %4626 = vmatpush1.msra.mxu0 %v44
  %4627 = vmatprep.subr.mxu0 0.0
  %4628 = vmatpush2.msra.mxu0 0.0
  %4629 = vmatprep.subr.mxu0 0.0
  %4630 = vmatpush2.msra.mxu0 0.0
  %4631 = vmatprep.subr.mxu0 0.0
  %4632 = vmatpush2.msra.mxu0 0.0
  %4633 = vmatprep.subr.mxu0 0.0
  %4634 = vmatpush2.msra.mxu0 0.0
  %4635 = vmatprep.subr.mxu0 0.0
  %4636 = vmatpush2.msra.mxu0 0.0
  %4637 = vmatprep.subr.mxu0 0.0
  %4638 = vmatpush2.msra.mxu0 0.0
  %4639 = vmatprep.subr.mxu0 0.0
  %4640 = vmatpush2.msra.mxu0 0.0
  %4641 = vmatprep.subr.mxu0 0.0
  %4642 = vmatpush2.msra.mxu0 0.0
  %4643 = vmatprep.subr.mxu0 0.0
  %4644 = vmatpush2.msra.mxu0 0.0
  %4645 = vmatprep.subr.mxu0 0.0
  %4646 = vmatpush2.msra.mxu0 0.0
  %4647 = vmatprep.subr.mxu0 0.0
  %4648 = vmatpush2.msra.mxu0 0.0
  %4649 = vmatprep.subr.mxu0 0.0
  %4650 = vmatpush2.msra.mxu0 0.0
  %4651 = vmatprep.subr.mxu0 0.0
  %4652 = vmatpush2.msra.mxu0 0.0
  %4653 = vmatprep.subr.mxu0 0.0
  %4654 = vmatpush2.msra.mxu0 0.0
  %4655 = vmatprep.subr.mxu0 0.0
  %4656 = vmatpush2.msra.mxu0 0.0
  %4657 = vmatprep.subr.mxu0 0.0
  %4658 = vmatpush2.msra.mxu0 0.0
  %4659 = vmatprep.mubr.f32.mxu0 0.0
  %4660 = vmatmul.mubr.f32.gmra.mxu0 %v4590
  %v4661 = vpop.f32.mrf.mxu0
  %v4662 = vadd.f32 0.0, %v4661
  %v4663 = vpop.f32.mrf.mxu0
  %4664 = vmatprep.mubr.f32.mxu0 0.0
  %4665 = vmatmul.mubr.f32.gmra.mxu0 %v4593
  %v4666 = vpop.f32.mrf.mxu0
  %v4667 = vadd.f32 0.0, %v4666
  %v4668 = vpop.f32.mrf.mxu0
  %4669 = vdwg.mxu0
  %v4670 = vmul.f32 %v4585, %v4662
  %v4671 = vmul.f32 %v4586, %v4667
  %v4673 = vsel %vm685, %v4670, 0
  %v4676 = vsel %vm685, %v4671, 0
  %4678 = vmatprep.subr.mxu0 0.0
  %4679 = vmatpush1.msra.mxu0 0.0
  %4680 = vmatprep.subr.mxu0 0.0
  %4681 = vmatpush1.msra.mxu0 0.0
  %4682 = vmatprep.subr.mxu0 0.0
  %4683 = vmatpush1.msra.mxu0 0.0
  %4684 = vmatprep.subr.mxu0 0.0
  %4685 = vmatpush1.msra.mxu0 0.0
  %4686 = vmatprep.subr.mxu0 0.0
  %4687 = vmatpush1.msra.mxu0 0.0
  %4688 = vmatprep.subr.mxu0 0.0
  %4689 = vmatpush1.msra.mxu0 0.0
  %4690 = vmatprep.subr.mxu0 0.0
  %4691 = vmatpush1.msra.mxu0 0.0
  %4692 = vmatprep.subr.mxu0 0.0
  %4693 = vmatpush1.msra.mxu0 0.0
  %4694 = vmatprep.subr.mxu0 0.0
  %4695 = vmatpush1.msra.mxu0 0.0
  %4696 = vmatprep.subr.mxu0 0.0
  %4697 = vmatpush1.msra.mxu0 0.0
  %4698 = vmatprep.subr.mxu0 0.0
  %4699 = vmatpush1.msra.mxu0 0.0
  %4700 = vmatprep.subr.mxu0 0.0
  %4701 = vmatpush1.msra.mxu0 0.0
  %4702 = vmatprep.subr.mxu0 0.0
  %4703 = vmatpush1.msra.mxu0 %v27
  %4704 = vmatprep.subr.mxu0 0.0
  %4705 = vmatpush1.msra.mxu0 %v26
  %4706 = vmatprep.subr.mxu0 0.0
  %4707 = vmatpush1.msra.mxu0 %v25
  %4708 = vmatprep.subr.mxu0 0.0
  %4709 = vmatpush1.msra.mxu0 %v24
  %4710 = vmatprep.subr.mxu0 0.0
  %4711 = vmatpush2.msra.mxu0 0.0
  %4712 = vmatprep.subr.mxu0 0.0
  %4713 = vmatpush2.msra.mxu0 0.0
  %4714 = vmatprep.subr.mxu0 0.0
  %4715 = vmatpush2.msra.mxu0 0.0
  %4716 = vmatprep.subr.mxu0 0.0
  %4717 = vmatpush2.msra.mxu0 0.0
  %4718 = vmatprep.subr.mxu0 0.0
  %4719 = vmatpush2.msra.mxu0 0.0
  %4720 = vmatprep.subr.mxu0 0.0
  %4721 = vmatpush2.msra.mxu0 0.0
  %4722 = vmatprep.subr.mxu0 0.0
  %4723 = vmatpush2.msra.mxu0 0.0
  %4724 = vmatprep.subr.mxu0 0.0
  %4725 = vmatpush2.msra.mxu0 0.0
  %4726 = vmatprep.subr.mxu0 0.0
  %4727 = vmatpush2.msra.mxu0 0.0
  %4728 = vmatprep.subr.mxu0 0.0
  %4729 = vmatpush2.msra.mxu0 0.0
  %4730 = vmatprep.subr.mxu0 0.0
  %4731 = vmatpush2.msra.mxu0 0.0
  %4732 = vmatprep.subr.mxu0 0.0
  %4733 = vmatpush2.msra.mxu0 0.0
  %4734 = vmatprep.subr.mxu0 0.0
  %4735 = vmatpush2.msra.mxu0 0.0
  %4736 = vmatprep.subr.mxu0 0.0
  %4737 = vmatpush2.msra.mxu0 0.0
  %4738 = vmatprep.subr.mxu0 0.0
  %4739 = vmatpush2.msra.mxu0 0.0
  %4740 = vmatprep.subr.mxu0 0.0
  %4741 = vmatpush2.msra.mxu0 0.0
  %4742 = vmatprep.mubr.f32.mxu0 0.0
  %4743 = vmatmul.mubr.f32.gmra.mxu0 %v4673
  %v4744 = vpop.f32.mrf.mxu0
  %v4745 = vadd.f32 %v3018, %v4744
  %v4746 = vpop.f32.mrf.mxu0
  %4747 = vmatprep.mubr.f32.mxu0 0.0
  %4748 = vmatmul.mubr.f32.gmra.mxu0 %v4676
  %v4749 = vpop.f32.mrf.mxu0
  %v4750 = vadd.f32 %v3018, %v4749
  %v4751 = vpop.f32.mrf.mxu0
  %4752 = vdwg.mxu0
  %4753 = vmatprep.subr.mxu0 0.0
  %4754 = vmatpush1.msra.mxu0 0.0
  %4755 = vmatprep.subr.mxu0 0.0
  %4756 = vmatpush1.msra.mxu0 0.0
  %4757 = vmatprep.subr.mxu0 0.0
  %4758 = vmatpush1.msra.mxu0 0.0
  %4759 = vmatprep.subr.mxu0 0.0
  %4760 = vmatpush1.msra.mxu0 0.0
  %4761 = vmatprep.subr.mxu0 0.0
  %4762 = vmatpush1.msra.mxu0 0.0
  %4763 = vmatprep.subr.mxu0 0.0
  %4764 = vmatpush1.msra.mxu0 0.0
  %4765 = vmatprep.subr.mxu0 0.0
  %4766 = vmatpush1.msra.mxu0 0.0
  %4767 = vmatprep.subr.mxu0 0.0
  %4768 = vmatpush1.msra.mxu0 0.0
  %4769 = vmatprep.subr.mxu0 0.0
  %4770 = vmatpush1.msra.mxu0 0.0
  %4771 = vmatprep.subr.mxu0 0.0
  %4772 = vmatpush1.msra.mxu0 0.0
  %4773 = vmatprep.subr.mxu0 0.0
  %4774 = vmatpush1.msra.mxu0 0.0
  %4775 = vmatprep.subr.mxu0 0.0
  %4776 = vmatpush1.msra.mxu0 0.0
  %4777 = vmatprep.subr.mxu0 0.0
  %4778 = vmatpush1.msra.mxu0 0.0
  %4779 = vmatprep.subr.mxu0 0.0
  %4780 = vmatpush1.msra.mxu0 0.0
  %4781 = vmatprep.subr.mxu0 0.0
  %4782 = vmatpush1.msra.mxu0 %v4750
  %4783 = vmatprep.subr.mxu0 0.0
  %4784 = vmatpush1.msra.mxu0 %v4745
  %4785 = vmatprep.subr.mxu0 0.0
  %4786 = vmatpush2.msra.mxu0 0.0
  %4787 = vmatprep.subr.mxu0 0.0
  %4788 = vmatpush2.msra.mxu0 0.0
  %4789 = vmatprep.subr.mxu0 0.0
  %4790 = vmatpush2.msra.mxu0 0.0
  %4791 = vmatprep.subr.mxu0 0.0
  %4792 = vmatpush2.msra.mxu0 0.0
  %4793 = vmatprep.subr.mxu0 0.0
  %4794 = vmatpush2.msra.mxu0 0.0
  %4795 = vmatprep.subr.mxu0 0.0
  %4796 = vmatpush2.msra.mxu0 0.0
  %4797 = vmatprep.subr.mxu0 0.0
  %4798 = vmatpush2.msra.mxu0 0.0
  %4799 = vmatprep.subr.mxu0 0.0
  %4800 = vmatpush2.msra.mxu0 0.0
  %4801 = vmatprep.subr.mxu0 0.0
  %4802 = vmatpush2.msra.mxu0 0.0
  %4803 = vmatprep.subr.mxu0 0.0
  %4804 = vmatpush2.msra.mxu0 0.0
  %4805 = vmatprep.subr.mxu0 0.0
  %4806 = vmatpush2.msra.mxu0 0.0
  %4807 = vmatprep.subr.mxu0 0.0
  %4808 = vmatpush2.msra.mxu0 0.0
  %4809 = vmatprep.subr.mxu0 0.0
  %4810 = vmatpush2.msra.mxu0 0.0
  %4811 = vmatprep.subr.mxu0 0.0
  %4812 = vmatpush2.msra.mxu0 0.0
  %4813 = vmatprep.subr.mxu0 0.0
  %4814 = vmatpush2.msra.mxu0 0.0
  %4815 = vmatprep.subr.mxu0 0.0
  %4816 = vmatpush2.msra.mxu0 0.0
  %4817 = vmatprep.mubr.f32.mxu0 0.0
  %4818 = vmatmul.mubr.f32.gmra.mxu0 %v3102
  %v4819 = vpop.f32.mrf.mxu0
  %v4820 = vadd.f32 0.0, %v4819
  %v4821 = vpop.f32.mrf.mxu0
  %4822 = vmatprep.mubr.f32.mxu0 0.0
  %4823 = vmatmul.mubr.f32.gmra.mxu0 %v3105
  %v4824 = vpop.f32.mrf.mxu0
  %v4825 = vadd.f32 0.0, %v4824
  %v4826 = vpop.f32.mrf.mxu0
  %4827 = vdwg.mxu0
  %v4829 = vsel %vm685, %v4820, 0
  %v4832 = vsel %vm685, %v4825, 0
  %4834 = vmatprep.subr.mxu0 0.0
  %4835 = vmatpush1.msra.mxu0 0.0
  %4836 = vmatprep.subr.mxu0 0.0
  %4837 = vmatpush1.msra.mxu0 0.0
  %4838 = vmatprep.subr.mxu0 0.0
  %4839 = vmatpush1.msra.mxu0 0.0
  %4840 = vmatprep.subr.mxu0 0.0
  %4841 = vmatpush1.msra.mxu0 0.0
  %4842 = vmatprep.subr.mxu0 0.0
  %4843 = vmatpush1.msra.mxu0 0.0
  %4844 = vmatprep.subr.mxu0 0.0
  %4845 = vmatpush1.msra.mxu0 0.0
  %4846 = vmatprep.subr.mxu0 0.0
  %4847 = vmatpush1.msra.mxu0 0.0
  %4848 = vmatprep.subr.mxu0 0.0
  %4849 = vmatpush1.msra.mxu0 0.0
  %4850 = vmatprep.subr.mxu0 0.0
  %4851 = vmatpush1.msra.mxu0 0.0
  %4852 = vmatprep.subr.mxu0 0.0
  %4853 = vmatpush1.msra.mxu0 0.0
  %4854 = vmatprep.subr.mxu0 0.0
  %4855 = vmatpush1.msra.mxu0 0.0
  %4856 = vmatprep.subr.mxu0 0.0
  %4857 = vmatpush1.msra.mxu0 0.0
  %4858 = vmatprep.subr.mxu0 0.0
  %4859 = vmatpush1.msra.mxu0 %v31
  %4860 = vmatprep.subr.mxu0 0.0
  %4861 = vmatpush1.msra.mxu0 %v30
  %4862 = vmatprep.subr.mxu0 0.0
  %4863 = vmatpush1.msra.mxu0 %v29
  %4864 = vmatprep.subr.mxu0 0.0
  %4865 = vmatpush1.msra.mxu0 %v28
  %4866 = vmatprep.subr.mxu0 0.0
  %4867 = vmatpush2.msra.mxu0 0.0
  %4868 = vmatprep.subr.mxu0 0.0
  %4869 = vmatpush2.msra.mxu0 0.0
  %4870 = vmatprep.subr.mxu0 0.0
  %4871 = vmatpush2.msra.mxu0 0.0
  %4872 = vmatprep.subr.mxu0 0.0
  %4873 = vmatpush2.msra.mxu0 0.0
  %4874 = vmatprep.subr.mxu0 0.0
  %4875 = vmatpush2.msra.mxu0 0.0
  %4876 = vmatprep.subr.mxu0 0.0
  %4877 = vmatpush2.msra.mxu0 0.0
  %4878 = vmatprep.subr.mxu0 0.0
  %4879 = vmatpush2.msra.mxu0 0.0
  %4880 = vmatprep.subr.mxu0 0.0
  %4881 = vmatpush2.msra.mxu0 0.0
  %4882 = vmatprep.subr.mxu0 0.0
  %4883 = vmatpush2.msra.mxu0 0.0
  %4884 = vmatprep.subr.mxu0 0.0
  %4885 = vmatpush2.msra.mxu0 0.0
  %4886 = vmatprep.subr.mxu0 0.0
  %4887 = vmatpush2.msra.mxu0 0.0
  %4888 = vmatprep.subr.mxu0 0.0
  %4889 = vmatpush2.msra.mxu0 0.0
  %4890 = vmatprep.subr.mxu0 0.0
  %4891 = vmatpush2.msra.mxu0 0.0
  %4892 = vmatprep.subr.mxu0 0.0
  %4893 = vmatpush2.msra.mxu0 0.0
  %4894 = vmatprep.subr.mxu0 0.0
  %4895 = vmatpush2.msra.mxu0 0.0
  %4896 = vmatprep.subr.mxu0 0.0
  %4897 = vmatpush2.msra.mxu0 0.0
  %4898 = vmatprep.mubr.f32.mxu0 0.0
  %4899 = vmatmul.mubr.f32.gmra.mxu0 %v4829
  %v4900 = vpop.f32.mrf.mxu0
  %v4901 = vadd.f32 %v3185, %v4900
  %v4902 = vpop.f32.mrf.mxu0
  %4903 = vmatprep.mubr.f32.mxu0 0.0
  %4904 = vmatmul.mubr.f32.gmra.mxu0 %v4832
  %v4905 = vpop.f32.mrf.mxu0
  %v4906 = vadd.f32 %v3185, %v4905
  %v4907 = vpop.f32.mrf.mxu0
  %4908 = vdwg.mxu0
  %v4909 = vmax.f32 %v4901, 0.0
  %v4910 = vmax.f32 %v4906, 0.0
  %4911 = vmatprep.subr.mxu0 0.0
  %4912 = vmatpush1.msra.mxu0 0.0
  %4913 = vmatprep.subr.mxu0 0.0
  %4914 = vmatpush1.msra.mxu0 0.0
  %4915 = vmatprep.subr.mxu0 0.0
  %4916 = vmatpush1.msra.mxu0 0.0
  %4917 = vmatprep.subr.mxu0 0.0
  %4918 = vmatpush1.msra.mxu0 0.0
  %4919 = vmatprep.subr.mxu0 0.0
  %4920 = vmatpush1.msra.mxu0 0.0
  %4921 = vmatprep.subr.mxu0 0.0
  %4922 = vmatpush1.msra.mxu0 0.0
  %4923 = vmatprep.subr.mxu0 0.0
  %4924 = vmatpush1.msra.mxu0 0.0
  %4925 = vmatprep.subr.mxu0 0.0
  %4926 = vmatpush1.msra.mxu0 0.0
  %4927 = vmatprep.subr.mxu0 0.0
  %4928 = vmatpush1.msra.mxu0 0.0
  %4929 = vmatprep.subr.mxu0 0.0
  %4930 = vmatpush1.msra.mxu0 0.0
  %4931 = vmatprep.subr.mxu0 0.0
  %4932 = vmatpush1.msra.mxu0 0.0
  %4933 = vmatprep.subr.mxu0 0.0
  %4934 = vmatpush1.msra.mxu0 0.0
  %4935 = vmatprep.subr.mxu0 0.0
  %4936 = vmatpush1.msra.mxu0 0.0
  %4937 = vmatprep.subr.mxu0 0.0
  %4938 = vmatpush1.msra.mxu0 0.0
  %4939 = vmatprep.subr.mxu0 0.0
  %4940 = vmatpush1.msra.mxu0 %v4910
  %4941 = vmatprep.subr.mxu0 0.0
  %4942 = vmatpush1.msra.mxu0 %v4909
  %4943 = vmatprep.subr.mxu0 0.0
  %4944 = vmatpush2.msra.mxu0 0.0
  %4945 = vmatprep.subr.mxu0 0.0
  %4946 = vmatpush2.msra.mxu0 0.0
  %4947 = vmatprep.subr.mxu0 0.0
  %4948 = vmatpush2.msra.mxu0 0.0
  %4949 = vmatprep.subr.mxu0 0.0
  %4950 = vmatpush2.msra.mxu0 0.0
  %4951 = vmatprep.subr.mxu0 0.0
  %4952 = vmatpush2.msra.mxu0 0.0
  %4953 = vmatprep.subr.mxu0 0.0
  %4954 = vmatpush2.msra.mxu0 0.0
  %4955 = vmatprep.subr.mxu0 0.0
  %4956 = vmatpush2.msra.mxu0 0.0
  %4957 = vmatprep.subr.mxu0 0.0
  %4958 = vmatpush2.msra.mxu0 0.0
  %4959 = vmatprep.subr.mxu0 0.0
  %4960 = vmatpush2.msra.mxu0 0.0
  %4961 = vmatprep.subr.mxu0 0.0
  %4962 = vmatpush2.msra.mxu0 0.0
  %4963 = vmatprep.subr.mxu0 0.0
  %4964 = vmatpush2.msra.mxu0 0.0
  %4965 = vmatprep.subr.mxu0 0.0
  %4966 = vmatpush2.msra.mxu0 0.0
  %4967 = vmatprep.subr.mxu0 0.0
  %4968 = vmatpush2.msra.mxu0 0.0
  %4969 = vmatprep.subr.mxu0 0.0
  %4970 = vmatpush2.msra.mxu0 0.0
  %4971 = vmatprep.subr.mxu0 0.0
  %4972 = vmatpush2.msra.mxu0 0.0
  %4973 = vmatprep.subr.mxu0 0.0
  %4974 = vmatpush2.msra.mxu0 0.0
  %4975 = vmatprep.mubr.f32.mxu0 0.0
  %4976 = vmatmul.mubr.f32.gmra.mxu0 %v3102
  %v4977 = vpop.f32.mrf.mxu0
  %v4978 = vadd.f32 0.0, %v4977
  %v4979 = vpop.f32.mrf.mxu0
  %4980 = vmatprep.mubr.f32.mxu0 0.0
  %4981 = vmatmul.mubr.f32.gmra.mxu0 %v3105
  %v4982 = vpop.f32.mrf.mxu0
  %v4983 = vadd.f32 0.0, %v4982
  %v4984 = vpop.f32.mrf.mxu0
  %4985 = vdwg.mxu0
  %v4987 = vsel %vm685, %v4978, 0
  %v4990 = vsel %vm685, %v4983, 0
  %4992 = vmatprep.subr.mxu0 0.0
  %4993 = vmatpush1.msra.mxu0 0.0
  %4994 = vmatprep.subr.mxu0 0.0
  %4995 = vmatpush1.msra.mxu0 0.0
  %4996 = vmatprep.subr.mxu0 0.0
  %4997 = vmatpush1.msra.mxu0 0.0
  %4998 = vmatprep.subr.mxu0 0.0
  %4999 = vmatpush1.msra.mxu0 0.0
  %5000 = vmatprep.subr.mxu0 0.0
  %5001 = vmatpush1.msra.mxu0 0.0
  %5002 = vmatprep.subr.mxu0 0.0
  %5003 = vmatpush1.msra.mxu0 0.0
  %5004 = vmatprep.subr.mxu0 0.0
  %5005 = vmatpush1.msra.mxu0 0.0
  %5006 = vmatprep.subr.mxu0 0.0
  %5007 = vmatpush1.msra.mxu0 0.0
  %5008 = vmatprep.subr.mxu0 0.0
  %5009 = vmatpush1.msra.mxu0 0.0
  %5010 = vmatprep.subr.mxu0 0.0
  %5011 = vmatpush1.msra.mxu0 0.0
  %5012 = vmatprep.subr.mxu0 0.0
  %5013 = vmatpush1.msra.mxu0 0.0
  %5014 = vmatprep.subr.mxu0 0.0
  %5015 = vmatpush1.msra.mxu0 0.0
  %5016 = vmatprep.subr.mxu0 0.0
  %5017 = vmatpush1.msra.mxu0 %v35
  %5018 = vmatprep.subr.mxu0 0.0
  %5019 = vmatpush1.msra.mxu0 %v34
  %5020 = vmatprep.subr.mxu0 0.0
  %5021 = vmatpush1.msra.mxu0 %v33
  %5022 = vmatprep.subr.mxu0 0.0
  %5023 = vmatpush1.msra.mxu0 %v32
  %5024 = vmatprep.subr.mxu0 0.0
  %5025 = vmatpush2.msra.mxu0 0.0
  %5026 = vmatprep.subr.mxu0 0.0
  %5027 = vmatpush2.msra.mxu0 0.0
  %5028 = vmatprep.subr.mxu0 0.0
  %5029 = vmatpush2.msra.mxu0 0.0
  %5030 = vmatprep.subr.mxu0 0.0
  %5031 = vmatpush2.msra.mxu0 0.0
  %5032 = vmatprep.subr.mxu0 0.0
  %5033 = vmatpush2.msra.mxu0 0.0
  %5034 = vmatprep.subr.mxu0 0.0
  %5035 = vmatpush2.msra.mxu0 0.0
  %5036 = vmatprep.subr.mxu0 0.0
  %5037 = vmatpush2.msra.mxu0 0.0
  %5038 = vmatprep.subr.mxu0 0.0
  %5039 = vmatpush2.msra.mxu0 0.0
  %5040 = vmatprep.subr.mxu0 0.0
  %5041 = vmatpush2.msra.mxu0 0.0
  %5042 = vmatprep.subr.mxu0 0.0
  %5043 = vmatpush2.msra.mxu0 0.0
  %5044 = vmatprep.subr.mxu0 0.0
  %5045 = vmatpush2.msra.mxu0 0.0
  %5046 = vmatprep.subr.mxu0 0.0
  %5047 = vmatpush2.msra.mxu0 0.0
  %5048 = vmatprep.subr.mxu0 0.0
  %5049 = vmatpush2.msra.mxu0 0.0
  %5050 = vmatprep.subr.mxu0 0.0
  %5051 = vmatpush2.msra.mxu0 0.0
  %5052 = vmatprep.subr.mxu0 0.0
  %5053 = vmatpush2.msra.mxu0 0.0
  %5054 = vmatprep.subr.mxu0 0.0
  %5055 = vmatpush2.msra.mxu0 0.0
  %5056 = vmatprep.mubr.f32.mxu0 0.0
  %5057 = vmatmul.mubr.f32.gmra.mxu0 %v4987
  %v5058 = vpop.f32.mrf.mxu0
  %v5059 = vadd.f32 %v3347, %v5058
  %v5060 = vpop.f32.mrf.mxu0
  %5061 = vmatprep.mubr.f32.mxu0 0.0
  %5062 = vmatmul.mubr.f32.gmra.mxu0 %v4990
  %v5063 = vpop.f32.mrf.mxu0
  %v5064 = vadd.f32 %v3347, %v5063
  %v5065 = vpop.f32.mrf.mxu0
  %5066 = vdwg.mxu0
  %v5067 = vmax.f32 %v5059, 0.0
  %v5068 = vmax.f32 %v5064, 0.0
  %v5070 = vsel %vm685, %v5067, 0
  %v5073 = vsel %vm685, %v5068, 0
  %5075 = vmatprep.subr.mxu0 0.0
  %5076 = vmatpush1.msra.mxu0 0.0
  %5077 = vmatprep.subr.mxu0 0.0
  %5078 = vmatpush1.msra.mxu0 0.0
  %5079 = vmatprep.subr.mxu0 0.0
  %5080 = vmatpush1.msra.mxu0 0.0
  %5081 = vmatprep.subr.mxu0 0.0
  %5082 = vmatpush1.msra.mxu0 0.0
  %5083 = vmatprep.subr.mxu0 0.0
  %5084 = vmatpush1.msra.mxu0 0.0
  %5085 = vmatprep.subr.mxu0 0.0
  %5086 = vmatpush1.msra.mxu0 0.0
  %5087 = vmatprep.subr.mxu0 0.0
  %5088 = vmatpush1.msra.mxu0 0.0
  %5089 = vmatprep.subr.mxu0 0.0
  %5090 = vmatpush1.msra.mxu0 0.0
  %5091 = vmatprep.subr.mxu0 0.0
  %5092 = vmatpush1.msra.mxu0 0.0
  %5093 = vmatprep.subr.mxu0 0.0
  %5094 = vmatpush1.msra.mxu0 0.0
  %5095 = vmatprep.subr.mxu0 0.0
  %5096 = vmatpush1.msra.mxu0 0.0
  %5097 = vmatprep.subr.mxu0 0.0
  %5098 = vmatpush1.msra.mxu0 0.0
  %5099 = vmatprep.subr.mxu0 0.0
  %5100 = vmatpush1.msra.mxu0 %v39
  %5101 = vmatprep.subr.mxu0 0.0
  %5102 = vmatpush1.msra.mxu0 %v38
  %5103 = vmatprep.subr.mxu0 0.0
  %5104 = vmatpush1.msra.mxu0 %v37
  %5105 = vmatprep.subr.mxu0 0.0
  %5106 = vmatpush1.msra.mxu0 %v36
  %5107 = vmatprep.subr.mxu0 0.0
  %5108 = vmatpush2.msra.mxu0 0.0
  %5109 = vmatprep.subr.mxu0 0.0
  %5110 = vmatpush2.msra.mxu0 0.0
  %5111 = vmatprep.subr.mxu0 0.0
  %5112 = vmatpush2.msra.mxu0 0.0
  %5113 = vmatprep.subr.mxu0 0.0
  %5114 = vmatpush2.msra.mxu0 0.0
  %5115 = vmatprep.subr.mxu0 0.0
  %5116 = vmatpush2.msra.mxu0 0.0
  %5117 = vmatprep.subr.mxu0 0.0
  %5118 = vmatpush2.msra.mxu0 0.0
  %5119 = vmatprep.subr.mxu0 0.0
  %5120 = vmatpush2.msra.mxu0 0.0
  %5121 = vmatprep.subr.mxu0 0.0
  %5122 = vmatpush2.msra.mxu0 0.0
  %5123 = vmatprep.subr.mxu0 0.0
  %5124 = vmatpush2.msra.mxu0 0.0
  %5125 = vmatprep.subr.mxu0 0.0
  %5126 = vmatpush2.msra.mxu0 0.0
  %5127 = vmatprep.subr.mxu0 0.0
  %5128 = vmatpush2.msra.mxu0 0.0
  %5129 = vmatprep.subr.mxu0 0.0
  %5130 = vmatpush2.msra.mxu0 0.0
  %5131 = vmatprep.subr.mxu0 0.0
  %5132 = vmatpush2.msra.mxu0 0.0
  %5133 = vmatprep.subr.mxu0 0.0
  %5134 = vmatpush2.msra.mxu0 0.0
  %5135 = vmatprep.subr.mxu0 0.0
  %5136 = vmatpush2.msra.mxu0 0.0
  %5137 = vmatprep.subr.mxu0 0.0
  %5138 = vmatpush2.msra.mxu0 0.0
  %5139 = vmatprep.mubr.f32.mxu0 0.0
  %5140 = vmatmul.mubr.f32.gmra.mxu0 %v5070
  %v5141 = vpop.f32.mrf.mxu0
  %v5142 = vadd.f32 %v3434, %v5141
  %v5143 = vpop.f32.mrf.mxu0
  %5144 = vmatprep.mubr.f32.mxu0 0.0
  %5145 = vmatmul.mubr.f32.gmra.mxu0 %v5073
  %v5146 = vpop.f32.mrf.mxu0
  %v5147 = vadd.f32 %v3434, %v5146
  %v5148 = vpop.f32.mrf.mxu0
  %5149 = vdwg.mxu0
  %5150 = vst [vmem:[%s3 + $0x10] sm:$0xff] %v5142
  %5151 = vst [vmem:[%s3 + $0x18] sm:$0xff] %v5147
  // Predicated region
  $region14: #{astgcn_forward.1} parent=0 // pred_check
    _
  $region15: #{astgcn_forward.1} parent=0 // pred_check_branch
    %5153 = sbr.rel (0) target = $region17
  $region16: #{astgcn_forward.1} parent=0 // pred_region
    _
  $region17: #{astgcn_forward.1} parent=0 // pred_fallthru
    _
  // Predicated region
  $region18: #{astgcn_forward.1} parent=0 // pred_check
    _
  $region19: #{astgcn_forward.1} parent=0 // pred_check_branch
    %5155 = sbr.rel (0) target = $region21
  $region20: #{astgcn_forward.1} parent=0 // pred_region
    _
  $region21: #{astgcn_forward.1} parent=0 // pred_fallthru
    _

</llo_original>
